<compile_context>
chip_gen: v7x
topology: tpu7x:2x2x1
jax: 0.10.0
libtpu: 0.0.40
codegen_flags: <defaults>
</compile_context>

<pallas_src>
import math
import numpy as np
import jax
import jax.numpy as jnp
from jax import lax
from jax.experimental import pallas as pl
from jax.experimental.pallas import tpu as pltpu

GAMMA = 2.0
ALPHA = 0.25
PAD_IDX = 0
MATCH_THR = 0.5
BKG_THR = 0.4
SCALES = [1.0, 2.0 ** (-1.0 / 3.0), 2.0 ** (-2.0 / 3.0)]
RATIOS = [0.5, 1.0, 2.0]

ANC_ROWS = 8  # [c_y, c_x, s_h, s_w, valid, 0, 0, 0]
LANE = 128

_NATIVE_CLS_OK = None  # memo: does the in-kernel class-logit transpose lower on this build?


# ----------------------------- anchor creation (plain JAX glue) -----------------------------
def _create_grid(size):
    H, W = size
    lin_w = jnp.linspace(-1 + 1 / W, 1 - 1 / W, W) if W > 1 else jnp.array([0.0], jnp.float32)
    lin_h = jnp.linspace(-1 + 1 / H, 1 - 1 / H, H) if H > 1 else jnp.array([0.0], jnp.float32)
    gy = jnp.broadcast_to(lin_h[:, None], (H, W))
    gx = jnp.broadcast_to(lin_w[None, :], (H, W))
    return jnp.stack([gy, gx], axis=-1).reshape(-1, 2)


def create_anchors(sizes, ratios, scales):
    aspects = [[[s * math.sqrt(r), s * math.sqrt(1.0 / r)] for s in scales] for r in ratios]
    aspects = jnp.asarray(aspects, jnp.float32).reshape(-1, 2)
    anchors = []
    for h, w in sizes:
        sized = 4.0 * (aspects * jnp.asarray([2.0 / h, 2.0 / w], jnp.float32))
        grid = _create_grid((h, w))
        n, a = grid.shape[0], aspects.shape[0]
        ctrs = jnp.broadcast_to(grid[:, None, :], (n, a, 2))
        szs = jnp.broadcast_to(sized[None, :, :], (n, a, 2))
        anchors.append(jnp.concatenate([ctrs, szs], axis=2).reshape(n * a, 4))
    return jnp.concatenate(anchors, axis=0)  # (A, 4) cthw


def _round_up(x, m):
    return ((x + m - 1) // m) * m


def _build_anchor_pack(anchors, a_tot):
    """(ANC_ROWS, a_tot) lane-dense anchor constants; pad columns are unit-size, valid=0."""
    A = anchors.shape[0]
    rows = jnp.stack(
        [anchors[:, 0], anchors[:, 1], anchors[:, 2], anchors[:, 3],
         jnp.ones((A,), jnp.float32)],
        axis=0).astype(jnp.float32)                                   # (5, A)
    pad = a_tot - A
    if pad:
        pad_col = jnp.array([0.0, 0.0, 1.0, 1.0, 0.0], jnp.float32)   # finite 1/s, valid=0
        rows = jnp.concatenate([rows, jnp.broadcast_to(pad_col[:, None], (5, pad))], axis=1)
    rows = jnp.concatenate([rows, jnp.zeros((ANC_ROWS - 5, a_tot), jnp.float32)], axis=0)
    return rows  # (8, a_tot)


def _vmem_limit_bytes():
    """Raise the scoped VMEM limit with generation-aware headroom (None -> compiler default)."""
    try:
        phys = int(pltpu.get_tpu_info().vmem_capacity_bytes)
    except Exception:
        return None
    return int(min(max(phys - (16 << 20), 32 << 20), 96 << 20))


# --------------------------------------- Pallas kernel --------------------------------------
def _make_kernel(native_cls, focal_dtype):
    f32 = jnp.float32

    def kernel(anc_ref, cp_ref, bp_ref, ct_ref, bt_ref, out_ref, bb_acc, cl_acc, np_acc):
        t_idx = pl.program_id(2)
        last_t = pl.num_programs(2) - 1

        @pl.when(t_idx == 0)
        def _init():
            bb_acc[...] = jnp.zeros_like(bb_acc)
            cl_acc[...] = jnp.zeros_like(cl_acc)
            np_acc[...] = jnp.zeros_like(np_acc)

        # ---- anchor constants: 8-row pack, remaining quantities derived in-kernel ----
        anc = anc_ref[...]                               # (8, TA)
        a_c_y, a_c_x = anc[0:1, :], anc[1:2, :]
        a_s_h, a_s_w = anc[2:3, :], anc[3:4, :]
        valid_b = anc[4:5, :] > 0.5                      # (1, TA)
        half_h, half_w = 0.5 * a_s_h, 0.5 * a_s_w
        a_tl_y, a_br_y = a_c_y - half_h, a_c_y + half_h
        a_tl_x, a_br_x = a_c_x - half_w, a_c_x + half_w
        a_area = a_s_h * a_s_w
        a_inv_h = 1.0 / a_s_h
        a_inv_w = 1.0 / a_s_w

        bp = bp_ref[0].astype(f32)                       # (4, TA) box activations
        if native_cls:
            # native (TA, C) block -> lane-dense (C, TA); relayout hides under focal VPU math
            x = jnp.transpose(cp_ref[0].astype(f32))
        else:
            x = cp_ref[0].astype(f32)                    # already (C, TA)
        # Ragged last tile: OOB lanes hold garbage (possibly NaN/Inf); zero them BEFORE any
        # abs/exp/log so that the final 0-mask cannot be poisoned (NaN*0 = NaN).
        bp = jnp.where(valid_b, bp, 0.0)
        x = jnp.where(valid_b, x, 0.0)

        bt = bt_ref[0].astype(f32)                       # (T, 4) tlbr targets (front padded)
        ct = ct_ref[0].astype(f32)                       # (T, 1) class ids (0 == pad)
        T = bt.shape[0]
        C = x.shape[0]
        TA = anc.shape[1]

        t_tl_y, t_tl_x = bt[:, 0:1], bt[:, 1:2]          # (T, 1)
        t_br_y, t_br_x = bt[:, 2:3], bt[:, 3:4]
        t_c_y = 0.5 * (t_tl_y + t_br_y)                  # tlbr -> cthw
        t_c_x = 0.5 * (t_tl_x + t_br_x)
        t_s_h = t_br_y - t_tl_y
        t_s_w = t_br_x - t_tl_x
        t_area = t_s_h * t_s_w

        # ---- IoU (T, TA), anchors on lanes.  Padded targets are zero boxes -> IoU == 0. ----
        ih = jnp.maximum(jnp.minimum(a_br_y, t_br_y) - jnp.maximum(a_tl_y, t_tl_y), 0.0)
        iw = jnp.maximum(jnp.minimum(a_br_x, t_br_x) - jnp.maximum(a_tl_x, t_tl_x), 0.0)
        inter = ih * iw
        union = a_area + t_area - inter
        iou = inter / (union + 1e-8)

        # ---- matching: per-anchor best target; >0.5 match, <0.4 background, else ignore ----
        vals = jnp.max(iou, axis=0, keepdims=True)                    # (1, TA)
        t_iota = lax.broadcasted_iota(jnp.int32, (T, TA), 0)
        is_max = iou >= vals
        first_idx = jnp.min(jnp.where(is_max, t_iota, T), axis=0, keepdims=True)
        matched = jnp.logical_and(vals > MATCH_THR, valid_b)
        keep = jnp.logical_and(jnp.logical_or(matched, vals < BKG_THR), valid_b)
        matched_f = matched.astype(f32)
        keep_f = keep.astype(f32)
        onehot = jnp.logical_and(t_iota == first_idx, matched).astype(f32)   # (T, TA)

        np_acc[...] += matched_f                                       # lane-parallel partial

        # ---- box regression (smooth L1): masked sublane-reduce "gathers", all (1, TA) ----
        g_cy = jnp.sum(onehot * t_c_y, axis=0, keepdims=True)
        g_cx = jnp.sum(onehot * t_c_x, axis=0, keepdims=True)
        g_sh = jnp.sum(onehot * t_s_h, axis=0, keepdims=True)
        g_sw = jnp.sum(onehot * t_s_w, axis=0, keepdims=True)
        m_cls = jnp.sum(onehot * ct, axis=0, keepdims=True)            # matched class id (0 = none)

        tc_y = (g_cy - a_c_y) * a_inv_h * 10.0                         # 1/0.1
        tc_x = (g_cx - a_c_x) * a_inv_w * 10.0
        ts_h = jnp.log(g_sh * a_inv_h + 1e-8) * 5.0                    # 1/0.2
        ts_w = jnp.log(g_sw * a_inv_w + 1e-8) * 5.0

        def smooth_l1(d):
            ad = jnp.abs(d)
            return jnp.where(ad < 1.0, 0.5 * d * d, ad - 0.5)

        sl1 = (smooth_l1(bp[0:1, :] - tc_y) + smooth_l1(bp[1:2, :] - tc_x) +
               smooth_l1(bp[2:3, :] - ts_h) + smooth_l1(bp[3:4, :] - ts_w))    # (1, TA)
        bb_acc[...] += sl1 * matched_f                                 # masked AFTER smooth_l1

        # ---- focal loss (sigmoid BCE-with-logits), (C, TA) lane-dense, folded weights ----
        cls_idx = m_cls.astype(jnp.int32) - 1                          # (1, TA), -1 == no match
        c_iota = lax.broadcasted_iota(jnp.int32, (C, TA), 0)
        fd = focal_dtype
        xf = x.astype(fd)
        encoded = (c_iota == cls_idx).astype(fd)                       # (C, TA) one-hot / zeros
        e = jnp.exp(-jnp.abs(xf))                                      # single exp
        one_pe = 1.0 + e
        inv1pe = pl.reciprocal(one_pe, approx=True)                    # EUP approx reciprocal
        ps = jnp.where(xf >= 0, inv1pe, e * inv1pe)                    # stable sigmoid(x)
        w = ps + encoded * (1.0 - 2.0 * ps)                            # enc*(1-ps)+(1-enc)*ps
        alphas = ALPHA + encoded * (1.0 - 2.0 * ALPHA)
        w = (w * w if GAMMA == 2.0 else jnp.power(w, GAMMA)) * alphas
        bce = jnp.maximum(xf, 0.0) - xf * encoded + jnp.log(one_pe)    # single log
        cl_acc[...] += jnp.sum((w * bce).astype(f32), axis=0, keepdims=True) * keep_f

        # ---- finalize the segment: one cross-lane reduce per image split, raw partials out ----
        @pl.when(t_idx == last_t)
        def _finalize():
            bb = jnp.sum(bb_acc[...], keepdims=True)                   # (1, 1)
            cl = jnp.sum(cl_acc[...], keepdims=True)
            npv = jnp.sum(np_acc[...], keepdims=True)
            r = lax.broadcasted_iota(jnp.int32, (8, 128), 0)
            out_ref[0, 0] = jnp.where(r == 0, bb,
                                      jnp.where(r == 1, cl,
                                                jnp.where(r == 2, npv, 0.0)))

    return kernel


# ----------------------------------------- wrapper ------------------------------------------
def retinanet_focal_loss(output, bbox_tgts, clas_tgts, anchor_tile=None,
                         focal_dtype=jnp.float32, megacore_split=True):
    """focal_dtype=jnp.bfloat16 enables bf16 focal VPU/EUP math (v6e/v7x only); default f32."""
    global _NATIVE_CLS_OK
    clas_preds, bbox_preds, sizes = output
    anchors = create_anchors(sizes, RATIOS, SCALES)
    B, A, C = clas_preds.shape
    T = clas_tgts.shape[1]
    assert anchors.shape[0] == A, (anchors.shape, A)

    # ---- tiling: anchor axis padded to lane granularity only; ragged tiles masked in-kernel ----
    if anchor_tile is None:
        anchor_tile = 4096                               # amortize ~0.35us per-grid-step overhead
    A128 = _round_up(A, LANE)
    max_tile = max(LANE, min(_round_up(anchor_tile, LANE), A128))
    n_t = -(-A128 // max_tile)                           # number of anchor tiles
    TA = LANE * (-(-(A128 // LANE) // n_t))              # rebalance so all tiles are equal
    A_tot = TA * n_t
    n_split = 2 if (megacore_split and n_t % 2 == 0 and n_t >= 2) else 1   # v7x 2-TC split
    n_t_in = n_t // n_split

    anc_pack = _build_anchor_pack(anchors, A_tot)        # (8, A_tot), shared by all images

    # bbox preds are tiny (16 B/anchor): a wrapper transpose is ~free and keeps the box math
    # lane-dense.  The *class* tensor (the dominant HBM stream) is consumed in native layout.
    bp_t = jnp.transpose(bbox_preds, (0, 2, 1))          # (B, 4, A)
    ct = clas_tgts.reshape(B, T, 1).astype(jnp.int32)    # (B, T, 1)
    bt = bbox_tgts                                       # (B, T, 4), native dtype

    vmem_limit = _vmem_limit_bytes()

    def build(native_cls):
        if native_cls:
            cp_in = clas_preds                            # (B, A, C), no pad, no transpose
            cp_spec = pl.BlockSpec((1, TA, C), lambda b, s, t: (b, s * n_t_in + t, 0))
        else:
            cp_in = jnp.transpose(clas_preds, (0, 2, 1))  # fallback: (B, C, A)
            cp_spec = pl.BlockSpec((1, C, TA), lambda b, s, t: (b, 0, s * n_t_in + t))
        call = pl.pallas_call(
            _make_kernel(native_cls, focal_dtype),
            out_shape=jax.ShapeDtypeStruct((B, n_split, 8, 128), jnp.float32),
            grid=(B, n_split, n_t_in),
            in_specs=[
                pl.BlockSpec((ANC_ROWS, TA), lambda b, s, t: (0, s * n_t_in + t)),
                cp_spec,
                pl.BlockSpec((1, 4, TA), lambda b, s, t: (b, 0, s * n_t_in + t)),
                pl.BlockSpec((1, T, 1), lambda b, s, t: (b, 0, 0)),
                pl.BlockSpec((1, T, 4), lambda b, s, t: (b, 0, 0)),
            ],
            out_specs=pl.BlockSpec((1, 1, 8, 128), lambda b, s, t: (b, s, 0, 0)),
            scratch_shapes=[
                pltpu.VMEM((1, TA), jnp.float32),         # bb_sum lane-parallel partial
                pltpu.VMEM((1, TA), jnp.float32),         # clas_sum lane-parallel partial
                pltpu.VMEM((1, TA), jnp.float32),         # n_pos lane-parallel partial
            ],
            compiler_params=pltpu.CompilerParams(
                dimension_semantics=("parallel", "parallel", "arbitrary"),
                vmem_limit_bytes=vmem_limit),
        )
        return call(anc_pack, cp_in, bp_t, ct, bt)

    if _NATIVE_CLS_OK is None:
        try:
            out = jax.block_until_ready(build(True))
            _NATIVE_CLS_OK = True
        except Exception:
            _NATIVE_CLS_OK = False
            out = build(False)
    else:
        out = build(_NATIVE_CLS_OK)

    bb = jnp.sum(out[:, :, 0, 0], axis=1)                 # (B,) raw smooth-L1 sums
    cl = jnp.sum(out[:, :, 1, 0], axis=1)                 # (B,) raw focal BCE sums
    npos = jnp.sum(out[:, :, 2, 0], axis=1)               # (B,) positive counts
    per_image = bb / jnp.maximum(4.0 * npos, 1.0) + cl / jnp.maximum(npos, 1.0)
    return jnp.sum(per_image) / B


# ------------------------------ numpy reference (PyTorch semantics) -------------------------
def _reference_loss(anchors, clas_preds, bbox_preds, bbox_tgts, clas_tgts):
    anchors = np.asarray(anchors, np.float64)
    clas_preds = np.asarray(clas_preds, np.float64)
    bbox_preds = np.asarray(bbox_preds, np.float64)
    bbox_tgts = np.asarray(bbox_tgts, np.float64)
    clas_tgts = np.asarray(clas_tgts)
    B = clas_preds.shape[0]
    total = 0.0
    for b in range(B):
        cp, bp, ct, bt = clas_preds[b], bbox_preds[b], clas_tgts[b], bbox_tgts[b]
        i = int(np.nonzero(ct - PAD_IDX)[0].min())
        bt, ct = bt[i:], ct[i:] - 1 + PAD_IDX
        bt = np.concatenate([(bt[:, :2] + bt[:, 2:]) / 2, bt[:, 2:] - bt[:, :2]], 1)  # cthw
        a_tl, a_br = anchors[:, :2] - anchors[:, 2:] / 2, anchors[:, :2] + anchors[:, 2:] / 2
        t_tl, t_br = bt[:, :2] - bt[:, 2:] / 2, bt[:, :2] + bt[:, 2:] / 2
        sz = np.clip(np.minimum(a_br[:, None], t_br[None]) - np.maximum(a_tl[:, None], t_tl[None]), 0, None)
        inter = sz[..., 0] * sz[..., 1]
        union = (anchors[:, 2] * anchors[:, 3])[:, None] + (bt[:, 2] * bt[:, 3])[None] - inter
        iou = inter / (union + 1e-8)
        vals, idxs = iou.max(1), iou.argmax(1)
        matches = np.full(anchors.shape[0], -2, np.int64)
        matches[vals < BKG_THR] = -1
        matches[vals > MATCH_THR] = idxs[vals > MATCH_THR]
        bbox_mask = matches >= 0
        n_pos = int(bbox_mask.sum())
        if n_pos > 0:
            bp_s, bt_s, an_s = bp[bbox_mask], bt[matches[bbox_mask]], anchors[bbox_mask]
            t_c = (bt_s[:, :2] - an_s[:, :2]) / an_s[:, 2:]
            t_s = np.log(bt_s[:, 2:] / an_s[:, 2:] + 1e-8)
            d = bp_s - np.concatenate([t_c, t_s], 1) / np.array([[0.1, 0.1, 0.2, 0.2]])
            ad = np.abs(d)
            bb_loss = np.where(ad < 1, 0.5 * d * d, ad - 0.5).mean()
        else:
            bb_loss = 0.0
        matches = matches + 1
        ct_full = np.concatenate([np.zeros(1, np.int64), ct + 1])
        clas_mask = matches >= 0
        cp_s, ct_s = cp[clas_mask], ct_full[matches[clas_mask]]
        Cn = cp.shape[1]
        enc = np.zeros((len(ct_s), Cn))
        m = ct_s != 0
        enc[np.arange(len(ct_s))[m], ct_s[m] - 1] = 1.0
        ps = 1 / (1 + np.exp(-cp_s))
        w = enc * (1 - ps) + (1 - enc) * ps
        alphas = (1 - enc) * ALPHA + enc * (1 - ALPHA)
        w = (w ** GAMMA) * alphas
        bce = np.maximum(cp_s, 0) - cp_s * enc + np.log1p(np.exp(-np.abs(cp_s)))
        total += bb_loss + (w * bce).sum() / max(n_pos, 1.0)
    return total / B


if __name__ == "__main__":
    key = jax.random.PRNGKey(0)
    B, C, T = 2, 4, 6
    sizes = [(4, 4), (2, 2)]
    anchors = create_anchors(sizes, RATIOS, SCALES)
    A = anchors.shape[0]  # (16 + 4) * 9 = 180 anchors

    k1, k2 = jax.random.split(key)
    clas_preds = jax.random.normal(k1, (B, A, C), jnp.float32)
    bbox_preds = 0.5 * jax.random.normal(k2, (B, A, 4), jnp.float32)

    # front-padded targets (pad class = 0, pad box = zeros), boxes in tlbr [-1, 1] coords
    bbox_tgts_np = np.zeros((B, T, 4), np.float32)
    clas_tgts_np = np.zeros((B, T), np.int32)
    bbox_tgts_np[0, 4] = [-0.43, -0.47, 0.93, 0.91]; clas_tgts_np[0, 4] = 2
    bbox_tgts_np[0, 5] = [-0.83, -0.87, 0.37, 0.33]; clas_tgts_np[0, 5] = 3
    bbox_tgts_np[1, 3] = [0.12, 0.08, 1.38, 1.42];   clas_tgts_np[1, 3] = 1
    bbox_tgts_np[1, 4] = [-1.47, -0.52, 0.03, 0.98]; clas_tgts_np[1, 4] = 4
    bbox_tgts_np[1, 5] = [-0.23, -1.22, 0.77, -0.28]; clas_tgts_np[1, 5] = 2
    bbox_tgts = jnp.asarray(bbox_tgts_np)
    clas_tgts = jnp.asarray(clas_tgts_np)

    ref = _reference_loss(anchors, clas_preds, bbox_preds, bbox_tgts, clas_tgts)
    # Tolerance accounts for f32 kernel vs f64 reference and the approximate EUP reciprocal.
    tol = 1e-2 * max(1.0, abs(ref))

    # Default tiling (single anchor tile at this toy size, ragged last tile).
    loss = retinanet_focal_loss((clas_preds, bbox_preds, sizes), bbox_tgts, clas_tgts)
    loss = jax.block_until_ready(loss)
    assert abs(float(loss) - ref) <= tol, (float(loss), ref)

    # Two anchor tiles split across the parallel (megacore) axis.
    loss2 = retinanet_focal_loss((clas_preds, bbox_preds, sizes), bbox_tgts, clas_tgts,
                                 anchor_tile=128)
    loss2 = jax.block_until_ready(loss2)
    assert abs(float(loss2) - ref) <= tol, (float(loss2), ref)

    # Two anchor tiles on the sequential axis (exercises cross-tile accumulate / finalize).
    loss3 = retinanet_focal_loss((clas_preds, bbox_preds, sizes), bbox_tgts, clas_tgts,
                                 anchor_tile=128, megacore_split=False)
    loss3 = jax.block_until_ready(loss3)
    assert abs(float(loss3) - ref) <= tol, (float(loss3), ref)

    print("KERNEL_OK")
</pallas_src>

<mosaic_0001>
module attributes {stable_mosaic.version = 11 : i64} {
  func.func @kernel(%arg0: i32, %arg1: i32, %arg2: i32, %arg3: memref<8x256xf32, #tpu.memory_space<vmem>>, %arg4: memref<1x256x4xf32, #tpu.memory_space<vmem>>, %arg5: memref<1x4x256xf32, #tpu.memory_space<vmem>>, %arg6: memref<1x6x1xi32, #tpu.memory_space<vmem>>, %arg7: memref<1x6x4xf32, #tpu.memory_space<vmem>>, %arg8: memref<1x1x8x128xf32, #tpu.memory_space<vmem>>, %arg9: memref<1x256xf32, #tpu.memory_space<vmem>>, %arg10: memref<1x256xf32, #tpu.memory_space<vmem>>, %arg11: memref<1x256xf32, #tpu.memory_space<vmem>>) attributes {dimension_semantics = [#tpu.dimension_semantics<parallel>, #tpu.dimension_semantics<parallel>, #tpu.dimension_semantics<arbitrary>], iteration_bounds = array<i64: 2, 1, 1>, scalar_prefetch = 0 : i64, scratch_operands = 3 : i64, tpu.core_type = #tpu.core_type<tc>, window_params = [{transform_indices = @transform_0, window_bounds = array<i64: 8, 256>}, {transform_indices = @transform_1, window_bounds = array<i64: 1, 256, 4>}, {transform_indices = @transform_2, window_bounds = array<i64: 1, 4, 256>}, {transform_indices = @transform_3, window_bounds = array<i64: 1, 6, 1>}, {transform_indices = @transform_4, window_bounds = array<i64: 1, 6, 4>}, {transform_indices = @transform_5, window_bounds = array<i64: 1, 1, 8, 128>}]} {
    %c0_i32 = arith.constant 0 : i32
    %0 = arith.cmpi eq, %arg2, %c0_i32 : i32
    %1 = arith.extui %0 : i1 to i32
    %c0_i32_0 = arith.constant 0 : i32
    %2 = arith.cmpi ne, %1, %c0_i32_0 : i32
    scf.if %2 {
      %cst_75 = arith.constant 0.000000e+00 : f32
      %248 = vector.broadcast %cst_75 : f32 to vector<1x256xf32>
      %c0_76 = arith.constant 0 : index
      %c0_77 = arith.constant 0 : index
      %249 = vector.load %arg9[%c0_76, %c0_77] : memref<1x256xf32, #tpu.memory_space<vmem>>, vector<1x256xf32>
      tpu.vector_store %arg9[%c0_76, %c0_77], %248 {strides = array<i32>} : memref<1x256xf32, #tpu.memory_space<vmem>>, vector<1x256xf32>,
      %cst_78 = arith.constant 0.000000e+00 : f32
      %250 = vector.broadcast %cst_78 : f32 to vector<1x256xf32>
      %c0_79 = arith.constant 0 : index
      %c0_80 = arith.constant 0 : index
      %251 = vector.load %arg10[%c0_79, %c0_80] : memref<1x256xf32, #tpu.memory_space<vmem>>, vector<1x256xf32>
      tpu.vector_store %arg10[%c0_79, %c0_80], %250 {strides = array<i32>} : memref<1x256xf32, #tpu.memory_space<vmem>>, vector<1x256xf32>,
      %cst_81 = arith.constant 0.000000e+00 : f32
      %252 = vector.broadcast %cst_81 : f32 to vector<1x256xf32>
      %c0_82 = arith.constant 0 : index
      %c0_83 = arith.constant 0 : index
      %253 = vector.load %arg11[%c0_82, %c0_83] : memref<1x256xf32, #tpu.memory_space<vmem>>, vector<1x256xf32>
      tpu.vector_store %arg11[%c0_82, %c0_83], %252 {strides = array<i32>} : memref<1x256xf32, #tpu.memory_space<vmem>>, vector<1x256xf32>,
    } else {
    }
    %c0 = arith.constant 0 : index
    %c0_1 = arith.constant 0 : index
    %3 = vector.load %arg3[%c0, %c0_1] : memref<8x256xf32, #tpu.memory_space<vmem>>, vector<8x256xf32>
    %4 = vector.extract_strided_slice %3 {offsets = [0, 0], sizes = [1, 256], strides = [1, 1]} : vector<8x256xf32> to vector<1x256xf32>
    %5 = vector.extract_strided_slice %3 {offsets = [1, 0], sizes = [1, 256], strides = [1, 1]} : vector<8x256xf32> to vector<1x256xf32>
    %6 = vector.extract_strided_slice %3 {offsets = [2, 0], sizes = [1, 256], strides = [1, 1]} : vector<8x256xf32> to vector<1x256xf32>
    %7 = vector.extract_strided_slice %3 {offsets = [3, 0], sizes = [1, 256], strides = [1, 1]} : vector<8x256xf32> to vector<1x256xf32>
    %8 = vector.extract_strided_slice %3 {offsets = [4, 0], sizes = [1, 256], strides = [1, 1]} : vector<8x256xf32> to vector<1x256xf32>
    %cst = arith.constant 5.000000e-01 : f32
    %9 = vector.broadcast %cst : f32 to vector<1x256xf32>
    %10 = arith.cmpf ogt, %8, %9 : vector<1x256xf32>
    %cst_2 = arith.constant 5.000000e-01 : f32
    %11 = vector.broadcast %cst_2 : f32 to vector<1x256xf32>
    %12 = arith.mulf %11, %6 : vector<1x256xf32>
    %cst_3 = arith.constant 5.000000e-01 : f32
    %13 = vector.broadcast %cst_3 : f32 to vector<1x256xf32>
    %14 = arith.mulf %13, %7 : vector<1x256xf32>
    %15 = arith.subf %4, %12 : vector<1x256xf32>
    %16 = arith.addf %4, %12 : vector<1x256xf32>
    %17 = arith.subf %5, %14 : vector<1x256xf32>
    %18 = arith.addf %5, %14 : vector<1x256xf32>
    %19 = arith.mulf %6, %7 : vector<1x256xf32>
    %cst_4 = arith.constant 1.000000e+00 : f32
    %20 = vector.broadcast %cst_4 : f32 to vector<1x256xf32>
    %21 = arith.divf %20, %6 : vector<1x256xf32>
    %cst_5 = arith.constant 1.000000e+00 : f32
    %22 = vector.broadcast %cst_5 : f32 to vector<1x256xf32>
    %23 = arith.divf %22, %7 : vector<1x256xf32>
    %c0_6 = arith.constant 0 : index
    %c0_7 = arith.constant 0 : index
    %c0_8 = arith.constant 0 : index
    %24 = vector.load %arg5[%c0_6, %c0_7, %c0_8] : memref<1x4x256xf32, #tpu.memory_space<vmem>>, vector<1x4x256xf32>
    %25 = vector.shape_cast %24 : vector<1x4x256xf32> to vector<4x256xf32>
    %c0_9 = arith.constant 0 : index
    %c0_10 = arith.constant 0 : index
    %c0_11 = arith.constant 0 : index
    %26 = vector.load %arg4[%c0_9, %c0_10, %c0_11] : memref<1x256x4xf32, #tpu.memory_space<vmem>>, vector<1x256x4xf32>
    %27 = vector.shape_cast %26 : vector<1x256x4xf32> to vector<256x4xf32>
    %28 = tpu.transpose %27, [1, 0] : vector<256x4xf32> -> vector<4x256xf32>
    %cst_12 = arith.constant 0.000000e+00 : f32
    %29 = vector.shape_cast %10 : vector<1x256xi1> to vector<1x256xi1>
    %30 = vector.broadcast %29 : vector<1x256xi1> to vector<4x256xi1>
    %31 = vector.broadcast %cst_12 : f32 to vector<4x256xf32>
    %32 = arith.select %30, %25, %31 : vector<4x256xi1>, vector<4x256xf32>
    %cst_13 = arith.constant 0.000000e+00 : f32
    %33 = vector.shape_cast %10 : vector<1x256xi1> to vector<1x256xi1>
    %34 = vector.broadcast %33 : vector<1x256xi1> to vector<4x256xi1>
    %35 = vector.broadcast %cst_13 : f32 to vector<4x256xf32>
    %36 = arith.select %34, %28, %35 : vector<4x256xi1>, vector<4x256xf32>
    %c0_14 = arith.constant 0 : index
    %c0_15 = arith.constant 0 : index
    %c0_16 = arith.constant 0 : index
    %37 = vector.load %arg7[%c0_14, %c0_15, %c0_16] : memref<1x6x4xf32, #tpu.memory_space<vmem>>, vector<1x6x4xf32>
    %38 = vector.shape_cast %37 : vector<1x6x4xf32> to vector<6x4xf32>
    %c0_17 = arith.constant 0 : index
    %c0_18 = arith.constant 0 : index
    %c0_19 = arith.constant 0 : index
    %39 = vector.load %arg6[%c0_17, %c0_18, %c0_19] : memref<1x6x1xi32, #tpu.memory_space<vmem>>, vector<1x6x1xi32>
    %40 = vector.shape_cast %39 : vector<1x6x1xi32> to vector<6x1xi32>
    %41 = arith.sitofp %40 : vector<6x1xi32> to vector<6x1xf32>
    %42 = vector.extract_strided_slice %38 {offsets = [0, 0], sizes = [6, 1], strides = [1, 1]} : vector<6x4xf32> to vector<6x1xf32>
    %43 = vector.extract_strided_slice %38 {offsets = [0, 1], sizes = [6, 1], strides = [1, 1]} : vector<6x4xf32> to vector<6x1xf32>
    %44 = vector.extract_strided_slice %38 {offsets = [0, 2], sizes = [6, 1], strides = [1, 1]} : vector<6x4xf32> to vector<6x1xf32>
    %45 = vector.extract_strided_slice %38 {offsets = [0, 3], sizes = [6, 1], strides = [1, 1]} : vector<6x4xf32> to vector<6x1xf32>
    %46 = arith.addf %42, %44 : vector<6x1xf32>
    %cst_20 = arith.constant 5.000000e-01 : f32
    %47 = vector.broadcast %cst_20 : f32 to vector<6x1xf32>
    %48 = arith.mulf %47, %46 : vector<6x1xf32>
    %49 = arith.addf %43, %45 : vector<6x1xf32>
    %cst_21 = arith.constant 5.000000e-01 : f32
    %50 = vector.broadcast %cst_21 : f32 to vector<6x1xf32>
    %51 = arith.mulf %50, %49 : vector<6x1xf32>
    %52 = arith.subf %44, %42 : vector<6x1xf32>
    %53 = arith.subf %45, %43 : vector<6x1xf32>
    %54 = arith.mulf %52, %53 : vector<6x1xf32>
    %55 = vector.broadcast %16 : vector<1x256xf32> to vector<6x256xf32>
    %56 = vector.broadcast %44 : vector<6x1xf32> to vector<6x256xf32>
    %57 = arith.minimumf %55, %56 : vector<6x256xf32>
    %58 = vector.broadcast %15 : vector<1x256xf32> to vector<6x256xf32>
    %59 = vector.broadcast %42 : vector<6x1xf32> to vector<6x256xf32>
    %60 = arith.maximumf %58, %59 : vector<6x256xf32>
    %61 = arith.subf %57, %60 : vector<6x256xf32>
    %cst_22 = arith.constant 0.000000e+00 : f32
    %62 = vector.broadcast %cst_22 : f32 to vector<6x256xf32>
    %63 = arith.maximumf %61, %62 : vector<6x256xf32>
    %64 = vector.broadcast %18 : vector<1x256xf32> to vector<6x256xf32>
    %65 = vector.broadcast %45 : vector<6x1xf32> to vector<6x256xf32>
    %66 = arith.minimumf %64, %65 : vector<6x256xf32>
    %67 = vector.broadcast %17 : vector<1x256xf32> to vector<6x256xf32>
    %68 = vector.broadcast %43 : vector<6x1xf32> to vector<6x256xf32>
    %69 = arith.maximumf %67, %68 : vector<6x256xf32>
    %70 = arith.subf %66, %69 : vector<6x256xf32>
    %cst_23 = arith.constant 0.000000e+00 : f32
    %71 = vector.broadcast %cst_23 : f32 to vector<6x256xf32>
    %72 = arith.maximumf %70, %71 : vector<6x256xf32>
    %73 = arith.mulf %63, %72 : vector<6x256xf32>
    %74 = vector.broadcast %19 : vector<1x256xf32> to vector<6x256xf32>
    %75 = vector.broadcast %54 : vector<6x1xf32> to vector<6x256xf32>
    %76 = arith.addf %74, %75 : vector<6x256xf32>
    %77 = arith.subf %76, %73 : vector<6x256xf32>
    %cst_24 = arith.constant 9.99999993E-9 : f32
    %78 = vector.broadcast %cst_24 : f32 to vector<6x256xf32>
    %79 = arith.addf %77, %78 : vector<6x256xf32>
    %80 = arith.divf %73, %79 : vector<6x256xf32>
    %cst_25 = arith.constant dense<0xFF800000> : vector<256xf32>
    %81 = vector.multi_reduction <maximumf>, %80, %cst_25 [0] : vector<6x256xf32> to vector<256xf32>
    %82 = vector.shape_cast %81 : vector<256xf32> to vector<1x256xf32>
    %83 = tpu.iota {dimensions = array<i32: 0>} : vector<6x256xi32>
    %84 = vector.broadcast %82 : vector<1x256xf32> to vector<6x256xf32>
    %85 = arith.cmpf oge, %80, %84 : vector<6x256xf32>
    %c6_i32 = arith.constant 6 : i32
    %86 = vector.broadcast %c6_i32 : i32 to vector<6x256xi32>
    %87 = arith.select %85, %83, %86 : vector<6x256xi1>, vector<6x256xi32>
    %cst_26 = arith.constant dense<2147483647> : vector<256xi32>
    %88 = vector.multi_reduction <minsi>, %87, %cst_26 [0] : vector<6x256xi32> to vector<256xi32>
    %89 = vector.shape_cast %88 : vector<256xi32> to vector<1x256xi32>
    %cst_27 = arith.constant 5.000000e-01 : f32
    %90 = vector.broadcast %cst_27 : f32 to vector<1x256xf32>
    %91 = arith.cmpf ogt, %82, %90 : vector<1x256xf32>
    %92 = arith.andi %91, %10 : vector<1x256xi1>
    %cst_28 = arith.constant 4.000000e-01 : f32
    %93 = vector.broadcast %cst_28 : f32 to vector<1x256xf32>
    %94 = arith.cmpf olt, %82, %93 : vector<1x256xf32>
    %95 = arith.ori %92, %94 : vector<1x256xi1>
    %96 = arith.andi %95, %10 : vector<1x256xi1>
    %97 = arith.extui %92 : vector<1x256xi1> to vector<1x256xi32>
    %98 = arith.sitofp %97 : vector<1x256xi32> to vector<1x256xf32>
    %99 = arith.extui %96 : vector<1x256xi1> to vector<1x256xi32>
    %100 = arith.sitofp %99 : vector<1x256xi32> to vector<1x256xf32>
    %101 = vector.broadcast %89 : vector<1x256xi32> to vector<6x256xi32>
    %102 = arith.cmpi eq, %83, %101 : vector<6x256xi32>
    %103 = vector.broadcast %92 : vector<1x256xi1> to vector<6x256xi1>
    %104 = arith.andi %102, %103 : vector<6x256xi1>
    %105 = arith.extui %104 : vector<6x256xi1> to vector<6x256xi32>
    %106 = arith.sitofp %105 : vector<6x256xi32> to vector<6x256xf32>
    %c0_29 = arith.constant 0 : index
    %c0_30 = arith.constant 0 : index
    %107 = vector.load %arg11[%c0_29, %c0_30] : memref<1x256xf32, #tpu.memory_space<vmem>>, vector<1x256xf32>
    %108 = arith.addf %107, %98 : vector<1x256xf32>
    %c0_31 = arith.constant 0 : index
    %c0_32 = arith.constant 0 : index
    %109 = vector.load %arg11[%c0_31, %c0_32] : memref<1x256xf32, #tpu.memory_space<vmem>>, vector<1x256xf32>
    tpu.vector_store %arg11[%c0_31, %c0_32], %108 {strides = array<i32>} : memref<1x256xf32, #tpu.memory_space<vmem>>, vector<1x256xf32>,
    %110 = vector.broadcast %48 : vector<6x1xf32> to vector<6x256xf32>
    %111 = arith.mulf %106, %110 : vector<6x256xf32>
    %cst_33 = arith.constant dense<0.000000e+00> : vector<256xf32>
    %112 = vector.multi_reduction <add>, %111, %cst_33 [0] : vector<6x256xf32> to vector<256xf32>
    %113 = vector.shape_cast %112 : vector<256xf32> to vector<1x256xf32>
    %114 = vector.broadcast %51 : vector<6x1xf32> to vector<6x256xf32>
    %115 = arith.mulf %106, %114 : vector<6x256xf32>
    %cst_34 = arith.constant dense<0.000000e+00> : vector<256xf32>
    %116 = vector.multi_reduction <add>, %115, %cst_34 [0] : vector<6x256xf32> to vector<256xf32>
    %117 = vector.shape_cast %116 : vector<256xf32> to vector<1x256xf32>
    %118 = vector.broadcast %52 : vector<6x1xf32> to vector<6x256xf32>
    %119 = arith.mulf %106, %118 : vector<6x256xf32>
    %cst_35 = arith.constant dense<0.000000e+00> : vector<256xf32>
    %120 = vector.multi_reduction <add>, %119, %cst_35 [0] : vector<6x256xf32> to vector<256xf32>
    %121 = vector.shape_cast %120 : vector<256xf32> to vector<1x256xf32>
    %122 = vector.broadcast %53 : vector<6x1xf32> to vector<6x256xf32>
    %123 = arith.mulf %106, %122 : vector<6x256xf32>
    %cst_36 = arith.constant dense<0.000000e+00> : vector<256xf32>
    %124 = vector.multi_reduction <add>, %123, %cst_36 [0] : vector<6x256xf32> to vector<256xf32>
    %125 = vector.shape_cast %124 : vector<256xf32> to vector<1x256xf32>
    %126 = vector.broadcast %41 : vector<6x1xf32> to vector<6x256xf32>
    %127 = arith.mulf %106, %126 : vector<6x256xf32>
    %cst_37 = arith.constant dense<0.000000e+00> : vector<256xf32>
    %128 = vector.multi_reduction <add>, %127, %cst_37 [0] : vector<6x256xf32> to vector<256xf32>
    %129 = vector.shape_cast %128 : vector<256xf32> to vector<1x256xf32>
    %130 = arith.subf %113, %4 : vector<1x256xf32>
    %131 = arith.mulf %130, %21 : vector<1x256xf32>
    %cst_38 = arith.constant 1.000000e+01 : f32
    %132 = vector.broadcast %cst_38 : f32 to vector<1x256xf32>
    %133 = arith.mulf %131, %132 : vector<1x256xf32>
    %134 = arith.subf %117, %5 : vector<1x256xf32>
    %135 = arith.mulf %134, %23 : vector<1x256xf32>
    %cst_39 = arith.constant 1.000000e+01 : f32
    %136 = vector.broadcast %cst_39 : f32 to vector<1x256xf32>
    %137 = arith.mulf %135, %136 : vector<1x256xf32>
    %138 = arith.mulf %121, %21 : vector<1x256xf32>
    %cst_40 = arith.constant 9.99999993E-9 : f32
    %139 = vector.broadcast %cst_40 : f32 to vector<1x256xf32>
    %140 = arith.addf %138, %139 : vector<1x256xf32>
    %141 = math.log %140 : vector<1x256xf32>
    %cst_41 = arith.constant 5.000000e+00 : f32
    %142 = vector.broadcast %cst_41 : f32 to vector<1x256xf32>
    %143 = arith.mulf %141, %142 : vector<1x256xf32>
    %144 = arith.mulf %125, %23 : vector<1x256xf32>
    %cst_42 = arith.constant 9.99999993E-9 : f32
    %145 = vector.broadcast %cst_42 : f32 to vector<1x256xf32>
    %146 = arith.addf %144, %145 : vector<1x256xf32>
    %147 = math.log %146 : vector<1x256xf32>
    %cst_43 = arith.constant 5.000000e+00 : f32
    %148 = vector.broadcast %cst_43 : f32 to vector<1x256xf32>
    %149 = arith.mulf %147, %148 : vector<1x256xf32>
    %150 = vector.extract_strided_slice %32 {offsets = [0, 0], sizes = [1, 256], strides = [1, 1]} : vector<4x256xf32> to vector<1x256xf32>
    %151 = arith.subf %150, %133 : vector<1x256xf32>
    %152 = math.absf %151 : vector<1x256xf32>
    %cst_44 = arith.constant 1.000000e+00 : f32
    %153 = vector.broadcast %cst_44 : f32 to vector<1x256xf32>
    %154 = arith.cmpf olt, %152, %153 : vector<1x256xf32>
    %cst_45 = arith.constant 5.000000e-01 : f32
    %155 = vector.broadcast %cst_45 : f32 to vector<1x256xf32>
    %156 = arith.mulf %155, %151 : vector<1x256xf32>
    %157 = arith.mulf %156, %151 : vector<1x256xf32>
    %cst_46 = arith.constant 5.000000e-01 : f32
    %158 = vector.broadcast %cst_46 : f32 to vector<1x256xf32>
    %159 = arith.subf %152, %158 : vector<1x256xf32>
    %160 = arith.select %154, %157, %159 : vector<1x256xi1>, vector<1x256xf32>
    %161 = vector.extract_strided_slice %32 {offsets = [1, 0], sizes = [1, 256], strides = [1, 1]} : vector<4x256xf32> to vector<1x256xf32>
    %162 = arith.subf %161, %137 : vector<1x256xf32>
    %163 = math.absf %162 : vector<1x256xf32>
    %cst_47 = arith.constant 1.000000e+00 : f32
    %164 = vector.broadcast %cst_47 : f32 to vector<1x256xf32>
    %165 = arith.cmpf olt, %163, %164 : vector<1x256xf32>
    %cst_48 = arith.constant 5.000000e-01 : f32
    %166 = vector.broadcast %cst_48 : f32 to vector<1x256xf32>
    %167 = arith.mulf %166, %162 : vector<1x256xf32>
    %168 = arith.mulf %167, %162 : vector<1x256xf32>
    %cst_49 = arith.constant 5.000000e-01 : f32
    %169 = vector.broadcast %cst_49 : f32 to vector<1x256xf32>
    %170 = arith.subf %163, %169 : vector<1x256xf32>
    %171 = arith.select %165, %168, %170 : vector<1x256xi1>, vector<1x256xf32>
    %172 = arith.addf %160, %171 : vector<1x256xf32>
    %173 = vector.extract_strided_slice %32 {offsets = [2, 0], sizes = [1, 256], strides = [1, 1]} : vector<4x256xf32> to vector<1x256xf32>
    %174 = arith.subf %173, %143 : vector<1x256xf32>
    %175 = math.absf %174 : vector<1x256xf32>
    %cst_50 = arith.constant 1.000000e+00 : f32
    %176 = vector.broadcast %cst_50 : f32 to vector<1x256xf32>
    %177 = arith.cmpf olt, %175, %176 : vector<1x256xf32>
    %cst_51 = arith.constant 5.000000e-01 : f32
    %178 = vector.broadcast %cst_51 : f32 to vector<1x256xf32>
    %179 = arith.mulf %178, %174 : vector<1x256xf32>
    %180 = arith.mulf %179, %174 : vector<1x256xf32>
    %cst_52 = arith.constant 5.000000e-01 : f32
    %181 = vector.broadcast %cst_52 : f32 to vector<1x256xf32>
    %182 = arith.subf %175, %181 : vector<1x256xf32>
    %183 = arith.select %177, %180, %182 : vector<1x256xi1>, vector<1x256xf32>
    %184 = arith.addf %172, %183 : vector<1x256xf32>
    %185 = vector.extract_strided_slice %32 {offsets = [3, 0], sizes = [1, 256], strides = [1, 1]} : vector<4x256xf32> to vector<1x256xf32>
    %186 = arith.subf %185, %149 : vector<1x256xf32>
    %187 = math.absf %186 : vector<1x256xf32>
    %cst_53 = arith.constant 1.000000e+00 : f32
    %188 = vector.broadcast %cst_53 : f32 to vector<1x256xf32>
    %189 = arith.cmpf olt, %187, %188 : vector<1x256xf32>
    %cst_54 = arith.constant 5.000000e-01 : f32
    %190 = vector.broadcast %cst_54 : f32 to vector<1x256xf32>
    %191 = arith.mulf %190, %186 : vector<1x256xf32>
    %192 = arith.mulf %191, %186 : vector<1x256xf32>
    %cst_55 = arith.constant 5.000000e-01 : f32
    %193 = vector.broadcast %cst_55 : f32 to vector<1x256xf32>
    %194 = arith.subf %187, %193 : vector<1x256xf32>
    %195 = arith.select %189, %192, %194 : vector<1x256xi1>, vector<1x256xf32>
    %196 = arith.addf %184, %195 : vector<1x256xf32>
    %c0_56 = arith.constant 0 : index
    %c0_57 = arith.constant 0 : index
    %197 = vector.load %arg9[%c0_56, %c0_57] : memref<1x256xf32, #tpu.memory_space<vmem>>, vector<1x256xf32>
    %198 = arith.mulf %196, %98 : vector<1x256xf32>
    %199 = arith.addf %197, %198 : vector<1x256xf32>
    %c0_58 = arith.constant 0 : index
    %c0_59 = arith.constant 0 : index
    %200 = vector.load %arg9[%c0_58, %c0_59] : memref<1x256xf32, #tpu.memory_space<vmem>>, vector<1x256xf32>
    tpu.vector_store %arg9[%c0_58, %c0_59], %199 {strides = array<i32>} : memref<1x256xf32, #tpu.memory_space<vmem>>, vector<1x256xf32>,
    %201 = arith.fptosi %129 : vector<1x256xf32> to vector<1x256xi32>
    %c1_i32 = arith.constant 1 : i32
    %202 = vector.broadcast %c1_i32 : i32 to vector<1x256xi32>
    %203 = arith.subi %201, %202 : vector<1x256xi32>
    %204 = tpu.iota {dimensions = array<i32: 0>} : vector<4x256xi32>
    %205 = vector.broadcast %203 : vector<1x256xi32> to vector<4x256xi32>
    %206 = arith.cmpi eq, %204, %205 : vector<4x256xi32>
    %207 = arith.extui %206 : vector<4x256xi1> to vector<4x256xi32>
    %208 = arith.sitofp %207 : vector<4x256xi32> to vector<4x256xf32>
    %209 = math.absf %36 : vector<4x256xf32>
    %cst_60 = arith.constant 0.000000e+00 : f32
    %210 = vector.broadcast %cst_60 : f32 to vector<4x256xf32>
    %211 = arith.subf %210, %209 : vector<4x256xf32>
    %212 = math.exp %211 : vector<4x256xf32>
    %cst_61 = arith.constant 1.000000e+00 : f32
    %213 = vector.broadcast %cst_61 : f32 to vector<4x256xf32>
    %214 = arith.addf %213, %212 : vector<4x256xf32>
    %215 = tpu.reciprocal %214 {approx = true} : vector<4x256xf32> -> vector<4x256xf32>
    %cst_62 = arith.constant 0.000000e+00 : f32
    %216 = vector.broadcast %cst_62 : f32 to vector<4x256xf32>
    %217 = arith.cmpf oge, %36, %216 : vector<4x256xf32>
    %218 = arith.mulf %212, %215 : vector<4x256xf32>
    %219 = arith.select %217, %215, %218 : vector<4x256xi1>, vector<4x256xf32>
    %cst_63 = arith.constant 2.000000e+00 : f32
    %220 = vector.broadcast %cst_63 : f32 to vector<4x256xf32>
    %221 = arith.mulf %220, %219 : vector<4x256xf32>
    %cst_64 = arith.constant 1.000000e+00 : f32
    %222 = vector.broadcast %cst_64 : f32 to vector<4x256xf32>
    %223 = arith.subf %222, %221 : vector<4x256xf32>
    %224 = arith.mulf %208, %223 : vector<4x256xf32>
    %225 = arith.addf %219, %224 : vector<4x256xf32>
    %cst_65 = arith.constant 5.000000e-01 : f32
    %226 = vector.broadcast %cst_65 : f32 to vector<4x256xf32>
    %227 = arith.mulf %208, %226 : vector<4x256xf32>
    %cst_66 = arith.constant 2.500000e-01 : f32
    %228 = vector.broadcast %cst_66 : f32 to vector<4x256xf32>
    %229 = arith.addf %228, %227 : vector<4x256xf32>
    %230 = arith.mulf %225, %225 : vector<4x256xf32>
    %231 = arith.mulf %230, %229 : vector<4x256xf32>
    %cst_67 = arith.constant 0.000000e+00 : f32
    %232 = vector.broadcast %cst_67 : f32 to vector<4x256xf32>
    %233 = arith.maximumf %36, %232 : vector<4x256xf32>
    %234 = arith.mulf %36, %208 : vector<4x256xf32>
    %235 = arith.subf %233, %234 : vector<4x256xf32>
    %236 = math.log %214 : vector<4x256xf32>
    %237 = arith.addf %235, %236 : vector<4x256xf32>
    %c0_68 = arith.constant 0 : index
    %c0_69 = arith.constant 0 : index
    %238 = vector.load %arg10[%c0_68, %c0_69] : memref<1x256xf32, #tpu.memory_space<vmem>>, vector<1x256xf32>
    %239 = arith.mulf %231, %237 : vector<4x256xf32>
    %cst_70 = arith.constant dense<0.000000e+00> : vector<256xf32>
    %240 = vector.multi_reduction <add>, %239, %cst_70 [0] : vector<4x256xf32> to vector<256xf32>
    %241 = vector.shape_cast %240 : vector<256xf32> to vector<1x256xf32>
    %242 = arith.mulf %241, %100 : vector<1x256xf32>
    %243 = arith.addf %238, %242 : vector<1x256xf32>
    %c0_71 = arith.constant 0 : index
    %c0_72 = arith.constant 0 : index
    %244 = vector.load %arg10[%c0_71, %c0_72] : memref<1x256xf32, #tpu.memory_space<vmem>>, vector<1x256xf32>
    tpu.vector_store %arg10[%c0_71, %c0_72], %243 {strides = array<i32>} : memref<1x256xf32, #tpu.memory_space<vmem>>, vector<1x256xf32>,
    %c0_i32_73 = arith.constant 0 : i32
    %245 = arith.cmpi eq, %arg2, %c0_i32_73 : i32
    %246 = arith.extui %245 : i1 to i32
    %c0_i32_74 = arith.constant 0 : i32
    %247 = arith.cmpi ne, %246, %c0_i32_74 : i32
    scf.if %247 {
      %c0_75 = arith.constant 0 : index
      %c0_76 = arith.constant 0 : index
      %248 = vector.load %arg9[%c0_75, %c0_76] : memref<1x256xf32, #tpu.memory_space<vmem>>, vector<1x256xf32>
      %249 = vector.shape_cast %248 : vector<1x256xf32> to vector<1x1x256xf32>
      %cst_77 = arith.constant dense<0.000000e+00> : vector<1xf32>
      %250 = vector.multi_reduction <add>, %249, %cst_77 [1, 2] : vector<1x1x256xf32> to vector<1xf32>
      %251 = vector.shape_cast %250 : vector<1xf32> to vector<1x1x1xf32>
      %252 = vector.extract %251[0, 0, 0] : f32 from vector<1x1x1xf32>
      %253 = vector.broadcast %252 : f32 to vector<1x1xf32>
      %c0_78 = arith.constant 0 : index
      %c0_79 = arith.constant 0 : index
      %254 = vector.load %arg10[%c0_78, %c0_79] : memref<1x256xf32, #tpu.memory_space<vmem>>, vector<1x256xf32>
      %255 = vector.shape_cast %254 : vector<1x256xf32> to vector<1x1x256xf32>
      %cst_80 = arith.constant dense<0.000000e+00> : vector<1xf32>
      %256 = vector.multi_reduction <add>, %255, %cst_80 [1, 2] : vector<1x1x256xf32> to vector<1xf32>
      %257 = vector.shape_cast %256 : vector<1xf32> to vector<1x1x1xf32>
      %258 = vector.extract %257[0, 0, 0] : f32 from vector<1x1x1xf32>
      %259 = vector.broadcast %258 : f32 to vector<1x1xf32>
      %c0_81 = arith.constant 0 : index
      %c0_82 = arith.constant 0 : index
      %260 = vector.load %arg11[%c0_81, %c0_82] : memref<1x256xf32, #tpu.memory_space<vmem>>, vector<1x256xf32>
      %261 = vector.shape_cast %260 : vector<1x256xf32> to vector<1x1x256xf32>
      %cst_83 = arith.constant dense<0.000000e+00> : vector<1xf32>
      %262 = vector.multi_reduction <add>, %261, %cst_83 [1, 2] : vector<1x1x256xf32> to vector<1xf32>
      %263 = vector.shape_cast %262 : vector<1xf32> to vector<1x1x1xf32>
      %264 = vector.extract %263[0, 0, 0] : f32 from vector<1x1x1xf32>
      %265 = vector.broadcast %264 : f32 to vector<1x1xf32>
      %266 = tpu.iota {dimensions = array<i32: 0>} : vector<8x128xi32>
      %c0_i32_84 = arith.constant 0 : i32
      %267 = vector.broadcast %c0_i32_84 : i32 to vector<8x128xi32>
      %268 = arith.cmpi eq, %266, %267 : vector<8x128xi32>
      %c1_i32_85 = arith.constant 1 : i32
      %269 = vector.broadcast %c1_i32_85 : i32 to vector<8x128xi32>
      %270 = arith.cmpi eq, %266, %269 : vector<8x128xi32>
      %c2_i32 = arith.constant 2 : i32
      %271 = vector.broadcast %c2_i32 : i32 to vector<8x128xi32>
      %272 = arith.cmpi eq, %266, %271 : vector<8x128xi32>
      %cst_86 = arith.constant 0.000000e+00 : f32
      %273 = vector.shape_cast %265 : vector<1x1xf32> to vector<1x1xf32>
      %274 = vector.broadcast %273 : vector<1x1xf32> to vector<8x128xf32>
      %275 = vector.broadcast %cst_86 : f32 to vector<8x128xf32>
      %276 = arith.select %272, %274, %275 : vector<8x128xi1>, vector<8x128xf32>
      %277 = vector.shape_cast %259 : vector<1x1xf32> to vector<1x1xf32>
      %278 = vector.broadcast %277 : vector<1x1xf32> to vector<8x128xf32>
      %279 = arith.select %270, %278, %276 : vector<8x128xi1>, vector<8x128xf32>
      %280 = vector.shape_cast %253 : vector<1x1xf32> to vector<1x1xf32>
      %281 = vector.broadcast %280 : vector<1x1xf32> to vector<8x128xf32>
      %282 = arith.select %268, %281, %279 : vector<8x128xi1>, vector<8x128xf32>
      %c0_87 = arith.constant 0 : index
      %c0_88 = arith.constant 0 : index
      %c0_89 = arith.constant 0 : index
      %c0_90 = arith.constant 0 : index
      %283 = vector.load %arg8[%c0_87, %c0_88, %c0_89, %c0_90] : memref<1x1x8x128xf32, #tpu.memory_space<vmem>>, vector<1x1x8x128xf32>
      %284 = vector.shape_cast %283 : vector<1x1x8x128xf32> to vector<8x128xf32>
      %285 = vector.shape_cast %282 : vector<8x128xf32> to vector<1x1x8x128xf32>
      tpu.vector_store %arg8[%c0_87, %c0_88, %c0_89, %c0_90], %285 {strides = array<i32>} : memref<1x1x8x128xf32, #tpu.memory_space<vmem>>, vector<1x1x8x128xf32>,
    } else {
    }
    return
  }
  func.func @transform_0(%arg0: i32, %arg1: i32, %arg2: i32) -> (i32, i32) {
    %c1_i32 = arith.constant 1 : i32
    %0 = arith.muli %arg1, %c1_i32 : i32
    %1 = arith.addi %0, %arg2 : i32
    %c0_i32 = arith.constant 0 : i32
    %c0_i32_0 = arith.constant 0 : i32
    return %c0_i32, %1 : i32, i32
  }
  func.func @transform_1(%arg0: i32, %arg1: i32, %arg2: i32) -> (i32, i32, i32) {
    %c1_i32 = arith.constant 1 : i32
    %0 = arith.muli %arg1, %c1_i32 : i32
    %1 = arith.addi %0, %arg2 : i32
    %c0_i32 = arith.constant 0 : i32
    %c0_i32_0 = arith.constant 0 : i32
    return %arg0, %1, %c0_i32 : i32, i32, i32
  }
  func.func @transform_2(%arg0: i32, %arg1: i32, %arg2: i32) -> (i32, i32, i32) {
    %c1_i32 = arith.constant 1 : i32
    %0 = arith.muli %arg1, %c1_i32 : i32
    %1 = arith.addi %0, %arg2 : i32
    %c0_i32 = arith.constant 0 : i32
    %c0_i32_0 = arith.constant 0 : i32
    return %arg0, %c0_i32, %1 : i32, i32, i32
  }
  func.func @transform_3(%arg0: i32, %arg1: i32, %arg2: i32) -> (i32, i32, i32) {
    %c0_i32 = arith.constant 0 : i32
    %c0_i32_0 = arith.constant 0 : i32
    %c0_i32_1 = arith.constant 0 : i32
    return %arg0, %c0_i32, %c0_i32_0 : i32, i32, i32
  }
  func.func @transform_4(%arg0: i32, %arg1: i32, %arg2: i32) -> (i32, i32, i32) {
    %c0_i32 = arith.constant 0 : i32
    %c0_i32_0 = arith.constant 0 : i32
    %c0_i32_1 = arith.constant 0 : i32
    return %arg0, %c0_i32, %c0_i32_0 : i32, i32, i32
  }
  func.func @transform_5(%arg0: i32, %arg1: i32, %arg2: i32) -> (i32, i32, i32, i32) {
    %c0_i32 = arith.constant 0 : i32
    %c0_i32_0 = arith.constant 0 : i32
    %c0_i32_1 = arith.constant 0 : i32
    return %arg0, %arg1, %c0_i32, %c0_i32_0 : i32, i32, i32, i32
  }
}

module attributes {stable_mosaic.version = 11 : i64} {
  func.func @kernel(%arg0: i32, %arg1: i32, %arg2: i32, %arg3: memref<8x256xf32, #tpu.memory_space<vmem>>, %arg4: memref<1x4x256xf32, #tpu.memory_space<vmem>>, %arg5: memref<1x4x256xf32, #tpu.memory_space<vmem>>, %arg6: memref<1x6x1xi32, #tpu.memory_space<vmem>>, %arg7: memref<1x6x4xf32, #tpu.memory_space<vmem>>, %arg8: memref<1x1x8x128xf32, #tpu.memory_space<vmem>>, %arg9: memref<1x256xf32, #tpu.memory_space<vmem>>, %arg10: memref<1x256xf32, #tpu.memory_space<vmem>>, %arg11: memref<1x256xf32, #tpu.memory_space<vmem>>) attributes {dimension_semantics = [#tpu.dimension_semantics<parallel>, #tpu.dimension_semantics<parallel>, #tpu.dimension_semantics<arbitrary>], iteration_bounds = array<i64: 2, 1, 1>, scalar_prefetch = 0 : i64, scratch_operands = 3 : i64, tpu.core_type = #tpu.core_type<tc>, window_params = [{transform_indices = @transform_0, window_bounds = array<i64: 8, 256>}, {transform_indices = @transform_1, window_bounds = array<i64: 1, 4, 256>}, {transform_indices = @transform_2, window_bounds = array<i64: 1, 4, 256>}, {transform_indices = @transform_3, window_bounds = array<i64: 1, 6, 1>}, {transform_indices = @transform_4, window_bounds = array<i64: 1, 6, 4>}, {transform_indices = @transform_5, window_bounds = array<i64: 1, 1, 8, 128>}]} {
    %c0_i32 = arith.constant 0 : i32
    %0 = arith.cmpi eq, %arg2, %c0_i32 : i32
    %1 = arith.extui %0 : i1 to i32
    %c0_i32_0 = arith.constant 0 : i32
    %2 = arith.cmpi ne, %1, %c0_i32_0 : i32
    scf.if %2 {
      %cst_75 = arith.constant 0.000000e+00 : f32
      %247 = vector.broadcast %cst_75 : f32 to vector<1x256xf32>
      %c0_76 = arith.constant 0 : index
      %c0_77 = arith.constant 0 : index
      %248 = vector.load %arg9[%c0_76, %c0_77] : memref<1x256xf32, #tpu.memory_space<vmem>>, vector<1x256xf32>
      tpu.vector_store %arg9[%c0_76, %c0_77], %247 {strides = array<i32>} : memref<1x256xf32, #tpu.memory_space<vmem>>, vector<1x256xf32>,
      %cst_78 = arith.constant 0.000000e+00 : f32
      %249 = vector.broadcast %cst_78 : f32 to vector<1x256xf32>
      %c0_79 = arith.constant 0 : index
      %c0_80 = arith.constant 0 : index
      %250 = vector.load %arg10[%c0_79, %c0_80] : memref<1x256xf32, #tpu.memory_space<vmem>>, vector<1x256xf32>
      tpu.vector_store %arg10[%c0_79, %c0_80], %249 {strides = array<i32>} : memref<1x256xf32, #tpu.memory_space<vmem>>, vector<1x256xf32>,
      %cst_81 = arith.constant 0.000000e+00 : f32
      %251 = vector.broadcast %cst_81 : f32 to vector<1x256xf32>
      %c0_82 = arith.constant 0 : index
      %c0_83 = arith.constant 0 : index
      %252 = vector.load %arg11[%c0_82, %c0_83] : memref<1x256xf32, #tpu.memory_space<vmem>>, vector<1x256xf32>
      tpu.vector_store %arg11[%c0_82, %c0_83], %251 {strides = array<i32>} : memref<1x256xf32, #tpu.memory_space<vmem>>, vector<1x256xf32>,
    } else {
    }
    %c0 = arith.constant 0 : index
    %c0_1 = arith.constant 0 : index
    %3 = vector.load %arg3[%c0, %c0_1] : memref<8x256xf32, #tpu.memory_space<vmem>>, vector<8x256xf32>
    %4 = vector.extract_strided_slice %3 {offsets = [0, 0], sizes = [1, 256], strides = [1, 1]} : vector<8x256xf32> to vector<1x256xf32>
    %5 = vector.extract_strided_slice %3 {offsets = [1, 0], sizes = [1, 256], strides = [1, 1]} : vector<8x256xf32> to vector<1x256xf32>
    %6 = vector.extract_strided_slice %3 {offsets = [2, 0], sizes = [1, 256], strides = [1, 1]} : vector<8x256xf32> to vector<1x256xf32>
    %7 = vector.extract_strided_slice %3 {offsets = [3, 0], sizes = [1, 256], strides = [1, 1]} : vector<8x256xf32> to vector<1x256xf32>
    %8 = vector.extract_strided_slice %3 {offsets = [4, 0], sizes = [1, 256], strides = [1, 1]} : vector<8x256xf32> to vector<1x256xf32>
    %cst = arith.constant 5.000000e-01 : f32
    %9 = vector.broadcast %cst : f32 to vector<1x256xf32>
    %10 = arith.cmpf ogt, %8, %9 : vector<1x256xf32>
    %cst_2 = arith.constant 5.000000e-01 : f32
    %11 = vector.broadcast %cst_2 : f32 to vector<1x256xf32>
    %12 = arith.mulf %11, %6 : vector<1x256xf32>
    %cst_3 = arith.constant 5.000000e-01 : f32
    %13 = vector.broadcast %cst_3 : f32 to vector<1x256xf32>
    %14 = arith.mulf %13, %7 : vector<1x256xf32>
    %15 = arith.subf %4, %12 : vector<1x256xf32>
    %16 = arith.addf %4, %12 : vector<1x256xf32>
    %17 = arith.subf %5, %14 : vector<1x256xf32>
    %18 = arith.addf %5, %14 : vector<1x256xf32>
    %19 = arith.mulf %6, %7 : vector<1x256xf32>
    %cst_4 = arith.constant 1.000000e+00 : f32
    %20 = vector.broadcast %cst_4 : f32 to vector<1x256xf32>
    %21 = arith.divf %20, %6 : vector<1x256xf32>
    %cst_5 = arith.constant 1.000000e+00 : f32
    %22 = vector.broadcast %cst_5 : f32 to vector<1x256xf32>
    %23 = arith.divf %22, %7 : vector<1x256xf32>
    %c0_6 = arith.constant 0 : index
    %c0_7 = arith.constant 0 : index
    %c0_8 = arith.constant 0 : index
    %24 = vector.load %arg5[%c0_6, %c0_7, %c0_8] : memref<1x4x256xf32, #tpu.memory_space<vmem>>, vector<1x4x256xf32>
    %25 = vector.shape_cast %24 : vector<1x4x256xf32> to vector<4x256xf32>
    %c0_9 = arith.constant 0 : index
    %c0_10 = arith.constant 0 : index
    %c0_11 = arith.constant 0 : index
    %26 = vector.load %arg4[%c0_9, %c0_10, %c0_11] : memref<1x4x256xf32, #tpu.memory_space<vmem>>, vector<1x4x256xf32>
    %27 = vector.shape_cast %26 : vector<1x4x256xf32> to vector<4x256xf32>
    %cst_12 = arith.constant 0.000000e+00 : f32
    %28 = vector.shape_cast %10 : vector<1x256xi1> to vector<1x256xi1>
    %29 = vector.broadcast %28 : vector<1x256xi1> to vector<4x256xi1>
    %30 = vector.broadcast %cst_12 : f32 to vector<4x256xf32>
    %31 = arith.select %29, %25, %30 : vector<4x256xi1>, vector<4x256xf32>
    %cst_13 = arith.constant 0.000000e+00 : f32
    %32 = vector.shape_cast %10 : vector<1x256xi1> to vector<1x256xi1>
    %33 = vector.broadcast %32 : vector<1x256xi1> to vector<4x256xi1>
    %34 = vector.broadcast %cst_13 : f32 to vector<4x256xf32>
    %35 = arith.select %33, %27, %34 : vector<4x256xi1>, vector<4x256xf32>
    %c0_14 = arith.constant 0 : index
    %c0_15 = arith.constant 0 : index
    %c0_16 = arith.constant 0 : index
    %36 = vector.load %arg7[%c0_14, %c0_15, %c0_16] : memref<1x6x4xf32, #tpu.memory_space<vmem>>, vector<1x6x4xf32>
    %37 = vector.shape_cast %36 : vector<1x6x4xf32> to vector<6x4xf32>
    %c0_17 = arith.constant 0 : index
    %c0_18 = arith.constant 0 : index
    %c0_19 = arith.constant 0 : index
    %38 = vector.load %arg6[%c0_17, %c0_18, %c0_19] : memref<1x6x1xi32, #tpu.memory_space<vmem>>, vector<1x6x1xi32>
    %39 = vector.shape_cast %38 : vector<1x6x1xi32> to vector<6x1xi32>
    %40 = arith.sitofp %39 : vector<6x1xi32> to vector<6x1xf32>
    %41 = vector.extract_strided_slice %37 {offsets = [0, 0], sizes = [6, 1], strides = [1, 1]} : vector<6x4xf32> to vector<6x1xf32>
    %42 = vector.extract_strided_slice %37 {offsets = [0, 1], sizes = [6, 1], strides = [1, 1]} : vector<6x4xf32> to vector<6x1xf32>
    %43 = vector.extract_strided_slice %37 {offsets = [0, 2], sizes = [6, 1], strides = [1, 1]} : vector<6x4xf32> to vector<6x1xf32>
    %44 = vector.extract_strided_slice %37 {offsets = [0, 3], sizes = [6, 1], strides = [1, 1]} : vector<6x4xf32> to vector<6x1xf32>
    %45 = arith.addf %41, %43 : vector<6x1xf32>
    %cst_20 = arith.constant 5.000000e-01 : f32
    %46 = vector.broadcast %cst_20 : f32 to vector<6x1xf32>
    %47 = arith.mulf %46, %45 : vector<6x1xf32>
    %48 = arith.addf %42, %44 : vector<6x1xf32>
    %cst_21 = arith.constant 5.000000e-01 : f32
    %49 = vector.broadcast %cst_21 : f32 to vector<6x1xf32>
    %50 = arith.mulf %49, %48 : vector<6x1xf32>
    %51 = arith.subf %43, %41 : vector<6x1xf32>
    %52 = arith.subf %44, %42 : vector<6x1xf32>
    %53 = arith.mulf %51, %52 : vector<6x1xf32>
    %54 = vector.broadcast %16 : vector<1x256xf32> to vector<6x256xf32>
    %55 = vector.broadcast %43 : vector<6x1xf32> to vector<6x256xf32>
    %56 = arith.minimumf %54, %55 : vector<6x256xf32>
    %57 = vector.broadcast %15 : vector<1x256xf32> to vector<6x256xf32>
    %58 = vector.broadcast %41 : vector<6x1xf32> to vector<6x256xf32>
    %59 = arith.maximumf %57, %58 : vector<6x256xf32>
    %60 = arith.subf %56, %59 : vector<6x256xf32>
    %cst_22 = arith.constant 0.000000e+00 : f32
    %61 = vector.broadcast %cst_22 : f32 to vector<6x256xf32>
    %62 = arith.maximumf %60, %61 : vector<6x256xf32>
    %63 = vector.broadcast %18 : vector<1x256xf32> to vector<6x256xf32>
    %64 = vector.broadcast %44 : vector<6x1xf32> to vector<6x256xf32>
    %65 = arith.minimumf %63, %64 : vector<6x256xf32>
    %66 = vector.broadcast %17 : vector<1x256xf32> to vector<6x256xf32>
    %67 = vector.broadcast %42 : vector<6x1xf32> to vector<6x256xf32>
    %68 = arith.maximumf %66, %67 : vector<6x256xf32>
    %69 = arith.subf %65, %68 : vector<6x256xf32>
    %cst_23 = arith.constant 0.000000e+00 : f32
    %70 = vector.broadcast %cst_23 : f32 to vector<6x256xf32>
    %71 = arith.maximumf %69, %70 : vector<6x256xf32>
    %72 = arith.mulf %62, %71 : vector<6x256xf32>
    %73 = vector.broadcast %19 : vector<1x256xf32> to vector<6x256xf32>
    %74 = vector.broadcast %53 : vector<6x1xf32> to vector<6x256xf32>
    %75 = arith.addf %73, %74 : vector<6x256xf32>
    %76 = arith.subf %75, %72 : vector<6x256xf32>
    %cst_24 = arith.constant 9.99999993E-9 : f32
    %77 = vector.broadcast %cst_24 : f32 to vector<6x256xf32>
    %78 = arith.addf %76, %77 : vector<6x256xf32>
    %79 = arith.divf %72, %78 : vector<6x256xf32>
    %cst_25 = arith.constant dense<0xFF800000> : vector<256xf32>
    %80 = vector.multi_reduction <maximumf>, %79, %cst_25 [0] : vector<6x256xf32> to vector<256xf32>
    %81 = vector.shape_cast %80 : vector<256xf32> to vector<1x256xf32>
    %82 = tpu.iota {dimensions = array<i32: 0>} : vector<6x256xi32>
    %83 = vector.broadcast %81 : vector<1x256xf32> to vector<6x256xf32>
    %84 = arith.cmpf oge, %79, %83 : vector<6x256xf32>
    %c6_i32 = arith.constant 6 : i32
    %85 = vector.broadcast %c6_i32 : i32 to vector<6x256xi32>
    %86 = arith.select %84, %82, %85 : vector<6x256xi1>, vector<6x256xi32>
    %cst_26 = arith.constant dense<2147483647> : vector<256xi32>
    %87 = vector.multi_reduction <minsi>, %86, %cst_26 [0] : vector<6x256xi32> to vector<256xi32>
    %88 = vector.shape_cast %87 : vector<256xi32> to vector<1x256xi32>
    %cst_27 = arith.constant 5.000000e-01 : f32
    %89 = vector.broadcast %cst_27 : f32 to vector<1x256xf32>
    %90 = arith.cmpf ogt, %81, %89 : vector<1x256xf32>
    %91 = arith.andi %90, %10 : vector<1x256xi1>
    %cst_28 = arith.constant 4.000000e-01 : f32
    %92 = vector.broadcast %cst_28 : f32 to vector<1x256xf32>
    %93 = arith.cmpf olt, %81, %92 : vector<1x256xf32>
    %94 = arith.ori %91, %93 : vector<1x256xi1>
    %95 = arith.andi %94, %10 : vector<1x256xi1>
    %96 = arith.extui %91 : vector<1x256xi1> to vector<1x256xi32>
    %97 = arith.sitofp %96 : vector<1x256xi32> to vector<1x256xf32>
    %98 = arith.extui %95 : vector<1x256xi1> to vector<1x256xi32>
    %99 = arith.sitofp %98 : vector<1x256xi32> to vector<1x256xf32>
    %100 = vector.broadcast %88 : vector<1x256xi32> to vector<6x256xi32>
    %101 = arith.cmpi eq, %82, %100 : vector<6x256xi32>
    %102 = vector.broadcast %91 : vector<1x256xi1> to vector<6x256xi1>
    %103 = arith.andi %101, %102 : vector<6x256xi1>
    %104 = arith.extui %103 : vector<6x256xi1> to vector<6x256xi32>
    %105 = arith.sitofp %104 : vector<6x256xi32> to vector<6x256xf32>
    %c0_29 = arith.constant 0 : index
    %c0_30 = arith.constant 0 : index
    %106 = vector.load %arg11[%c0_29, %c0_30] : memref<1x256xf32, #tpu.memory_space<vmem>>, vector<1x256xf32>
    %107 = arith.addf %106, %97 : vector<1x256xf32>
    %c0_31 = arith.constant 0 : index
    %c0_32 = arith.constant 0 : index
    %108 = vector.load %arg11[%c0_31, %c0_32] : memref<1x256xf32, #tpu.memory_space<vmem>>, vector<1x256xf32>
    tpu.vector_store %arg11[%c0_31, %c0_32], %107 {strides = array<i32>} : memref<1x256xf32, #tpu.memory_space<vmem>>, vector<1x256xf32>,
    %109 = vector.broadcast %47 : vector<6x1xf32> to vector<6x256xf32>
    %110 = arith.mulf %105, %109 : vector<6x256xf32>
    %cst_33 = arith.constant dense<0.000000e+00> : vector<256xf32>
    %111 = vector.multi_reduction <add>, %110, %cst_33 [0] : vector<6x256xf32> to vector<256xf32>
    %112 = vector.shape_cast %111 : vector<256xf32> to vector<1x256xf32>
    %113 = vector.broadcast %50 : vector<6x1xf32> to vector<6x256xf32>
    %114 = arith.mulf %105, %113 : vector<6x256xf32>
    %cst_34 = arith.constant dense<0.000000e+00> : vector<256xf32>
    %115 = vector.multi_reduction <add>, %114, %cst_34 [0] : vector<6x256xf32> to vector<256xf32>
    %116 = vector.shape_cast %115 : vector<256xf32> to vector<1x256xf32>
    %117 = vector.broadcast %51 : vector<6x1xf32> to vector<6x256xf32>
    %118 = arith.mulf %105, %117 : vector<6x256xf32>
    %cst_35 = arith.constant dense<0.000000e+00> : vector<256xf32>
    %119 = vector.multi_reduction <add>, %118, %cst_35 [0] : vector<6x256xf32> to vector<256xf32>
    %120 = vector.shape_cast %119 : vector<256xf32> to vector<1x256xf32>
    %121 = vector.broadcast %52 : vector<6x1xf32> to vector<6x256xf32>
    %122 = arith.mulf %105, %121 : vector<6x256xf32>
    %cst_36 = arith.constant dense<0.000000e+00> : vector<256xf32>
    %123 = vector.multi_reduction <add>, %122, %cst_36 [0] : vector<6x256xf32> to vector<256xf32>
    %124 = vector.shape_cast %123 : vector<256xf32> to vector<1x256xf32>
    %125 = vector.broadcast %40 : vector<6x1xf32> to vector<6x256xf32>
    %126 = arith.mulf %105, %125 : vector<6x256xf32>
    %cst_37 = arith.constant dense<0.000000e+00> : vector<256xf32>
    %127 = vector.multi_reduction <add>, %126, %cst_37 [0] : vector<6x256xf32> to vector<256xf32>
    %128 = vector.shape_cast %127 : vector<256xf32> to vector<1x256xf32>
    %129 = arith.subf %112, %4 : vector<1x256xf32>
    %130 = arith.mulf %129, %21 : vector<1x256xf32>
    %cst_38 = arith.constant 1.000000e+01 : f32
    %131 = vector.broadcast %cst_38 : f32 to vector<1x256xf32>
    %132 = arith.mulf %130, %131 : vector<1x256xf32>
    %133 = arith.subf %116, %5 : vector<1x256xf32>
    %134 = arith.mulf %133, %23 : vector<1x256xf32>
    %cst_39 = arith.constant 1.000000e+01 : f32
    %135 = vector.broadcast %cst_39 : f32 to vector<1x256xf32>
    %136 = arith.mulf %134, %135 : vector<1x256xf32>
    %137 = arith.mulf %120, %21 : vector<1x256xf32>
    %cst_40 = arith.constant 9.99999993E-9 : f32
    %138 = vector.broadcast %cst_40 : f32 to vector<1x256xf32>
    %139 = arith.addf %137, %138 : vector<1x256xf32>
    %140 = math.log %139 : vector<1x256xf32>
    %cst_41 = arith.constant 5.000000e+00 : f32
    %141 = vector.broadcast %cst_41 : f32 to vector<1x256xf32>
    %142 = arith.mulf %140, %141 : vector<1x256xf32>
    %143 = arith.mulf %124, %23 : vector<1x256xf32>
    %cst_42 = arith.constant 9.99999993E-9 : f32
    %144 = vector.broadcast %cst_42 : f32 to vector<1x256xf32>
    %145 = arith.addf %143, %144 : vector<1x256xf32>
    %146 = math.log %145 : vector<1x256xf32>
    %cst_43 = arith.constant 5.000000e+00 : f32
    %147 = vector.broadcast %cst_43 : f32 to vector<1x256xf32>
    %148 = arith.mulf %146, %147 : vector<1x256xf32>
    %149 = vector.extract_strided_slice %31 {offsets = [0, 0], sizes = [1, 256], strides = [1, 1]} : vector<4x256xf32> to vector<1x256xf32>
    %150 = arith.subf %149, %132 : vector<1x256xf32>
    %151 = math.absf %150 : vector<1x256xf32>
    %cst_44 = arith.constant 1.000000e+00 : f32
    %152 = vector.broadcast %cst_44 : f32 to vector<1x256xf32>
    %153 = arith.cmpf olt, %151, %152 : vector<1x256xf32>
    %cst_45 = arith.constant 5.000000e-01 : f32
    %154 = vector.broadcast %cst_45 : f32 to vector<1x256xf32>
    %155 = arith.mulf %154, %150 : vector<1x256xf32>
    %156 = arith.mulf %155, %150 : vector<1x256xf32>
    %cst_46 = arith.constant 5.000000e-01 : f32
    %157 = vector.broadcast %cst_46 : f32 to vector<1x256xf32>
    %158 = arith.subf %151, %157 : vector<1x256xf32>
    %159 = arith.select %153, %156, %158 : vector<1x256xi1>, vector<1x256xf32>
    %160 = vector.extract_strided_slice %31 {offsets = [1, 0], sizes = [1, 256], strides = [1, 1]} : vector<4x256xf32> to vector<1x256xf32>
    %161 = arith.subf %160, %136 : vector<1x256xf32>
    %162 = math.absf %161 : vector<1x256xf32>
    %cst_47 = arith.constant 1.000000e+00 : f32
    %163 = vector.broadcast %cst_47 : f32 to vector<1x256xf32>
    %164 = arith.cmpf olt, %162, %163 : vector<1x256xf32>
    %cst_48 = arith.constant 5.000000e-01 : f32
    %165 = vector.broadcast %cst_48 : f32 to vector<1x256xf32>
    %166 = arith.mulf %165, %161 : vector<1x256xf32>
    %167 = arith.mulf %166, %161 : vector<1x256xf32>
    %cst_49 = arith.constant 5.000000e-01 : f32
    %168 = vector.broadcast %cst_49 : f32 to vector<1x256xf32>
    %169 = arith.subf %162, %168 : vector<1x256xf32>
    %170 = arith.select %164, %167, %169 : vector<1x256xi1>, vector<1x256xf32>
    %171 = arith.addf %159, %170 : vector<1x256xf32>
    %172 = vector.extract_strided_slice %31 {offsets = [2, 0], sizes = [1, 256], strides = [1, 1]} : vector<4x256xf32> to vector<1x256xf32>
    %173 = arith.subf %172, %142 : vector<1x256xf32>
    %174 = math.absf %173 : vector<1x256xf32>
    %cst_50 = arith.constant 1.000000e+00 : f32
    %175 = vector.broadcast %cst_50 : f32 to vector<1x256xf32>
    %176 = arith.cmpf olt, %174, %175 : vector<1x256xf32>
    %cst_51 = arith.constant 5.000000e-01 : f32
    %177 = vector.broadcast %cst_51 : f32 to vector<1x256xf32>
    %178 = arith.mulf %177, %173 : vector<1x256xf32>
    %179 = arith.mulf %178, %173 : vector<1x256xf32>
    %cst_52 = arith.constant 5.000000e-01 : f32
    %180 = vector.broadcast %cst_52 : f32 to vector<1x256xf32>
    %181 = arith.subf %174, %180 : vector<1x256xf32>
    %182 = arith.select %176, %179, %181 : vector<1x256xi1>, vector<1x256xf32>
    %183 = arith.addf %171, %182 : vector<1x256xf32>
    %184 = vector.extract_strided_slice %31 {offsets = [3, 0], sizes = [1, 256], strides = [1, 1]} : vector<4x256xf32> to vector<1x256xf32>
    %185 = arith.subf %184, %148 : vector<1x256xf32>
    %186 = math.absf %185 : vector<1x256xf32>
    %cst_53 = arith.constant 1.000000e+00 : f32
    %187 = vector.broadcast %cst_53 : f32 to vector<1x256xf32>
    %188 = arith.cmpf olt, %186, %187 : vector<1x256xf32>
    %cst_54 = arith.constant 5.000000e-01 : f32
    %189 = vector.broadcast %cst_54 : f32 to vector<1x256xf32>
    %190 = arith.mulf %189, %185 : vector<1x256xf32>
    %191 = arith.mulf %190, %185 : vector<1x256xf32>
    %cst_55 = arith.constant 5.000000e-01 : f32
    %192 = vector.broadcast %cst_55 : f32 to vector<1x256xf32>
    %193 = arith.subf %186, %192 : vector<1x256xf32>
    %194 = arith.select %188, %191, %193 : vector<1x256xi1>, vector<1x256xf32>
    %195 = arith.addf %183, %194 : vector<1x256xf32>
    %c0_56 = arith.constant 0 : index
    %c0_57 = arith.constant 0 : index
    %196 = vector.load %arg9[%c0_56, %c0_57] : memref<1x256xf32, #tpu.memory_space<vmem>>, vector<1x256xf32>
    %197 = arith.mulf %195, %97 : vector<1x256xf32>
    %198 = arith.addf %196, %197 : vector<1x256xf32>
    %c0_58 = arith.constant 0 : index
    %c0_59 = arith.constant 0 : index
    %199 = vector.load %arg9[%c0_58, %c0_59] : memref<1x256xf32, #tpu.memory_space<vmem>>, vector<1x256xf32>
    tpu.vector_store %arg9[%c0_58, %c0_59], %198 {strides = array<i32>} : memref<1x256xf32, #tpu.memory_space<vmem>>, vector<1x256xf32>,
    %200 = arith.fptosi %128 : vector<1x256xf32> to vector<1x256xi32>
    %c1_i32 = arith.constant 1 : i32
    %201 = vector.broadcast %c1_i32 : i32 to vector<1x256xi32>
    %202 = arith.subi %200, %201 : vector<1x256xi32>
    %203 = tpu.iota {dimensions = array<i32: 0>} : vector<4x256xi32>
    %204 = vector.broadcast %202 : vector<1x256xi32> to vector<4x256xi32>
    %205 = arith.cmpi eq, %203, %204 : vector<4x256xi32>
    %206 = arith.extui %205 : vector<4x256xi1> to vector<4x256xi32>
    %207 = arith.sitofp %206 : vector<4x256xi32> to vector<4x256xf32>
    %208 = math.absf %35 : vector<4x256xf32>
    %cst_60 = arith.constant 0.000000e+00 : f32
    %209 = vector.broadcast %cst_60 : f32 to vector<4x256xf32>
    %210 = arith.subf %209, %208 : vector<4x256xf32>
    %211 = math.exp %210 : vector<4x256xf32>
    %cst_61 = arith.constant 1.000000e+00 : f32
    %212 = vector.broadcast %cst_61 : f32 to vector<4x256xf32>
    %213 = arith.addf %212, %211 : vector<4x256xf32>
    %214 = tpu.reciprocal %213 {approx = true} : vector<4x256xf32> -> vector<4x256xf32>
    %cst_62 = arith.constant 0.000000e+00 : f32
    %215 = vector.broadcast %cst_62 : f32 to vector<4x256xf32>
    %216 = arith.cmpf oge, %35, %215 : vector<4x256xf32>
    %217 = arith.mulf %211, %214 : vector<4x256xf32>
    %218 = arith.select %216, %214, %217 : vector<4x256xi1>, vector<4x256xf32>
    %cst_63 = arith.constant 2.000000e+00 : f32
    %219 = vector.broadcast %cst_63 : f32 to vector<4x256xf32>
    %220 = arith.mulf %219, %218 : vector<4x256xf32>
    %cst_64 = arith.constant 1.000000e+00 : f32
    %221 = vector.broadcast %cst_64 : f32 to vector<4x256xf32>
    %222 = arith.subf %221, %220 : vector<4x256xf32>
    %223 = arith.mulf %207, %222 : vector<4x256xf32>
    %224 = arith.addf %218, %223 : vector<4x256xf32>
    %cst_65 = arith.constant 5.000000e-01 : f32
    %225 = vector.broadcast %cst_65 : f32 to vector<4x256xf32>
    %226 = arith.mulf %207, %225 : vector<4x256xf32>
    %cst_66 = arith.constant 2.500000e-01 : f32
    %227 = vector.broadcast %cst_66 : f32 to vector<4x256xf32>
    %228 = arith.addf %227, %226 : vector<4x256xf32>
    %229 = arith.mulf %224, %224 : vector<4x256xf32>
    %230 = arith.mulf %229, %228 : vector<4x256xf32>
    %cst_67 = arith.constant 0.000000e+00 : f32
    %231 = vector.broadcast %cst_67 : f32 to vector<4x256xf32>
    %232 = arith.maximumf %35, %231 : vector<4x256xf32>
    %233 = arith.mulf %35, %207 : vector<4x256xf32>
    %234 = arith.subf %232, %233 : vector<4x256xf32>
    %235 = math.log %213 : vector<4x256xf32>
    %236 = arith.addf %234, %235 : vector<4x256xf32>
    %c0_68 = arith.constant 0 : index
    %c0_69 = arith.constant 0 : index
    %237 = vector.load %arg10[%c0_68, %c0_69] : memref<1x256xf32, #tpu.memory_space<vmem>>, vector<1x256xf32>
    %238 = arith.mulf %230, %236 : vector<4x256xf32>
    %cst_70 = arith.constant dense<0.000000e+00> : vector<256xf32>
    %239 = vector.multi_reduction <add>, %238, %cst_70 [0] : vector<4x256xf32> to vector<256xf32>
    %240 = vector.shape_cast %239 : vector<256xf32> to vector<1x256xf32>
    %241 = arith.mulf %240, %99 : vector<1x256xf32>
    %242 = arith.addf %237, %241 : vector<1x256xf32>
    %c0_71 = arith.constant 0 : index
    %c0_72 = arith.constant 0 : index
    %243 = vector.load %arg10[%c0_71, %c0_72] : memref<1x256xf32, #tpu.memory_space<vmem>>, vector<1x256xf32>
    tpu.vector_store %arg10[%c0_71, %c0_72], %242 {strides = array<i32>} : memref<1x256xf32, #tpu.memory_space<vmem>>, vector<1x256xf32>,
    %c0_i32_73 = arith.constant 0 : i32
    %244 = arith.cmpi eq, %arg2, %c0_i32_73 : i32
    %245 = arith.extui %244 : i1 to i32
    %c0_i32_74 = arith.constant 0 : i32
    %246 = arith.cmpi ne, %245, %c0_i32_74 : i32
    scf.if %246 {
      %c0_75 = arith.constant 0 : index
      %c0_76 = arith.constant 0 : index
      %247 = vector.load %arg9[%c0_75, %c0_76] : memref<1x256xf32, #tpu.memory_space<vmem>>, vector<1x256xf32>
      %248 = vector.shape_cast %247 : vector<1x256xf32> to vector<1x1x256xf32>
      %cst_77 = arith.constant dense<0.000000e+00> : vector<1xf32>
      %249 = vector.multi_reduction <add>, %248, %cst_77 [1, 2] : vector<1x1x256xf32> to vector<1xf32>
      %250 = vector.shape_cast %249 : vector<1xf32> to vector<1x1x1xf32>
      %251 = vector.extract %250[0, 0, 0] : f32 from vector<1x1x1xf32>
      %252 = vector.broadcast %251 : f32 to vector<1x1xf32>
      %c0_78 = arith.constant 0 : index
      %c0_79 = arith.constant 0 : index
      %253 = vector.load %arg10[%c0_78, %c0_79] : memref<1x256xf32, #tpu.memory_space<vmem>>, vector<1x256xf32>
      %254 = vector.shape_cast %253 : vector<1x256xf32> to vector<1x1x256xf32>
      %cst_80 = arith.constant dense<0.000000e+00> : vector<1xf32>
      %255 = vector.multi_reduction <add>, %254, %cst_80 [1, 2] : vector<1x1x256xf32> to vector<1xf32>
      %256 = vector.shape_cast %255 : vector<1xf32> to vector<1x1x1xf32>
      %257 = vector.extract %256[0, 0, 0] : f32 from vector<1x1x1xf32>
      %258 = vector.broadcast %257 : f32 to vector<1x1xf32>
      %c0_81 = arith.constant 0 : index
      %c0_82 = arith.constant 0 : index
      %259 = vector.load %arg11[%c0_81, %c0_82] : memref<1x256xf32, #tpu.memory_space<vmem>>, vector<1x256xf32>
      %260 = vector.shape_cast %259 : vector<1x256xf32> to vector<1x1x256xf32>
      %cst_83 = arith.constant dense<0.000000e+00> : vector<1xf32>
      %261 = vector.multi_reduction <add>, %260, %cst_83 [1, 2] : vector<1x1x256xf32> to vector<1xf32>
      %262 = vector.shape_cast %261 : vector<1xf32> to vector<1x1x1xf32>
      %263 = vector.extract %262[0, 0, 0] : f32 from vector<1x1x1xf32>
      %264 = vector.broadcast %263 : f32 to vector<1x1xf32>
      %265 = tpu.iota {dimensions = array<i32: 0>} : vector<8x128xi32>
      %c0_i32_84 = arith.constant 0 : i32
      %266 = vector.broadcast %c0_i32_84 : i32 to vector<8x128xi32>
      %267 = arith.cmpi eq, %265, %266 : vector<8x128xi32>
      %c1_i32_85 = arith.constant 1 : i32
      %268 = vector.broadcast %c1_i32_85 : i32 to vector<8x128xi32>
      %269 = arith.cmpi eq, %265, %268 : vector<8x128xi32>
      %c2_i32 = arith.constant 2 : i32
      %270 = vector.broadcast %c2_i32 : i32 to vector<8x128xi32>
      %271 = arith.cmpi eq, %265, %270 : vector<8x128xi32>
      %cst_86 = arith.constant 0.000000e+00 : f32
      %272 = vector.shape_cast %264 : vector<1x1xf32> to vector<1x1xf32>
      %273 = vector.broadcast %272 : vector<1x1xf32> to vector<8x128xf32>
      %274 = vector.broadcast %cst_86 : f32 to vector<8x128xf32>
      %275 = arith.select %271, %273, %274 : vector<8x128xi1>, vector<8x128xf32>
      %276 = vector.shape_cast %258 : vector<1x1xf32> to vector<1x1xf32>
      %277 = vector.broadcast %276 : vector<1x1xf32> to vector<8x128xf32>
      %278 = arith.select %269, %277, %275 : vector<8x128xi1>, vector<8x128xf32>
      %279 = vector.shape_cast %252 : vector<1x1xf32> to vector<1x1xf32>
      %280 = vector.broadcast %279 : vector<1x1xf32> to vector<8x128xf32>
      %281 = arith.select %267, %280, %278 : vector<8x128xi1>, vector<8x128xf32>
      %c0_87 = arith.constant 0 : index
      %c0_88 = arith.constant 0 : index
      %c0_89 = arith.constant 0 : index
      %c0_90 = arith.constant 0 : index
      %282 = vector.load %arg8[%c0_87, %c0_88, %c0_89, %c0_90] : memref<1x1x8x128xf32, #tpu.memory_space<vmem>>, vector<1x1x8x128xf32>
      %283 = vector.shape_cast %282 : vector<1x1x8x128xf32> to vector<8x128xf32>
      %284 = vector.shape_cast %281 : vector<8x128xf32> to vector<1x1x8x128xf32>
      tpu.vector_store %arg8[%c0_87, %c0_88, %c0_89, %c0_90], %284 {strides = array<i32>} : memref<1x1x8x128xf32, #tpu.memory_space<vmem>>, vector<1x1x8x128xf32>,
    } else {
    }
    return
  }
  func.func @transform_0(%arg0: i32, %arg1: i32, %arg2: i32) -> (i32, i32) {
    %c1_i32 = arith.constant 1 : i32
    %0 = arith.muli %arg1, %c1_i32 : i32
    %1 = arith.addi %0, %arg2 : i32
    %c0_i32 = arith.constant 0 : i32
    %c0_i32_0 = arith.constant 0 : i32
    return %c0_i32, %1 : i32, i32
  }
  func.func @transform_1(%arg0: i32, %arg1: i32, %arg2: i32) -> (i32, i32, i32) {
    %c1_i32 = arith.constant 1 : i32
    %0 = arith.muli %arg1, %c1_i32 : i32
    %1 = arith.addi %0, %arg2 : i32
    %c0_i32 = arith.constant 0 : i32
    %c0_i32_0 = arith.constant 0 : i32
    return %arg0, %c0_i32, %1 : i32, i32, i32
  }
  func.func @transform_2(%arg0: i32, %arg1: i32, %arg2: i32) -> (i32, i32, i32) {
    %c1_i32 = arith.constant 1 : i32
    %0 = arith.muli %arg1, %c1_i32 : i32
    %1 = arith.addi %0, %arg2 : i32
    %c0_i32 = arith.constant 0 : i32
    %c0_i32_0 = arith.constant 0 : i32
    return %arg0, %c0_i32, %1 : i32, i32, i32
  }
  func.func @transform_3(%arg0: i32, %arg1: i32, %arg2: i32) -> (i32, i32, i32) {
    %c0_i32 = arith.constant 0 : i32
    %c0_i32_0 = arith.constant 0 : i32
    %c0_i32_1 = arith.constant 0 : i32
    return %arg0, %c0_i32, %c0_i32_0 : i32, i32, i32
  }
  func.func @transform_4(%arg0: i32, %arg1: i32, %arg2: i32) -> (i32, i32, i32) {
    %c0_i32 = arith.constant 0 : i32
    %c0_i32_0 = arith.constant 0 : i32
    %c0_i32_1 = arith.constant 0 : i32
    return %arg0, %c0_i32, %c0_i32_0 : i32, i32, i32
  }
  func.func @transform_5(%arg0: i32, %arg1: i32, %arg2: i32) -> (i32, i32, i32, i32) {
    %c0_i32 = arith.constant 0 : i32
    %c0_i32_0 = arith.constant 0 : i32
    %c0_i32_1 = arith.constant 0 : i32
    return %arg0, %arg1, %c0_i32, %c0_i32_0 : i32, i32, i32, i32
  }
}

</mosaic_0001>

<llo_original>
// kernel: tpu_custom_call.1
$region0: #{tpu_custom_call.1}
  #allocation0 [shape = 'u32[]', space=smem, size = 0x4, offset = 0x4, fixed_abs, tag = 'smem constant byte address 0x4 - core index']
  #allocation1 [shape = 'u32[144,128]{1,0:T(1,128)}', space=vmem, size = 0x12000, scoped, tag = 'internal scratch']
  #allocation2 [shape = 'f32[1,256]{1,0:T(1,128)}', space=vmem, size = 0x400, scoped, tag = 'scratch operand']
  #allocation3 [shape = 'f32[1,256]{1,0:T(1,128)}', space=vmem, size = 0x400, scoped, tag = 'scratch operand']
  #allocation4 [shape = 'f32[1,256]{1,0:T(1,128)}', space=vmem, size = 0x400, scoped, tag = 'scratch operand']
  %s0 = inlined_call_operand.vmem [shape: f32[8,256], index: 0, kind: input, shape index: {}]
  %s1 = inlined_call_operand.vmem [shape: f32[2,180,4], index: 1, kind: input, shape index: {}]
  %s2 = inlined_call_operand.vmem [shape: f32[2,4,180], index: 2, kind: input, shape index: {}]
  %s3 = inlined_call_operand.vmem [shape: s32[2,6,1], index: 3, kind: input, shape index: {}]
  %s4 = inlined_call_operand.vmem [shape: f32[2,6,4], index: 4, kind: input, shape index: {}]
  %s5 = inlined_call_operand.hbm [shape: f32[2,1,8,128], index: 5, kind: output, shape index: {}]
  %s6 = sld [smem:[#allocation0]]
  $region61: #{tpu_custom_call.1} parent=0
    _
  %s8 = ssub.s32 1, %s6
  %s9 = scalar_select 0, %s8, %s6
  $region1: #{tpu_custom_call.1} parent=0
    #allocation5 [shape = 'u8[8192]{0}', space=vmem, size = 0x2000, scoped, tag = 'output window, operand 0']
    #allocation6 [shape = 's32[2]{0}', space=sflag, size = 0x8, scoped, tag = 'scoped memory for tpu_custom_call.1']
    %10 = vsyncpa [#allocation6], 0
    %s11 = scalar_lea.sflag [#allocation6], 1
    %12 = vsyncpa %s11, 0
    loop: start=0, step=1, limit=4
    $region2: #{tpu_custom_call.1} parent=1 // loop_pre_header
      _
    $region3: #{tpu_custom_call.1} parent=1 // loop_header
      %s14 = sphi 0, %s18
      %p15 = scmp.ge.s32.totalorder %s14, 4
      %s21 = sphi 0, %s40
      %s22 = sphi 0, %s36
      %s23 = sphi 0, %s32
      %s24 = sphi 0, %s21
      %s25 = sphi 0, %s22
      %s26 = sphi 0, %s23
      %s27 = sphi 0, %s24
      %s28 = sphi 0, %s25
      %s29 = sphi 0, %s26
      %s45 = sphi 0, %s47
      %s48 = sphi 0, %s45
      %s49 = sphi 0, %s48
      %s65 = sphi 0, %s49
      %s75 = sphi 0, %s77
      %s78 = sphi 0, %s75
      %s79 = sphi 0, %s78
      %s95 = sphi 0, %s79
      %s105 = sphi 0, %s107
      %s108 = sphi 0, %s105
      %s109 = sphi 0, %s108
      %s125 = sphi 0, %s109
      %s131 = sphi 0, %s133
      %s134 = sphi 0, %s131
      %s135 = sphi 0, %s134
      %s151 = sphi 0, %s135
      %s157 = sphi 0, %s159
      %s160 = sphi 0, %s157
      %s161 = sphi 0, %s160
      %s177 = sphi 0, %s161
      %s185 = sphi 0, %s187
      %s188 = sphi 0, %s185
      %s189 = sphi 0, %s188
      %s205 = sphi 0, %s189
    $region4: #{tpu_custom_call.1} parent=1 // loop_header_branch
      %17 = sbr.rel (%p15) target = $region8
    $region5: #{tpu_custom_call.1} parent=1 // loop_body
      %s19 = ssub.s32 %s14, 1
      %s20 = ssub.s32 %s14, 2
      %s30 = sadd.s32 1, %s23
      %p31 = scmp.ge.s32.totalorder %s30, 1
      %s32 = scalar_select %p31, 0, %s30
      %s33 = sadd.s32 1, %s22
      %s34 = scalar_select %p31, %s33, %s22
      %p35 = scmp.ge.s32.totalorder %s34, 1
      %s36 = scalar_select %p35, 0, %s34
      %s37 = sadd.s32 1, %s21
      %s38 = scalar_select %p35, %s37, %s21
      %p39 = scmp.ge.s32.totalorder %s38, 2
      %s40 = scalar_select %p39, 0, %s38
      %s41 = sadd.s32 %s22, %s23
      %s42 = sadd.s32 %s36, %s32
      %s43 = ssub.s32 %s41, %s42
      %p44 = scmp.eq.s32.totalorder %s43, 0
      %s46 = sadd.s32 %s45, 1
      %s47 = scalar_select %p44, %s45, %s46
      %p50 = pneg %p44
      %p51 = scmp.eq.s32.totalorder %s14, 1
      %p52 = por %p50, %p51
      %p53 = scmp.ne.s32.totalorder %s45, %s48
      %p54 = scmp.eq.s32.totalorder %s14, 0
      %p55 = por %p53, %p54
      %p56 = scmp.ne.s32.totalorder %s45, %s48
      %p57 = scmp.eq.s32.totalorder %s19, 1
      %p58 = por %p56, %p57
      %p59 = scmp.ne.s32.totalorder %s48, %s49
      %p60 = scmp.eq.s32.totalorder %s19, 0
      %p61 = por %p59, %p60
      %p62 = scmp.ne.s32.totalorder %s48, %s49
      %p63 = scmp.eq.s32.totalorder %s20, 1
      %p64 = por %p62, %p63
      %p66 = scmp.ne.s32.totalorder %s49, %s65
      %p67 = scmp.eq.s32.totalorder %s20, 0
      %p68 = por %p66, %p67
      %s69 = sadd.s32 %s22, %s23
      %s70 = sadd.s32 %s36, %s32
      %s71 = ssub.s32 %s21, %s40
      %s72 = ssub.s32 %s69, %s70
      %s73 = sor.u32 %s71, %s72
      %p74 = scmp.eq.s32.totalorder %s73, 0
      %s76 = sadd.s32 %s75, 1
      %s77 = scalar_select %p74, %s75, %s76
      %p80 = pneg %p74
      %p81 = scmp.eq.s32.totalorder %s14, 1
      %p82 = por %p80, %p81
      %p83 = scmp.ne.s32.totalorder %s75, %s78
      %p84 = scmp.eq.s32.totalorder %s14, 0
      %p85 = por %p83, %p84
      %p86 = scmp.ne.s32.totalorder %s75, %s78
      %p87 = scmp.eq.s32.totalorder %s19, 1
      %p88 = por %p86, %p87
      %p89 = scmp.ne.s32.totalorder %s78, %s79
      %p90 = scmp.eq.s32.totalorder %s19, 0
      %p91 = por %p89, %p90
      %p92 = scmp.ne.s32.totalorder %s78, %s79
      %p93 = scmp.eq.s32.totalorder %s20, 1
      %p94 = por %p92, %p93
      %p96 = scmp.ne.s32.totalorder %s79, %s95
      %p97 = scmp.eq.s32.totalorder %s20, 0
      %p98 = por %p96, %p97
      %s99 = sadd.s32 %s22, %s23
      %s100 = sadd.s32 %s36, %s32
      %s101 = ssub.s32 %s21, %s40
      %s102 = ssub.s32 %s99, %s100
      %s103 = sor.u32 %s101, %s102
      %p104 = scmp.eq.s32.totalorder %s103, 0
      %s106 = sadd.s32 %s105, 1
      %s107 = scalar_select %p104, %s105, %s106
      %p110 = pneg %p104
      %p111 = scmp.eq.s32.totalorder %s14, 1
      %p112 = por %p110, %p111
      %p113 = scmp.ne.s32.totalorder %s105, %s108
      %p114 = scmp.eq.s32.totalorder %s14, 0
      %p115 = por %p113, %p114
      %p116 = scmp.ne.s32.totalorder %s105, %s108
      %p117 = scmp.eq.s32.totalorder %s19, 1
      %p118 = por %p116, %p117
      %p119 = scmp.ne.s32.totalorder %s108, %s109
      %p120 = scmp.eq.s32.totalorder %s19, 0
      %p121 = por %p119, %p120
      %p122 = scmp.ne.s32.totalorder %s108, %s109
      %p123 = scmp.eq.s32.totalorder %s20, 1
      %p124 = por %p122, %p123
      %p126 = scmp.ne.s32.totalorder %s109, %s125
      %p127 = scmp.eq.s32.totalorder %s20, 0
      %p128 = por %p126, %p127
      %s129 = ssub.s32 %s21, %s40
      %p130 = scmp.eq.s32.totalorder %s129, 0
      %s132 = sadd.s32 %s131, 1
      %s133 = scalar_select %p130, %s131, %s132
      %p136 = pneg %p130
      %p137 = scmp.eq.s32.totalorder %s14, 1
      %p138 = por %p136, %p137
      %p139 = scmp.ne.s32.totalorder %s131, %s134
      %p140 = scmp.eq.s32.totalorder %s14, 0
      %p141 = por %p139, %p140
      %p142 = scmp.ne.s32.totalorder %s131, %s134
      %p143 = scmp.eq.s32.totalorder %s19, 1
      %p144 = por %p142, %p143
      %p145 = scmp.ne.s32.totalorder %s134, %s135
      %p146 = scmp.eq.s32.totalorder %s19, 0
      %p147 = por %p145, %p146
      %p148 = scmp.ne.s32.totalorder %s134, %s135
      %p149 = scmp.eq.s32.totalorder %s20, 1
      %p150 = por %p148, %p149
      %p152 = scmp.ne.s32.totalorder %s135, %s151
      %p153 = scmp.eq.s32.totalorder %s20, 0
      %p154 = por %p152, %p153
      %s155 = ssub.s32 %s21, %s40
      %p156 = scmp.eq.s32.totalorder %s155, 0
      %s158 = sadd.s32 %s157, 1
      %s159 = scalar_select %p156, %s157, %s158
      %p162 = pneg %p156
      %p163 = scmp.eq.s32.totalorder %s14, 1
      %p164 = por %p162, %p163
      %p165 = scmp.ne.s32.totalorder %s157, %s160
      %p166 = scmp.eq.s32.totalorder %s14, 0
      %p167 = por %p165, %p166
      %p168 = scmp.ne.s32.totalorder %s157, %s160
      %p169 = scmp.eq.s32.totalorder %s19, 1
      %p170 = por %p168, %p169
      %p171 = scmp.ne.s32.totalorder %s160, %s161
      %p172 = scmp.eq.s32.totalorder %s19, 0
      %p173 = por %p171, %p172
      %p174 = scmp.ne.s32.totalorder %s160, %s161
      %p175 = scmp.eq.s32.totalorder %s20, 1
      %p176 = por %p174, %p175
      %p178 = scmp.ne.s32.totalorder %s161, %s177
      %p179 = scmp.eq.s32.totalorder %s20, 0
      %p180 = por %p178, %p179
      %s181 = ssub.s32 %s21, %s40
      %s182 = ssub.s32 %s22, %s36
      %s183 = sor.u32 %s181, %s182
      %p184 = scmp.eq.s32.totalorder %s183, 0
      %s186 = sadd.s32 %s185, 1
      %s187 = scalar_select %p184, %s185, %s186
      %p190 = pneg %p184
      %p191 = scmp.eq.s32.totalorder %s14, 1
      %p192 = por %p190, %p191
      %p193 = scmp.ne.s32.totalorder %s185, %s188
      %p194 = scmp.eq.s32.totalorder %s14, 0
      %p195 = por %p193, %p194
      %p196 = scmp.ne.s32.totalorder %s185, %s188
      %p197 = scmp.eq.s32.totalorder %s19, 1
      %p198 = por %p196, %p197
      %p199 = scmp.ne.s32.totalorder %s188, %s189
      %p200 = scmp.eq.s32.totalorder %s19, 0
      %p201 = por %p199, %p200
      %p202 = scmp.ne.s32.totalorder %s188, %s189
      %p203 = scmp.eq.s32.totalorder %s20, 1
      %p204 = por %p202, %p203
      %p206 = scmp.ne.s32.totalorder %s189, %s205
      %p207 = scmp.eq.s32.totalorder %s20, 0
      %p208 = por %p206, %p207
      %p209 = scmp.le.s32.totalorder 1, %s14
      %p210 = scmp.lt.s32.totalorder %s14, 3
      %p211 = pnand %p209, %p210
      %p212 = pneg %p211
      // Predicated region
      $region9: #{tpu_custom_call.1} parent=5 // pred_check
        _
      $region10: #{tpu_custom_call.1} parent=5 // pred_check_branch
        %214 = sbr.rel (%p211) target = $region12
      $region11: #{tpu_custom_call.1} parent=5 // pred_region
        %s215 = ssub.s32 %s14, 1
        // Predicated region
        $region13: #{tpu_custom_call.1} parent=11 // pred_check
          %p216 = pneg %p61
        $region14: #{tpu_custom_call.1} parent=11 // pred_check_branch
          %218 = sbr.rel (%p216) target = $region16
        $region15: #{tpu_custom_call.1} parent=11 // pred_region
          %s219 = sadd.s32 %s25, %s26
          %s220 = smul.u32 2, %s219
          %p221 = scmp.lt.s32.totalorder %s220, 1
          %s222 = scalar_select %p221, %s220, 1
          %s223 = smul.addr %s222, 8
          %s224 = scalar_lea.vmem %s0, %s223
          %s225 = sadd.s32 %s25, %s26
          %s226 = smul.u32 2, %s225
        $region16: #{tpu_custom_call.1} parent=11 // pred_fallthru
          _
      $region12: #{tpu_custom_call.1} parent=5 // pred_fallthru
        _
      %p227 = scmp.lt.s32.totalorder %s14, 2
      // Predicated region
      $region17: #{tpu_custom_call.1} parent=5 // pred_check
        %p228 = pneg %p227
      $region18: #{tpu_custom_call.1} parent=5 // pred_check_branch
        %230 = sbr.rel (%p228) target = $region20
      $region19: #{tpu_custom_call.1} parent=5 // pred_region
        // Predicated region
        $region21: #{tpu_custom_call.1} parent=19 // pred_check
          %p231 = pneg %p85
        $region22: #{tpu_custom_call.1} parent=19 // pred_check_branch
          %233 = sbr.rel (%p231) target = $region24
        $region23: #{tpu_custom_call.1} parent=19 // pred_region
          %s234 = sadd.s32 %s22, %s23
          %s235 = smul.u32 32, %s234
          %s236 = ssub.s32 23, %s235
          %s237 = smul.u32 128, %s236
          %p238 = scmp.lt.s32.totalorder %s21, 1
          %s239 = scalar_select %p238, %s21, 1
          %p240 = scmp.lt.s32.totalorder %s235, 22
          %s241 = scalar_select %p240, %s235, 22
          %s242 = smul.addr %s239, 23
          %s243 = sadd.s32 %s241, %s242
          %s244 = smul.addr %s243, 8
          %s245 = scalar_lea.vmem %s1, %s244
          %s246 = sadd.s32 %s22, %s23
          %s247 = smul.u32 32, %s246
          %s248 = ssub.s32 23, %s247
          %s249 = smul.u32 128, %s248
        $region24: #{tpu_custom_call.1} parent=19 // pred_fallthru
          _
        // Predicated region
        $region25: #{tpu_custom_call.1} parent=19 // pred_check
          %p250 = pneg %p115
        $region26: #{tpu_custom_call.1} parent=19 // pred_check_branch
          %252 = sbr.rel (%p250) target = $region28
        $region27: #{tpu_custom_call.1} parent=19 // pred_region
          %s253 = sadd.s32 %s22, %s23
          %s254 = smul.u32 2, %s253
          %p255 = scmp.lt.s32.totalorder %s21, 1
          %s256 = scalar_select %p255, %s21, 1
          %p257 = scmp.lt.s32.totalorder %s254, 1
          %s258 = scalar_select %p257, %s254, 1
          %s259 = smul.addr %s256, 2
          %s260 = sadd.s32 %s258, %s259
          %s261 = smul.addr %s260, 4
          %s262 = scalar_lea.vmem %s2, %s261
          %s263 = sadd.s32 %s22, %s23
          %s264 = smul.u32 2, %s263
        $region28: #{tpu_custom_call.1} parent=19 // pred_fallthru
          _
        // Predicated region
        $region29: #{tpu_custom_call.1} parent=19 // pred_check
          %p265 = pneg %p141
        $region30: #{tpu_custom_call.1} parent=19 // pred_check_branch
          %267 = sbr.rel (%p265) target = $region32
        $region31: #{tpu_custom_call.1} parent=19 // pred_region
          %p268 = scmp.lt.s32.totalorder %s21, 1
          %s269 = scalar_select %p268, %s21, 1
          %s270 = smul.addr %s269, 8
          %s271 = scalar_lea.vmem %s3, %s270
        $region32: #{tpu_custom_call.1} parent=19 // pred_fallthru
          _
        // Predicated region
        $region33: #{tpu_custom_call.1} parent=19 // pred_check
          %p272 = pneg %p167
        $region34: #{tpu_custom_call.1} parent=19 // pred_check_branch
          %274 = sbr.rel (%p272) target = $region36
        $region35: #{tpu_custom_call.1} parent=19 // pred_region
          %p275 = scmp.lt.s32.totalorder %s21, 1
          %s276 = scalar_select %p275, %s21, 1
          %s277 = smul.addr %s276, 8
          %s278 = scalar_lea.vmem %s4, %s277
        $region36: #{tpu_custom_call.1} parent=19 // pred_fallthru
          _
      $region20: #{tpu_custom_call.1} parent=5 // pred_fallthru
        _
      %p279 = scmp.le.s32.totalorder 1, %s14
      %p280 = scmp.lt.s32.totalorder %s14, 3
      %p281 = pnand %p279, %p280
      %p282 = pneg %p281
      // Predicated region
      $region37: #{tpu_custom_call.1} parent=5 // pred_check
        _
      $region38: #{tpu_custom_call.1} parent=5 // pred_check_branch
        %284 = sbr.rel (%p281) target = $region40
      $region39: #{tpu_custom_call.1} parent=5 // pred_region
        %s285 = ssub.s32 %s14, 1
        %s286 = sadd.s32 %s25, %s26
        %s287 = smul.u32 2, %s286
        %p288 = scmp.lt.s32.totalorder %s287, 1
        %s289 = scalar_select %p288, %s287, 1
        %s290 = smul.addr %s289, 8
        %s291 = scalar_lea.vmem %s0, %s290
        %p292 = pneg %p61
        %p293 = pneg %p58
        %s294 = sadd.s32 %s25, %s26
        %s295 = smul.u32 32, %s294
        %s296 = ssub.s32 23, %s295
        %s297 = smul.u32 128, %s296
        %p298 = scmp.lt.s32.totalorder %s24, 1
        %s299 = scalar_select %p298, %s24, 1
        %p300 = scmp.lt.s32.totalorder %s295, 22
        %s301 = scalar_select %p300, %s295, 22
        %s302 = smul.addr %s299, 23
        %s303 = sadd.s32 %s301, %s302
        %s304 = smul.addr %s303, 8
        %s305 = scalar_lea.vmem %s1, %s304
        %p306 = pneg %p91
        %p307 = pneg %p88
        %s308 = sadd.s32 %s25, %s26
        %s309 = smul.u32 2, %s308
        %p310 = scmp.lt.s32.totalorder %s24, 1
        %s311 = scalar_select %p310, %s24, 1
        %p312 = scmp.lt.s32.totalorder %s309, 1
        %s313 = scalar_select %p312, %s309, 1
        %s314 = smul.addr %s311, 2
        %s315 = sadd.s32 %s313, %s314
        %s316 = smul.addr %s315, 4
        %s317 = scalar_lea.vmem %s2, %s316
        %p318 = pneg %p121
        %p319 = pneg %p118
        %p320 = scmp.lt.s32.totalorder %s24, 1
        %s321 = scalar_select %p320, %s24, 1
        %s322 = smul.addr %s321, 8
        %s323 = scalar_lea.vmem %s3, %s322
        %p324 = pneg %p147
        %p325 = pneg %p144
        %p326 = scmp.lt.s32.totalorder %s24, 1
        %s327 = scalar_select %p326, %s24, 1
        %s328 = smul.addr %s327, 8
        %s329 = scalar_lea.vmem %s4, %s328
        %p330 = pneg %p173
        %p331 = pneg %p170
        %p332 = pneg %p201
        %p333 = pneg %p198
        %s334 = sand.u32 %s188, 1
        %s335 = scalar_lea.sflag [#allocation6], %s334
        %s336 = sand.u32 %s188, 1
        %s337 = smul.addr %s336, 8
        %s338 = scalar_lea.vmem [#allocation5], %s337
        %s339 = sadd.s32 %s25, %s26
        %s340 = smul.u32 2, %s339
        %p341 = scmp.lt.s32.totalorder %s340, 1
        %s342 = scalar_select %p341, %s340, 1
        %s343 = smul.addr %s342, 8
        %s344 = scalar_lea.vmem %s0, %s343
        %s345 = sadd.s32 %s25, %s26
        %s346 = smul.u32 2, %s345
        %s347 = sadd.s32 %s25, %s26
        %s348 = smul.u32 32, %s347
        %s349 = ssub.s32 23, %s348
        %s350 = smul.u32 128, %s349
        %p351 = scmp.lt.s32.totalorder %s24, 1
        %s352 = scalar_select %p351, %s24, 1
        %p353 = scmp.lt.s32.totalorder %s348, 22
        %s354 = scalar_select %p353, %s348, 22
        %s355 = smul.addr %s352, 23
        %s356 = sadd.s32 %s354, %s355
        %s357 = smul.addr %s356, 8
        %s358 = scalar_lea.vmem %s1, %s357
        %s359 = sadd.s32 %s25, %s26
        %s360 = smul.u32 32, %s359
        %s361 = ssub.s32 23, %s360
        %s362 = smul.u32 128, %s361
        %s363 = sadd.s32 %s25, %s26
        %s364 = smul.u32 2, %s363
        %p365 = scmp.lt.s32.totalorder %s24, 1
        %s366 = scalar_select %p365, %s24, 1
        %p367 = scmp.lt.s32.totalorder %s364, 1
        %s368 = scalar_select %p367, %s364, 1
        %s369 = smul.addr %s366, 2
        %s370 = sadd.s32 %s368, %s369
        %s371 = smul.addr %s370, 4
        %s372 = scalar_lea.vmem %s2, %s371
        %s373 = sadd.s32 %s25, %s26
        %s374 = smul.u32 2, %s373
        %p375 = scmp.lt.s32.totalorder %s24, 1
        %s376 = scalar_select %p375, %s24, 1
        %s377 = smul.addr %s376, 8
        %s378 = scalar_lea.vmem %s3, %s377
        %p379 = scmp.lt.s32.totalorder %s24, 1
        %s380 = scalar_select %p379, %s24, 1
        %s381 = smul.addr %s380, 8
        %s382 = scalar_lea.vmem %s4, %s381
        %p383 = scmp.eq.s32.totalorder %s26, 0
        // Predicated region
        $region41: #{tpu_custom_call.1} parent=39 // pred_check
          %p384 = pneg %p383
        $region42: #{tpu_custom_call.1} parent=39 // pred_check_branch
          %386 = sbr.rel (%p384) target = $region44
        $region43: #{tpu_custom_call.1} parent=39 // pred_region
          %v387 = vlaneseq
          %vm388 = vcmp.ge.s32.totalorder %v387, 0
          %vm389 = vcmp.lt.s32.totalorder %v387, 256
          %vm390 = vmand %vm388, %vm389
          %391 = vst.msk [vmem:[#allocation2] sm:$0x3] %vm390, 0.0
          %392 = vst.msk [vmem:[#allocation3] sm:$0x3] %vm390, 0.0
          %393 = vst.msk [vmem:[#allocation4] sm:$0x3] %vm390, 0.0
        $region44: #{tpu_custom_call.1} parent=39 // pred_fallthru
          _
        %v394 = vld [vmem:[%s344] sm:$0xff]
        %v395 = vld [vmem:[%s344 + $0x8] sm:$0xff]
        %vm396 = vcmp.gt.f32.partialorder %v394, 0.5
        %vm397 = vcmp.gt.f32.partialorder %v395, 0.5
        %v398 = vmul.f32 %v394, 0.5
        %v399 = vmul.f32 %v395, 0.5
        %v402 = vrot.slane %v398, 2
        %v403 = vrot.slane %v399, 2
        %v406 = vsub.f32 %v394, %v402
        %v407 = vsub.f32 %v395, %v403
        %v408 = vadd.f32 %v394, %v402
        %v409 = vadd.f32 %v395, %v403
        %v412 = vrot.slane %v394, 1
        %v413 = vrot.slane %v395, 1
        %v416 = vmul.f32 %v394, %v412
        %v417 = vmul.f32 %v395, %v413
        %v418 = vrcp.pop %v394
        %v419 = vmul.f32 1.0, %v418
        %v420 = vrcp.pop %v395
        %v421 = vmul.f32 1.0, %v420
        %v422 = vld [vmem:[%s372] sm:$0xff]
        %v423 = vld [vmem:[%s358] sm:$0xff]
        %v424 = vld [vmem:[%s358 + $0x8] sm:$0xff]
        %v425 = vld [vmem:[%s358 + $0x10] sm:$0xff]
        %v426 = vld [vmem:[%s358 + $0x18] sm:$0xff]
        %v427 = vld [vmem:[%s358 + $0x20] sm:$0xff]
        %v428 = vld [vmem:[%s358 + $0x28] sm:$0xff]
        %v429 = vld [vmem:[%s358 + $0x30] sm:$0xff]
        %v430 = vld [vmem:[%s358 + $0x38] sm:$0xff]
        %v431 = vld [vmem:[%s358 + $0x40] sm:$0xff]
        %v432 = vld [vmem:[%s358 + $0x48] sm:$0xff]
        %v433 = vld [vmem:[%s358 + $0x50] sm:$0xff]
        %v434 = vld [vmem:[%s358 + $0x58] sm:$0xff]
        %v435 = vld [vmem:[%s358 + $0x60] sm:$0xff]
        %v436 = vld [vmem:[%s358 + $0x68] sm:$0xff]
        %v437 = vld [vmem:[%s358 + $0x70] sm:$0xff]
        %v438 = vld [vmem:[%s358 + $0x78] sm:$0xff]
        %v439 = vld [vmem:[%s358 + $0x80] sm:$0xff]
        %v440 = vld [vmem:[%s358 + $0x88] sm:$0xff]
        %v441 = vld [vmem:[%s358 + $0x90] sm:$0xff]
        %v442 = vld [vmem:[%s358 + $0x98] sm:$0xff]
        %v443 = vld [vmem:[%s358 + $0xa0] sm:$0xff]
        %v444 = vld [vmem:[%s358 + $0xa8] sm:$0xff]
        %v445 = vld [vmem:[%s358 + $0xb0] sm:$0xff]
        %v446 = vld [vmem:[%s358 + $0xb8] sm:$0xff]
        %v447 = vld [vmem:[%s358 + $0xc0] sm:$0xff]
        %v448 = vld [vmem:[%s358 + $0xc8] sm:$0xff]
        %v449 = vld [vmem:[%s358 + $0xd0] sm:$0xff]
        %v450 = vld [vmem:[%s358 + $0xd8] sm:$0xff]
        %v451 = vld [vmem:[%s358 + $0xe0] sm:$0xff]
        %v452 = vld [vmem:[%s358 + $0xe8] sm:$0xff]
        %v453 = vld [vmem:[%s358 + $0xf0] sm:$0xff]
        %v454 = vld [vmem:[%s358 + $0xf8] sm:$0xff]
        %455 = vxpose.xlu0.b32.start [1/16] %v423, 128
        %456 = vxpose.xlu0.b32.cont [2/16] %v424, 128
        %457 = vxpose.xlu0.b32.cont [3/16] %v425, 128
        %458 = vxpose.xlu0.b32.cont [4/16] %v426, 128
        %459 = vxpose.xlu0.b32.cont [5/16] %v427, 128
        %460 = vxpose.xlu0.b32.cont [6/16] %v428, 128
        %461 = vxpose.xlu0.b32.cont [7/16] %v429, 128
        %462 = vxpose.xlu0.b32.cont [8/16] %v430, 128
        %463 = vxpose.xlu0.b32.cont [9/16] %v431, 128
        %464 = vxpose.xlu0.b32.cont [10/16] %v432, 128
        %465 = vxpose.xlu0.b32.cont [11/16] %v433, 128
        %466 = vxpose.xlu0.b32.cont [12/16] %v434, 128
        %467 = vxpose.xlu0.b32.cont [13/16] %v435, 128
        %468 = vxpose.xlu0.b32.cont [14/16] %v436, 128
        %469 = vxpose.xlu0.b32.cont [15/16] %v437, 128
        %470 = vxpose.xlu0.b32.end [16/16] %v438, 128
        %v471 = vpop.trf.xlu0
        %v472 = vpop.trf.xlu0
        %v473 = vpop.trf.xlu0
        %v474 = vpop.trf.xlu0
        %v475 = vpop.trf.xlu0
        %v476 = vpop.trf.xlu0
        %v477 = vpop.trf.xlu0
        %v478 = vpop.trf.xlu0
        %v479 = vpop.trf.xlu0
        %v480 = vpop.trf.xlu0
        %v481 = vpop.trf.xlu0
        %v482 = vpop.trf.xlu0
        %v483 = vpop.trf.xlu0
        %v484 = vpop.trf.xlu0
        %v485 = vpop.trf.xlu0
        %v486 = vpop.trf.xlu0
        %487 = vxpose.xlu0.b32.start [1/16] %v439, 128
        %488 = vxpose.xlu0.b32.cont [2/16] %v440, 128
        %489 = vxpose.xlu0.b32.cont [3/16] %v441, 128
        %490 = vxpose.xlu0.b32.cont [4/16] %v442, 128
        %491 = vxpose.xlu0.b32.cont [5/16] %v443, 128
        %492 = vxpose.xlu0.b32.cont [6/16] %v444, 128
        %493 = vxpose.xlu0.b32.cont [7/16] %v445, 128
        %494 = vxpose.xlu0.b32.cont [8/16] %v446, 128
        %495 = vxpose.xlu0.b32.cont [9/16] %v447, 128
        %496 = vxpose.xlu0.b32.cont [10/16] %v448, 128
        %497 = vxpose.xlu0.b32.cont [11/16] %v449, 128
        %498 = vxpose.xlu0.b32.cont [12/16] %v450, 128
        %499 = vxpose.xlu0.b32.cont [13/16] %v451, 128
        %500 = vxpose.xlu0.b32.cont [14/16] %v452, 128
        %501 = vxpose.xlu0.b32.cont [15/16] %v453, 128
        %502 = vxpose.xlu0.b32.end [16/16] %v454, 128
        %v503 = vpop.trf.xlu0
        %v504 = vpop.trf.xlu0
        %v505 = vpop.trf.xlu0
        %v506 = vpop.trf.xlu0
        %v507 = vpop.trf.xlu0
        %v508 = vpop.trf.xlu0
        %v509 = vpop.trf.xlu0
        %v510 = vpop.trf.xlu0
        %v511 = vpop.trf.xlu0
        %v512 = vpop.trf.xlu0
        %v513 = vpop.trf.xlu0
        %v514 = vpop.trf.xlu0
        %v515 = vpop.trf.xlu0
        %v516 = vpop.trf.xlu0
        %v517 = vpop.trf.xlu0
        %v518 = vpop.trf.xlu0
        %v519 = vsel %vm396, 1, 0
        %v520 = vsel %vm397, 1, 0
        %v521 = vlaneseq
        %v522 = vshrl.u32 %v521, 7
        %v523 = vsub.s32 4, %v522
        %v524 = vrot.slane %v519, %v523
        %v525 = vlaneseq
        %v526 = vshrl.u32 %v525, 7
        %v527 = vsub.s32 4, %v526
        %v528 = vrot.slane %v520, %v527
        %vm529 = vcmp.eq.s32.totalorder %v524, 1
        %vm530 = vcmp.eq.s32.totalorder %v528, 1
        %v532 = vcombine.high %v422, %v422
        %v534 = vsel %vm529, %v422, 0.0
        %v535 = vsel %vm530, %v532, 0.0
        %v536 = vsel %vm529, %v471, 0.0
        %v537 = vsel %vm530, %v503, 0.0
        %v538 = vld [vmem:[%s382] sm:$0x3f]
        %v539 = vld [vmem:[%s378] sm:$0x3f]
        %v540 = vcvt.s32.f32 %v539
        %542 = vrot.lane.b32.xlu0 %v538, 126
        %v543 = vpop.permute.xlu0 %542
        %v545 = vadd.f32 %v538, %v543
        %v546 = vmul.f32 %v545, 0.5
        %547 = vrot.lane.b32.xlu0 %v538, 2
        %v548 = vpop.permute.xlu0 %547
        %v550 = vsub.f32 %v538, %v548
        %552 = vrot.lane.b32.xlu0 %v550, 127
        %v553 = vpop.permute.xlu0 %552
        %v555 = vmul.f32 %v550, %v553
        %v556 = vlaneseq
        %v557 = vshrl.u32 %v556, 7
        %v558 = vsub.s32 0, %v557
        %v559 = vrot.slane %v408, %v558
        %v560 = vlaneseq
        %v561 = vshrl.u32 %v560, 7
        %v562 = vsub.s32 0, %v561
        %v563 = vrot.slane %v409, %v562
        %564 = vset.pattern.permute.xlu0 2
        %565 = vperm.xlu0 %564, %v538
        %v566 = vpop.permute.xlu0 %565
        %v568 = vmin.f32 %v559, %v566
        %v569 = vmin.f32 %v563, %v566
        %v570 = vlaneseq
        %v571 = vshrl.u32 %v570, 7
        %v572 = vsub.s32 0, %v571
        %v573 = vrot.slane %v406, %v572
        %v574 = vlaneseq
        %v575 = vshrl.u32 %v574, 7
        %v576 = vsub.s32 0, %v575
        %v577 = vrot.slane %v407, %v576
        %578 = vset.pattern.permute.xlu0 0
        %579 = vperm.xlu0 %578, %v538
        %v580 = vpop.permute.xlu0 %579
        %v582 = vmax.f32 %v573, %v580
        %v583 = vmax.f32 %v577, %v580
        %v584 = vsub.f32 %v568, %v582
        %v585 = vsub.f32 %v569, %v583
        %v586 = vmax.f32 %v584, 0.0
        %v587 = vmax.f32 %v585, 0.0
        %v588 = vlaneseq
        %v589 = vshrl.u32 %v588, 7
        %v590 = vsub.s32 1, %v589
        %v591 = vrot.slane %v408, %v590
        %v592 = vlaneseq
        %v593 = vshrl.u32 %v592, 7
        %v594 = vsub.s32 1, %v593
        %v595 = vrot.slane %v409, %v594
        %596 = vset.pattern.permute.xlu0 3
        %597 = vperm.xlu0 %596, %v538
        %v598 = vpop.permute.xlu0 %597
        %v600 = vmin.f32 %v591, %v598
        %v601 = vmin.f32 %v595, %v598
        %v602 = vlaneseq
        %v603 = vshrl.u32 %v602, 7
        %v604 = vsub.s32 1, %v603
        %v605 = vrot.slane %v406, %v604
        %v606 = vlaneseq
        %v607 = vshrl.u32 %v606, 7
        %v608 = vsub.s32 1, %v607
        %v609 = vrot.slane %v407, %v608
        %610 = vset.pattern.permute.xlu0 1
        %611 = vperm.xlu0 %610, %v538
        %v612 = vpop.permute.xlu0 %611
        %v614 = vmax.f32 %v605, %v612
        %v615 = vmax.f32 %v609, %v612
        %v616 = vsub.f32 %v600, %v614
        %v617 = vsub.f32 %v601, %v615
        %v618 = vmax.f32 %v616, 0.0
        %v619 = vmax.f32 %v617, 0.0
        %v620 = vmul.f32 %v586, %v618
        %v621 = vmul.f32 %v587, %v619
        %v622 = vlaneseq
        %v623 = vshrl.u32 %v622, 7
        %v624 = vsub.s32 2, %v623
        %v625 = vrot.slane %v416, %v624
        %v626 = vlaneseq
        %v627 = vshrl.u32 %v626, 7
        %v628 = vsub.s32 2, %v627
        %v629 = vrot.slane %v417, %v628
        %631 = vset.pattern.permute.xlu0 2
        %632 = vperm.xlu0 %631, %v555
        %v633 = vpop.permute.xlu0 %632
        %v635 = vadd.f32 %v625, %v633
        %v636 = vadd.f32 %v629, %v633
        %v637 = vsub.f32 %v635, %v620
        %v638 = vsub.f32 %v636, %v621
        %v639 = vadd.f32 %v637, 1e-08
        %v640 = vadd.f32 %v638, 1e-08
        %v641 = vrcp.pop %v639
        %v642 = vmul.f32 %v620, %v641
        %v643 = vrcp.pop %v640
        %v644 = vmul.f32 %v621, %v643
        %vm645 = vcmask 1045504
        %v646 = vsel %vm645, %v642, -inf
        %v647 = vrot.slane %v646, 4
        %v648 = vmax.f32 %v646, %v647
        %v649 = vrot.slane %v648, 2
        %v650 = vmax.f32 %v648, %v649
        %v651 = vrot.slane %v650, 1
        %v652 = vmax.f32 %v650, %v651
        %v653 = vsel %vm645, %v644, -inf
        %v654 = vrot.slane %v653, 4
        %v655 = vmax.f32 %v653, %v654
        %v656 = vrot.slane %v655, 2
        %v657 = vmax.f32 %v655, %v656
        %v658 = vrot.slane %v657, 1
        %v659 = vmax.f32 %v657, %v658
        %v660 = vlaneseq
        %v661 = vshrl.u32 %v660, 7
        %vm662 = vcmp.ge.f32.partialorder %v642, %v652
        %vm663 = vcmp.ge.f32.partialorder %v644, %v659
        %v664 = vsel %vm662, %v661, 6
        %v665 = vsel %vm663, %v661, 6
        %v666 = vsel %vm645, %v664, 2147483647
        %v667 = vrot.slane %v666, 4
        %vm668 = vcmp.lt.s32.totalorder %v666, %v667
        %v669 = vsel %vm668, %v666, %v667
        %v670 = vrot.slane %v669, 2
        %vm671 = vcmp.lt.s32.totalorder %v669, %v670
        %v672 = vsel %vm671, %v669, %v670
        %v673 = vrot.slane %v672, 1
        %vm674 = vcmp.lt.s32.totalorder %v672, %v673
        %v675 = vsel %vm674, %v672, %v673
        %v676 = vsel %vm645, %v665, 2147483647
        %v677 = vrot.slane %v676, 4
        %vm678 = vcmp.lt.s32.totalorder %v676, %v677
        %v679 = vsel %vm678, %v676, %v677
        %v680 = vrot.slane %v679, 2
        %vm681 = vcmp.lt.s32.totalorder %v679, %v680
        %v682 = vsel %vm681, %v679, %v680
        %v683 = vrot.slane %v682, 1
        %vm684 = vcmp.lt.s32.totalorder %v682, %v683
        %v685 = vsel %vm684, %v682, %v683
        %vm686 = vcmp.gt.f32.partialorder %v652, 0.5
        %vm687 = vcmp.gt.f32.partialorder %v659, 0.5
        %vm688 = vmand %vm686, %vm396
        %vm689 = vmand %vm687, %vm397
        %vm690 = vcmp.lt.f32.partialorder %v652, 0.4
        %vm691 = vcmp.lt.f32.partialorder %v659, 0.4
        %vm692 = vmor %vm688, %vm690
        %vm693 = vmor %vm689, %vm691
        %vm694 = vmand %vm692, %vm396
        %vm695 = vmand %vm693, %vm397
        %v696 = vsel %vm688, 1, 0
        %v697 = vsel %vm689, 1, 0
        %v698 = vcvt.s32.f32 %v696
        %v699 = vcvt.s32.f32 %v697
        %v700 = vsel %vm694, 1, 0
        %v701 = vsel %vm695, 1, 0
        %v702 = vcvt.s32.f32 %v700
        %v703 = vcvt.s32.f32 %v701
        %vm704 = vcmp.eq.s32.totalorder %v661, %v675
        %vm705 = vcmp.eq.s32.totalorder %v661, %v685
        %v706 = vlaneseq
        %v707 = vshrl.u32 %v706, 7
        %v708 = vsub.s32 4, %v707
        %v709 = vrot.slane %v696, %v708
        %v710 = vlaneseq
        %v711 = vshrl.u32 %v710, 7
        %v712 = vsub.s32 4, %v711
        %v713 = vrot.slane %v697, %v712
        %vm714 = vcmp.eq.s32.totalorder %v709, 1
        %vm715 = vcmp.eq.s32.totalorder %v713, 1
        %vm716 = vmand %vm704, %vm714
        %vm717 = vmand %vm705, %vm715
        %v718 = vsel %vm716, 1, 0
        %v719 = vsel %vm717, 1, 0
        %v720 = vcvt.s32.f32 %v718
        %v721 = vcvt.s32.f32 %v719
        %v722 = vld [vmem:[#allocation4] sm:$0x3]
        %v725 = vcombine.high %v698, %v699
        %v727 = vunpack.c.l.s4 1966171168
        %v728 = vunpack.c.0.s8 %v727
        %v729 = vlaneseq
        %v730 = vshrl.u32 %v729, 7
        %v731 = vsub.s32 %v728, %v730
        %v732 = vrot.slane %v725, %v731
        %v734 = vunpack.c.l.s4 1966171168
        %v735 = vunpack.c.0.s8 %v734
        %v736 = vlaneseq
        %v737 = vshrl.u32 %v736, 7
        %v738 = vsub.s32 %v735, %v737
        %v739 = vrot.slane %v732, %v738
        %v741 = vadd.f32 %v722, %v739
        %v742 = vlaneseq
        %vm743 = vcmp.ge.s32.totalorder %v742, 0
        %vm744 = vcmp.lt.s32.totalorder %v742, 256
        %vm745 = vmand %vm743, %vm744
        %746 = vst.msk [vmem:[#allocation4] sm:$0x3] %vm745, %v741
        %748 = vset.pattern.permute.xlu0 0
        %749 = vperm.xlu0 %748, %v546
        %v750 = vpop.permute.xlu0 %749
        %v752 = vmul.f32 %v720, %v750
        %v753 = vmul.f32 %v721, %v750
        %v754 = vsel %vm645, %v752, 0.0
        %v755 = vrot.slane %v754, 4
        %v756 = vadd.f32 %v754, %v755
        %v757 = vrot.slane %v756, 2
        %v758 = vadd.f32 %v756, %v757
        %v759 = vrot.slane %v758, 1
        %v760 = vadd.f32 %v758, %v759
        %v761 = vsel %vm645, %v753, 0.0
        %v762 = vrot.slane %v761, 4
        %v763 = vadd.f32 %v761, %v762
        %v764 = vrot.slane %v763, 2
        %v765 = vadd.f32 %v763, %v764
        %v766 = vrot.slane %v765, 1
        %v767 = vadd.f32 %v765, %v766
        %768 = vset.pattern.permute.xlu0 1
        %769 = vperm.xlu0 %768, %v546
        %v770 = vpop.permute.xlu0 %769
        %v772 = vmul.f32 %v720, %v770
        %v773 = vmul.f32 %v721, %v770
        %v774 = vsel %vm645, %v772, 0.0
        %v775 = vrot.slane %v774, 4
        %v776 = vadd.f32 %v774, %v775
        %v777 = vrot.slane %v776, 2
        %v778 = vadd.f32 %v776, %v777
        %v779 = vrot.slane %v778, 1
        %v780 = vadd.f32 %v778, %v779
        %v781 = vsel %vm645, %v773, 0.0
        %v782 = vrot.slane %v781, 4
        %v783 = vadd.f32 %v781, %v782
        %v784 = vrot.slane %v783, 2
        %v785 = vadd.f32 %v783, %v784
        %v786 = vrot.slane %v785, 1
        %v787 = vadd.f32 %v785, %v786
        %788 = vset.pattern.permute.xlu0 2
        %789 = vperm.xlu0 %788, %v550
        %v790 = vpop.permute.xlu0 %789
        %v792 = vmul.f32 %v720, %v790
        %v793 = vmul.f32 %v721, %v790
        %v794 = vsel %vm645, %v792, 0.0
        %v795 = vrot.slane %v794, 4
        %v796 = vadd.f32 %v794, %v795
        %v797 = vrot.slane %v796, 2
        %v798 = vadd.f32 %v796, %v797
        %v799 = vrot.slane %v798, 1
        %v800 = vadd.f32 %v798, %v799
        %v801 = vsel %vm645, %v793, 0.0
        %v802 = vrot.slane %v801, 4
        %v803 = vadd.f32 %v801, %v802
        %v804 = vrot.slane %v803, 2
        %v805 = vadd.f32 %v803, %v804
        %v806 = vrot.slane %v805, 1
        %v807 = vadd.f32 %v805, %v806
        %808 = vset.pattern.permute.xlu0 3
        %809 = vperm.xlu0 %808, %v550
        %v810 = vpop.permute.xlu0 %809
        %v812 = vmul.f32 %v720, %v810
        %v813 = vmul.f32 %v721, %v810
        %v814 = vsel %vm645, %v812, 0.0
        %v815 = vrot.slane %v814, 4
        %v816 = vadd.f32 %v814, %v815
        %v817 = vrot.slane %v816, 2
        %v818 = vadd.f32 %v816, %v817
        %v819 = vrot.slane %v818, 1
        %v820 = vadd.f32 %v818, %v819
        %v821 = vsel %vm645, %v813, 0.0
        %v822 = vrot.slane %v821, 4
        %v823 = vadd.f32 %v821, %v822
        %v824 = vrot.slane %v823, 2
        %v825 = vadd.f32 %v823, %v824
        %v826 = vrot.slane %v825, 1
        %v827 = vadd.f32 %v825, %v826
        %829 = vset.pattern.permute.xlu0 0
        %830 = vperm.xlu0 %829, %v540
        %v831 = vpop.permute.xlu0 %830
        %v833 = vmul.f32 %v720, %v831
        %v834 = vmul.f32 %v721, %v831
        %v835 = vsel %vm645, %v833, 0.0
        %v836 = vrot.slane %v835, 4
        %v837 = vadd.f32 %v835, %v836
        %v838 = vrot.slane %v837, 2
        %v839 = vadd.f32 %v837, %v838
        %v840 = vrot.slane %v839, 1
        %v841 = vadd.f32 %v839, %v840
        %v842 = vsel %vm645, %v834, 0.0
        %v843 = vrot.slane %v842, 4
        %v844 = vadd.f32 %v842, %v843
        %v845 = vrot.slane %v844, 2
        %v846 = vadd.f32 %v844, %v845
        %v847 = vrot.slane %v846, 1
        %v848 = vadd.f32 %v846, %v847
        %v849 = vsub.f32 %v760, %v394
        %v850 = vsub.f32 %v767, %v395
        %v853 = vrot.slane %v419, 2
        %v854 = vrot.slane %v421, 2
        %v857 = vmul.f32 %v849, %v853
        %v858 = vmul.f32 %v850, %v854
        %v859 = vmul.f32 %v857, 10.0
        %v860 = vmul.f32 %v858, 10.0
        %v861 = vsub.f32 %v780, %v394
        %v862 = vsub.f32 %v787, %v395
        %v863 = vmul.f32 %v861, %v853
        %v864 = vmul.f32 %v862, %v854
        %v865 = vmul.f32 %v863, 10.0
        %v866 = vmul.f32 %v864, 10.0
        %v867 = vmul.f32 %v800, %v419
        %v868 = vmul.f32 %v807, %v421
        %v869 = vadd.f32 %v867, 1e-08
        %v870 = vadd.f32 %v868, 1e-08
        %v871 = vlog2.pop %v869
        %v872 = vmul.f32 %v871, 0.6931472
        %v873 = vlog2.pop %v870
        %v874 = vmul.f32 %v873, 0.6931472
        %v875 = vmul.f32 %v872, 5.0
        %v876 = vmul.f32 %v874, 5.0
        %v877 = vmul.f32 %v820, %v419
        %v878 = vmul.f32 %v827, %v421
        %v879 = vadd.f32 %v877, 1e-08
        %v880 = vadd.f32 %v878, 1e-08
        %v881 = vlog2.pop %v879
        %v882 = vmul.f32 %v881, 0.6931472
        %v883 = vlog2.pop %v880
        %v884 = vmul.f32 %v883, 0.6931472
        %v885 = vmul.f32 %v882, 5.0
        %v886 = vmul.f32 %v884, 5.0
        %v887 = vsub.f32 %v534, %v859
        %v888 = vsub.f32 %v535, %v860
        %v889 = vand.u32 2147483647, %v887
        %v890 = vand.u32 2147483647, %v888
        %vm891 = vcmp.lt.f32.partialorder %v889, 1.0
        %vm892 = vcmp.lt.f32.partialorder %v890, 1.0
        %v893 = vmul.f32 %v887, 0.5
        %v894 = vmul.f32 %v888, 0.5
        %v895 = vmul.f32 %v893, %v887
        %v896 = vmul.f32 %v894, %v888
        %v897 = vsub.f32 %v889, 0.5
        %v898 = vsub.f32 %v890, 0.5
        %v899 = vsel %vm891, %v895, %v897
        %v900 = vsel %vm892, %v896, %v898
        %v901 = vsub.f32 %v534, %v865
        %v902 = vsub.f32 %v535, %v866
        %v903 = vand.u32 2147483647, %v901
        %v904 = vand.u32 2147483647, %v902
        %vm905 = vcmp.lt.f32.partialorder %v903, 1.0
        %vm906 = vcmp.lt.f32.partialorder %v904, 1.0
        %v907 = vmul.f32 %v901, 0.5
        %v908 = vmul.f32 %v902, 0.5
        %v909 = vmul.f32 %v907, %v901
        %v910 = vmul.f32 %v908, %v902
        %v911 = vsub.f32 %v903, 0.5
        %v912 = vsub.f32 %v904, 0.5
        %v913 = vsel %vm905, %v909, %v911
        %v914 = vsel %vm906, %v910, %v912
        %v917 = vrot.slane %v913, 1
        %v918 = vrot.slane %v914, 1
        %v921 = vadd.f32 %v899, %v917
        %v922 = vadd.f32 %v900, %v918
        %v923 = vsub.f32 %v534, %v875
        %v924 = vsub.f32 %v535, %v876
        %v925 = vand.u32 2147483647, %v923
        %v926 = vand.u32 2147483647, %v924
        %vm927 = vcmp.lt.f32.partialorder %v925, 1.0
        %vm928 = vcmp.lt.f32.partialorder %v926, 1.0
        %v929 = vmul.f32 %v923, 0.5
        %v930 = vmul.f32 %v924, 0.5
        %v931 = vmul.f32 %v929, %v923
        %v932 = vmul.f32 %v930, %v924
        %v933 = vsub.f32 %v925, 0.5
        %v934 = vsub.f32 %v926, 0.5
        %v935 = vsel %vm927, %v931, %v933
        %v936 = vsel %vm928, %v932, %v934
        %v939 = vrot.slane %v935, 2
        %v940 = vrot.slane %v936, 2
        %v943 = vadd.f32 %v921, %v939
        %v944 = vadd.f32 %v922, %v940
        %v945 = vsub.f32 %v534, %v885
        %v946 = vsub.f32 %v535, %v886
        %v947 = vand.u32 2147483647, %v945
        %v948 = vand.u32 2147483647, %v946
        %vm949 = vcmp.lt.f32.partialorder %v947, 1.0
        %vm950 = vcmp.lt.f32.partialorder %v948, 1.0
        %v951 = vmul.f32 %v945, 0.5
        %v952 = vmul.f32 %v946, 0.5
        %v953 = vmul.f32 %v951, %v945
        %v954 = vmul.f32 %v952, %v946
        %v955 = vsub.f32 %v947, 0.5
        %v956 = vsub.f32 %v948, 0.5
        %v957 = vsel %vm949, %v953, %v955
        %v958 = vsel %vm950, %v954, %v956
        %v961 = vrot.slane %v957, 3
        %v962 = vrot.slane %v958, 3
        %v965 = vadd.f32 %v943, %v961
        %v966 = vadd.f32 %v944, %v962
        %v967 = vld [vmem:[#allocation2] sm:$0x3]
        %v968 = vrot.slane %v698, 4
        %v969 = vrot.slane %v699, 4
        %v972 = vmul.f32 %v965, %v968
        %v973 = vmul.f32 %v966, %v969
        %v976 = vcombine.low %v972, %v973
        %v978 = vunpack.c.l.s4 1966171168
        %v979 = vunpack.c.0.s8 %v978
        %v980 = vlaneseq
        %v981 = vshrl.u32 %v980, 7
        %v982 = vsub.s32 %v979, %v981
        %v983 = vrot.slane %v976, %v982
        %v985 = vunpack.c.l.s4 1966171168
        %v986 = vunpack.c.0.s8 %v985
        %v987 = vlaneseq
        %v988 = vshrl.u32 %v987, 7
        %v989 = vsub.s32 %v986, %v988
        %v990 = vrot.slane %v983, %v989
        %v992 = vadd.f32 %v967, %v990
        %993 = vst.msk [vmem:[#allocation2] sm:$0x3] %vm745, %v992
        %v994 = vcvt.f32.s32.to.zero.pseudo %v841
        %v995 = vcvt.f32.s32.to.zero.pseudo %v848
        %v996 = vsub.s32 %v994, 1
        %v997 = vsub.s32 %v995, 1
        %vm998 = vcmp.eq.s32.totalorder %v661, %v996
        %vm999 = vcmp.eq.s32.totalorder %v661, %v997
        %v1000 = vsel %vm998, 1, 0
        %v1001 = vsel %vm999, 1, 0
        %v1002 = vcvt.s32.f32 %v1000
        %v1003 = vcvt.s32.f32 %v1001
        %v1004 = vand.u32 2147483647, %v536
        %v1005 = vand.u32 2147483647, %v537
        %v1006 = vsub.f32 0.0, %v1004
        %v1007 = vsub.f32 0.0, %v1005
        %v1008 = vmul.f32 %v1006, 1.442695
        %v1009 = vpow.pop %v1008
        %v1010 = vmul.f32 %v1007, 1.442695
        %v1011 = vpow.pop %v1010
        %v1012 = vadd.f32 %v1009, 1.0
        %v1013 = vadd.f32 %v1011, 1.0
        %v1014 = vrcp.pop %v1012
        %v1015 = vrcp.pop %v1013
        %vm1016 = vcmp.ge.f32.partialorder %v536, 0.0
        %vm1017 = vcmp.ge.f32.partialorder %v537, 0.0
        %v1018 = vmul.f32 %v1009, %v1014
        %v1019 = vmul.f32 %v1011, %v1015
        %v1020 = vsel %vm1016, %v1014, %v1018
        %v1021 = vsel %vm1017, %v1015, %v1019
        %v1022 = vmul.f32 %v1020, 2.0
        %v1023 = vmul.f32 %v1021, 2.0
        %v1024 = vsub.f32 1.0, %v1022
        %v1025 = vsub.f32 1.0, %v1023
        %v1026 = vmul.f32 %v1002, %v1024
        %v1027 = vmul.f32 %v1003, %v1025
        %v1028 = vadd.f32 %v1020, %v1026
        %v1029 = vadd.f32 %v1021, %v1027
        %v1030 = vmul.f32 %v1002, 0.5
        %v1031 = vmul.f32 %v1003, 0.5
        %v1032 = vadd.f32 %v1030, 0.25
        %v1033 = vadd.f32 %v1031, 0.25
        %v1034 = vmul.f32 %v1028, %v1028
        %v1035 = vmul.f32 %v1029, %v1029
        %v1036 = vmul.f32 %v1034, %v1032
        %v1037 = vmul.f32 %v1035, %v1033
        %v1038 = vmax.f32 %v536, 0.0
        %v1039 = vmax.f32 %v537, 0.0
        %v1040 = vmul.f32 %v536, %v1002
        %v1041 = vmul.f32 %v537, %v1003
        %v1042 = vsub.f32 %v1038, %v1040
        %v1043 = vsub.f32 %v1039, %v1041
        %v1044 = vlog2.pop %v1012
        %v1045 = vmul.f32 %v1044, 0.6931472
        %v1046 = vlog2.pop %v1013
        %v1047 = vmul.f32 %v1046, 0.6931472
        %v1048 = vadd.f32 %v1042, %v1045
        %v1049 = vadd.f32 %v1043, %v1047
        %v1050 = vld [vmem:[#allocation3] sm:$0x3]
        %v1051 = vmul.f32 %v1036, %v1048
        %v1052 = vmul.f32 %v1037, %v1049
        %vm1053 = vcmask 1043456
        %v1054 = vsel %vm1053, %v1051, 0.0
        %v1055 = vrot.slane %v1054, 4
        %v1056 = vadd.f32 %v1054, %v1055
        %v1057 = vrot.slane %v1056, 2
        %v1058 = vadd.f32 %v1056, %v1057
        %v1059 = vrot.slane %v1058, 1
        %v1060 = vadd.f32 %v1058, %v1059
        %v1061 = vsel %vm1053, %v1052, 0.0
        %v1062 = vrot.slane %v1061, 4
        %v1063 = vadd.f32 %v1061, %v1062
        %v1064 = vrot.slane %v1063, 2
        %v1065 = vadd.f32 %v1063, %v1064
        %v1066 = vrot.slane %v1065, 1
        %v1067 = vadd.f32 %v1065, %v1066
        %v1068 = vmul.f32 %v1060, %v702
        %v1069 = vmul.f32 %v1067, %v703
        %v1072 = vcombine.high %v1068, %v1069
        %v1074 = vunpack.c.l.s4 1966171168
        %v1075 = vunpack.c.0.s8 %v1074
        %v1076 = vlaneseq
        %v1077 = vshrl.u32 %v1076, 7
        %v1078 = vsub.s32 %v1075, %v1077
        %v1079 = vrot.slane %v1072, %v1078
        %v1081 = vunpack.c.l.s4 1966171168
        %v1082 = vunpack.c.0.s8 %v1081
        %v1083 = vlaneseq
        %v1084 = vshrl.u32 %v1083, 7
        %v1085 = vsub.s32 %v1082, %v1084
        %v1086 = vrot.slane %v1079, %v1085
        %v1088 = vadd.f32 %v1050, %v1086
        %1089 = vst.msk [vmem:[#allocation3] sm:$0x3] %vm745, %v1088
        // Predicated region
        $region45: #{tpu_custom_call.1} parent=39 // pred_check
          %p1090 = pneg %p383
        $region46: #{tpu_custom_call.1} parent=39 // pred_check_branch
          %1092 = sbr.rel (%p1090) target = $region48
        $region47: #{tpu_custom_call.1} parent=39 // pred_region
          %v1093 = vld [vmem:[#allocation2] sm:$0x3]
          %v1095 = vlaneseq
          %v1096 = vshrl.u32 %v1095, 7
          %v1097 = vsub.s32 0, %v1096
          %v1098 = vrot.slane %v1093, %v1097
          %v1099 = vlaneseq
          %v1100 = vshrl.u32 %v1099, 7
          %v1101 = vsub.s32 1, %v1100
          %v1102 = vrot.slane %v1093, %v1101
          %vm1105 = vcmask 1040384
          %v1106 = vsel %vm1105, %v1098, 0.0
          %v1107 = vsel %vm1105, %v1102, 0.0
          %v1108 = vadd.f32 %v1106, %v1107
          %1109 = vadd.xlane.f32.xlu0 %v1108
          %v1110 = vpop.xlane.xlu0 %1109
          %v1111 = vrot.slane %v1110, 4
          %v1112 = vadd.f32 %v1110, %v1111
          %v1113 = vrot.slane %v1112, 2
          %v1114 = vadd.f32 %v1112, %v1113
          %v1115 = vrot.slane %v1114, 1
          %v1116 = vadd.f32 %v1114, %v1115
          %s1117 = vtos %v1116
          %v1118 = vld [vmem:[#allocation3] sm:$0x3]
          %v1120 = vlaneseq
          %v1121 = vshrl.u32 %v1120, 7
          %v1122 = vsub.s32 0, %v1121
          %v1123 = vrot.slane %v1118, %v1122
          %v1124 = vlaneseq
          %v1125 = vshrl.u32 %v1124, 7
          %v1126 = vsub.s32 1, %v1125
          %v1127 = vrot.slane %v1118, %v1126
          %v1130 = vsel %vm1105, %v1123, 0.0
          %v1131 = vsel %vm1105, %v1127, 0.0
          %v1132 = vadd.f32 %v1130, %v1131
          %1133 = vadd.xlane.f32.xlu0 %v1132
          %v1134 = vpop.xlane.xlu0 %1133
          %v1135 = vrot.slane %v1134, 4
          %v1136 = vadd.f32 %v1134, %v1135
          %v1137 = vrot.slane %v1136, 2
          %v1138 = vadd.f32 %v1136, %v1137
          %v1139 = vrot.slane %v1138, 1
          %v1140 = vadd.f32 %v1138, %v1139
          %s1141 = vtos %v1140
          %v1142 = vld [vmem:[#allocation4] sm:$0x3]
          %v1144 = vlaneseq
          %v1145 = vshrl.u32 %v1144, 7
          %v1146 = vsub.s32 0, %v1145
          %v1147 = vrot.slane %v1142, %v1146
          %v1148 = vlaneseq
          %v1149 = vshrl.u32 %v1148, 7
          %v1150 = vsub.s32 1, %v1149
          %v1151 = vrot.slane %v1142, %v1150
          %v1154 = vsel %vm1105, %v1147, 0.0
          %v1155 = vsel %vm1105, %v1151, 0.0
          %v1156 = vadd.f32 %v1154, %v1155
          %1157 = vadd.xlane.f32.xlu0 %v1156
          %v1158 = vpop.xlane.xlu0 %1157
          %v1159 = vrot.slane %v1158, 4
          %v1160 = vadd.f32 %v1158, %v1159
          %v1161 = vrot.slane %v1160, 2
          %v1162 = vadd.f32 %v1160, %v1161
          %v1163 = vrot.slane %v1162, 1
          %v1164 = vadd.f32 %v1162, %v1163
          %s1165 = vtos %v1164
          %vm1166 = vcmp.eq.s32.totalorder %v661, 0
          %vm1167 = vcmp.eq.s32.totalorder %v661, 1
          %vm1168 = vcmp.eq.s32.totalorder %v661, 2
          %v1169 = vstv %s1165
          %v1170 = vsel %vm1168, %v1169, 0.0
          %v1171 = vstv %s1141
          %v1172 = vsel %vm1167, %v1171, %v1170
          %v1173 = vstv %s1117
          %v1174 = vsel %vm1166, %v1173, %v1172
          %1175 = vst [vmem:[%s338] sm:$0xff] %v1174
        $region48: #{tpu_custom_call.1} parent=39 // pred_fallthru
          _
        %s1176 = sand.u32 %s188, 1
        %s1177 = scalar_lea.sflag [#allocation6], %s1176
        %s1178 = sand.u32 %s188, 1
        %s1179 = smul.addr %s1178, 8
        %s1180 = scalar_lea.vmem [#allocation5], %s1179
        // Predicated region
        $region49: #{tpu_custom_call.1} parent=39 // pred_check
          %p1181 = pneg %p198
        $region50: #{tpu_custom_call.1} parent=39 // pred_check_branch
          %1183 = sbr.rel (%p1181) target = $region52
        $region51: #{tpu_custom_call.1} parent=39 // pred_region
          %s1185 = ssub.s32 128, 128
          %1186 = vsyncadd %s1177, %s1185
          %s1187 = sadd.s32 %s25, %s24
          %s1188 = smul.addr %s1187, 128
          %s1189 = scalar_lea.hbm %s5, %s1188
          %s1191 = sshll.u32 %s1180, 4
          %s1192 = int_to_ptr.vmem [resolvable:$true] %s1191
          %1194 = dma.vmem_to_hbm [thread:$0]  %s1192, 128, %s1189, %s1177
        $region52: #{tpu_custom_call.1} parent=39 // pred_fallthru
          _
      $region40: #{tpu_custom_call.1} parent=5 // pred_fallthru
        _
      %p1195 = scmp.le.s32.totalorder 2, %s14
      // Predicated region
      $region53: #{tpu_custom_call.1} parent=5 // pred_check
        %p1196 = pneg %p1195
      $region54: #{tpu_custom_call.1} parent=5 // pred_check_branch
        %1198 = sbr.rel (%p1196) target = $region56
      $region55: #{tpu_custom_call.1} parent=5 // pred_region
        %s1199 = ssub.s32 %s14, 2
        // Predicated region
        $region57: #{tpu_custom_call.1} parent=55 // pred_check
          %p1200 = pneg %p204
        $region58: #{tpu_custom_call.1} parent=55 // pred_check_branch
          %1202 = sbr.rel (%p1200) target = $region60
        $region59: #{tpu_custom_call.1} parent=55 // pred_region
          %s1203 = sand.u32 %s189, 1
          %s1204 = scalar_lea.sflag [#allocation6], %s1203
          %s1205 = sand.u32 %s189, 1
          %s1206 = smul.addr %s1205, 8
          %s1207 = scalar_lea.vmem [#allocation5], %s1206
          %1208 = dma.done %s1204, 128
        $region60: #{tpu_custom_call.1} parent=55 // pred_fallthru
          _
      $region56: #{tpu_custom_call.1} parent=5 // pred_fallthru
        _
    $region6: #{tpu_custom_call.1} parent=1 // loop_footer
      %s18 = sadd.s32 1, %s14
    $region7: #{tpu_custom_call.1} parent=1 // loop_footer_branch
      %13 = sbr.rel target = $region3
    $region8: #{tpu_custom_call.1} parent=1 // loop_exit
      _
    %1209 = vsyncpa [#allocation6], 1
    %s1210 = scalar_lea.sflag [#allocation6], 1
    %1211 = vsyncpa %s1210, 1

// kernel: tpu_custom_call.1
$region0: #{tpu_custom_call.1}
  #allocation0 [shape = 'u32[]', space=smem, size = 0x4, offset = 0x4, fixed_abs, tag = 'smem constant byte address 0x4 - core index']
  #allocation1 [shape = 'u32[144,128]{1,0:T(1,128)}', space=vmem, size = 0x12000, scoped, tag = 'internal scratch']
  #allocation2 [shape = 'f32[1,256]{1,0:T(1,128)}', space=vmem, size = 0x400, scoped, tag = 'scratch operand']
  #allocation3 [shape = 'f32[1,256]{1,0:T(1,128)}', space=vmem, size = 0x400, scoped, tag = 'scratch operand']
  #allocation4 [shape = 'f32[1,256]{1,0:T(1,128)}', space=vmem, size = 0x400, scoped, tag = 'scratch operand']
  %s0 = inlined_call_operand.vmem [shape: f32[8,256], index: 0, kind: input, shape index: {}]
  %s1 = inlined_call_operand.vmem [shape: f32[2,4,180], index: 1, kind: input, shape index: {}]
  %s2 = inlined_call_operand.vmem [shape: f32[2,4,180], index: 2, kind: input, shape index: {}]
  %s3 = inlined_call_operand.vmem [shape: s32[2,6,1], index: 3, kind: input, shape index: {}]
  %s4 = inlined_call_operand.vmem [shape: f32[2,6,4], index: 4, kind: input, shape index: {}]
  %s5 = inlined_call_operand.hbm [shape: f32[2,1,8,128], index: 5, kind: output, shape index: {}]
  %s6 = sld [smem:[#allocation0]]
  $region61: #{tpu_custom_call.1} parent=0
    _
  %s8 = ssub.s32 1, %s6
  %s9 = scalar_select 0, %s8, %s6
  $region1: #{tpu_custom_call.1} parent=0
    #allocation5 [shape = 'u8[8192]{0}', space=vmem, size = 0x2000, scoped, tag = 'output window, operand 0']
    #allocation6 [shape = 's32[2]{0}', space=sflag, size = 0x8, scoped, tag = 'scoped memory for tpu_custom_call.1']
    %10 = vsyncpa [#allocation6], 0
    %s11 = scalar_lea.sflag [#allocation6], 1
    %12 = vsyncpa %s11, 0
    loop: start=0, step=1, limit=4
    $region2: #{tpu_custom_call.1} parent=1 // loop_pre_header
      _
    $region3: #{tpu_custom_call.1} parent=1 // loop_header
      %s14 = sphi 0, %s18
      %p15 = scmp.ge.s32.totalorder %s14, 4
      %s21 = sphi 0, %s40
      %s22 = sphi 0, %s36
      %s23 = sphi 0, %s32
      %s24 = sphi 0, %s21
      %s25 = sphi 0, %s22
      %s26 = sphi 0, %s23
      %s27 = sphi 0, %s24
      %s28 = sphi 0, %s25
      %s29 = sphi 0, %s26
      %s45 = sphi 0, %s47
      %s48 = sphi 0, %s45
      %s49 = sphi 0, %s48
      %s65 = sphi 0, %s49
      %s75 = sphi 0, %s77
      %s78 = sphi 0, %s75
      %s79 = sphi 0, %s78
      %s95 = sphi 0, %s79
      %s105 = sphi 0, %s107
      %s108 = sphi 0, %s105
      %s109 = sphi 0, %s108
      %s125 = sphi 0, %s109
      %s131 = sphi 0, %s133
      %s134 = sphi 0, %s131
      %s135 = sphi 0, %s134
      %s151 = sphi 0, %s135
      %s157 = sphi 0, %s159
      %s160 = sphi 0, %s157
      %s161 = sphi 0, %s160
      %s177 = sphi 0, %s161
      %s185 = sphi 0, %s187
      %s188 = sphi 0, %s185
      %s189 = sphi 0, %s188
      %s205 = sphi 0, %s189
    $region4: #{tpu_custom_call.1} parent=1 // loop_header_branch
      %17 = sbr.rel (%p15) target = $region8
    $region5: #{tpu_custom_call.1} parent=1 // loop_body
      %s19 = ssub.s32 %s14, 1
      %s20 = ssub.s32 %s14, 2
      %s30 = sadd.s32 1, %s23
      %p31 = scmp.ge.s32.totalorder %s30, 1
      %s32 = scalar_select %p31, 0, %s30
      %s33 = sadd.s32 1, %s22
      %s34 = scalar_select %p31, %s33, %s22
      %p35 = scmp.ge.s32.totalorder %s34, 1
      %s36 = scalar_select %p35, 0, %s34
      %s37 = sadd.s32 1, %s21
      %s38 = scalar_select %p35, %s37, %s21
      %p39 = scmp.ge.s32.totalorder %s38, 2
      %s40 = scalar_select %p39, 0, %s38
      %s41 = sadd.s32 %s22, %s23
      %s42 = sadd.s32 %s36, %s32
      %s43 = ssub.s32 %s41, %s42
      %p44 = scmp.eq.s32.totalorder %s43, 0
      %s46 = sadd.s32 %s45, 1
      %s47 = scalar_select %p44, %s45, %s46
      %p50 = pneg %p44
      %p51 = scmp.eq.s32.totalorder %s14, 1
      %p52 = por %p50, %p51
      %p53 = scmp.ne.s32.totalorder %s45, %s48
      %p54 = scmp.eq.s32.totalorder %s14, 0
      %p55 = por %p53, %p54
      %p56 = scmp.ne.s32.totalorder %s45, %s48
      %p57 = scmp.eq.s32.totalorder %s19, 1
      %p58 = por %p56, %p57
      %p59 = scmp.ne.s32.totalorder %s48, %s49
      %p60 = scmp.eq.s32.totalorder %s19, 0
      %p61 = por %p59, %p60
      %p62 = scmp.ne.s32.totalorder %s48, %s49
      %p63 = scmp.eq.s32.totalorder %s20, 1
      %p64 = por %p62, %p63
      %p66 = scmp.ne.s32.totalorder %s49, %s65
      %p67 = scmp.eq.s32.totalorder %s20, 0
      %p68 = por %p66, %p67
      %s69 = sadd.s32 %s22, %s23
      %s70 = sadd.s32 %s36, %s32
      %s71 = ssub.s32 %s21, %s40
      %s72 = ssub.s32 %s69, %s70
      %s73 = sor.u32 %s71, %s72
      %p74 = scmp.eq.s32.totalorder %s73, 0
      %s76 = sadd.s32 %s75, 1
      %s77 = scalar_select %p74, %s75, %s76
      %p80 = pneg %p74
      %p81 = scmp.eq.s32.totalorder %s14, 1
      %p82 = por %p80, %p81
      %p83 = scmp.ne.s32.totalorder %s75, %s78
      %p84 = scmp.eq.s32.totalorder %s14, 0
      %p85 = por %p83, %p84
      %p86 = scmp.ne.s32.totalorder %s75, %s78
      %p87 = scmp.eq.s32.totalorder %s19, 1
      %p88 = por %p86, %p87
      %p89 = scmp.ne.s32.totalorder %s78, %s79
      %p90 = scmp.eq.s32.totalorder %s19, 0
      %p91 = por %p89, %p90
      %p92 = scmp.ne.s32.totalorder %s78, %s79
      %p93 = scmp.eq.s32.totalorder %s20, 1
      %p94 = por %p92, %p93
      %p96 = scmp.ne.s32.totalorder %s79, %s95
      %p97 = scmp.eq.s32.totalorder %s20, 0
      %p98 = por %p96, %p97
      %s99 = sadd.s32 %s22, %s23
      %s100 = sadd.s32 %s36, %s32
      %s101 = ssub.s32 %s21, %s40
      %s102 = ssub.s32 %s99, %s100
      %s103 = sor.u32 %s101, %s102
      %p104 = scmp.eq.s32.totalorder %s103, 0
      %s106 = sadd.s32 %s105, 1
      %s107 = scalar_select %p104, %s105, %s106
      %p110 = pneg %p104
      %p111 = scmp.eq.s32.totalorder %s14, 1
      %p112 = por %p110, %p111
      %p113 = scmp.ne.s32.totalorder %s105, %s108
      %p114 = scmp.eq.s32.totalorder %s14, 0
      %p115 = por %p113, %p114
      %p116 = scmp.ne.s32.totalorder %s105, %s108
      %p117 = scmp.eq.s32.totalorder %s19, 1
      %p118 = por %p116, %p117
      %p119 = scmp.ne.s32.totalorder %s108, %s109
      %p120 = scmp.eq.s32.totalorder %s19, 0
      %p121 = por %p119, %p120
      %p122 = scmp.ne.s32.totalorder %s108, %s109
      %p123 = scmp.eq.s32.totalorder %s20, 1
      %p124 = por %p122, %p123
      %p126 = scmp.ne.s32.totalorder %s109, %s125
      %p127 = scmp.eq.s32.totalorder %s20, 0
      %p128 = por %p126, %p127
      %s129 = ssub.s32 %s21, %s40
      %p130 = scmp.eq.s32.totalorder %s129, 0
      %s132 = sadd.s32 %s131, 1
      %s133 = scalar_select %p130, %s131, %s132
      %p136 = pneg %p130
      %p137 = scmp.eq.s32.totalorder %s14, 1
      %p138 = por %p136, %p137
      %p139 = scmp.ne.s32.totalorder %s131, %s134
      %p140 = scmp.eq.s32.totalorder %s14, 0
      %p141 = por %p139, %p140
      %p142 = scmp.ne.s32.totalorder %s131, %s134
      %p143 = scmp.eq.s32.totalorder %s19, 1
      %p144 = por %p142, %p143
      %p145 = scmp.ne.s32.totalorder %s134, %s135
      %p146 = scmp.eq.s32.totalorder %s19, 0
      %p147 = por %p145, %p146
      %p148 = scmp.ne.s32.totalorder %s134, %s135
      %p149 = scmp.eq.s32.totalorder %s20, 1
      %p150 = por %p148, %p149
      %p152 = scmp.ne.s32.totalorder %s135, %s151
      %p153 = scmp.eq.s32.totalorder %s20, 0
      %p154 = por %p152, %p153
      %s155 = ssub.s32 %s21, %s40
      %p156 = scmp.eq.s32.totalorder %s155, 0
      %s158 = sadd.s32 %s157, 1
      %s159 = scalar_select %p156, %s157, %s158
      %p162 = pneg %p156
      %p163 = scmp.eq.s32.totalorder %s14, 1
      %p164 = por %p162, %p163
      %p165 = scmp.ne.s32.totalorder %s157, %s160
      %p166 = scmp.eq.s32.totalorder %s14, 0
      %p167 = por %p165, %p166
      %p168 = scmp.ne.s32.totalorder %s157, %s160
      %p169 = scmp.eq.s32.totalorder %s19, 1
      %p170 = por %p168, %p169
      %p171 = scmp.ne.s32.totalorder %s160, %s161
      %p172 = scmp.eq.s32.totalorder %s19, 0
      %p173 = por %p171, %p172
      %p174 = scmp.ne.s32.totalorder %s160, %s161
      %p175 = scmp.eq.s32.totalorder %s20, 1
      %p176 = por %p174, %p175
      %p178 = scmp.ne.s32.totalorder %s161, %s177
      %p179 = scmp.eq.s32.totalorder %s20, 0
      %p180 = por %p178, %p179
      %s181 = ssub.s32 %s21, %s40
      %s182 = ssub.s32 %s22, %s36
      %s183 = sor.u32 %s181, %s182
      %p184 = scmp.eq.s32.totalorder %s183, 0
      %s186 = sadd.s32 %s185, 1
      %s187 = scalar_select %p184, %s185, %s186
      %p190 = pneg %p184
      %p191 = scmp.eq.s32.totalorder %s14, 1
      %p192 = por %p190, %p191
      %p193 = scmp.ne.s32.totalorder %s185, %s188
      %p194 = scmp.eq.s32.totalorder %s14, 0
      %p195 = por %p193, %p194
      %p196 = scmp.ne.s32.totalorder %s185, %s188
      %p197 = scmp.eq.s32.totalorder %s19, 1
      %p198 = por %p196, %p197
      %p199 = scmp.ne.s32.totalorder %s188, %s189
      %p200 = scmp.eq.s32.totalorder %s19, 0
      %p201 = por %p199, %p200
      %p202 = scmp.ne.s32.totalorder %s188, %s189
      %p203 = scmp.eq.s32.totalorder %s20, 1
      %p204 = por %p202, %p203
      %p206 = scmp.ne.s32.totalorder %s189, %s205
      %p207 = scmp.eq.s32.totalorder %s20, 0
      %p208 = por %p206, %p207
      %p209 = scmp.le.s32.totalorder 1, %s14
      %p210 = scmp.lt.s32.totalorder %s14, 3
      %p211 = pnand %p209, %p210
      %p212 = pneg %p211
      // Predicated region
      $region9: #{tpu_custom_call.1} parent=5 // pred_check
        _
      $region10: #{tpu_custom_call.1} parent=5 // pred_check_branch
        %214 = sbr.rel (%p211) target = $region12
      $region11: #{tpu_custom_call.1} parent=5 // pred_region
        %s215 = ssub.s32 %s14, 1
        // Predicated region
        $region13: #{tpu_custom_call.1} parent=11 // pred_check
          %p216 = pneg %p61
        $region14: #{tpu_custom_call.1} parent=11 // pred_check_branch
          %218 = sbr.rel (%p216) target = $region16
        $region15: #{tpu_custom_call.1} parent=11 // pred_region
          %s219 = sadd.s32 %s25, %s26
          %s220 = smul.u32 2, %s219
          %p221 = scmp.lt.s32.totalorder %s220, 1
          %s222 = scalar_select %p221, %s220, 1
          %s223 = smul.addr %s222, 8
          %s224 = scalar_lea.vmem %s0, %s223
          %s225 = sadd.s32 %s25, %s26
          %s226 = smul.u32 2, %s225
        $region16: #{tpu_custom_call.1} parent=11 // pred_fallthru
          _
      $region12: #{tpu_custom_call.1} parent=5 // pred_fallthru
        _
      %p227 = scmp.lt.s32.totalorder %s14, 2
      // Predicated region
      $region17: #{tpu_custom_call.1} parent=5 // pred_check
        %p228 = pneg %p227
      $region18: #{tpu_custom_call.1} parent=5 // pred_check_branch
        %230 = sbr.rel (%p228) target = $region20
      $region19: #{tpu_custom_call.1} parent=5 // pred_region
        // Predicated region
        $region21: #{tpu_custom_call.1} parent=19 // pred_check
          %p231 = pneg %p85
        $region22: #{tpu_custom_call.1} parent=19 // pred_check_branch
          %233 = sbr.rel (%p231) target = $region24
        $region23: #{tpu_custom_call.1} parent=19 // pred_region
          %s234 = sadd.s32 %s22, %s23
          %s235 = smul.u32 2, %s234
          %p236 = scmp.lt.s32.totalorder %s21, 1
          %s237 = scalar_select %p236, %s21, 1
          %p238 = scmp.lt.s32.totalorder %s235, 1
          %s239 = scalar_select %p238, %s235, 1
          %s240 = smul.addr %s237, 2
          %s241 = sadd.s32 %s239, %s240
          %s242 = smul.addr %s241, 4
          %s243 = scalar_lea.vmem %s1, %s242
          %s244 = sadd.s32 %s22, %s23
          %s245 = smul.u32 2, %s244
        $region24: #{tpu_custom_call.1} parent=19 // pred_fallthru
          _
        // Predicated region
        $region25: #{tpu_custom_call.1} parent=19 // pred_check
          %p246 = pneg %p115
        $region26: #{tpu_custom_call.1} parent=19 // pred_check_branch
          %248 = sbr.rel (%p246) target = $region28
        $region27: #{tpu_custom_call.1} parent=19 // pred_region
          %s249 = sadd.s32 %s22, %s23
          %s250 = smul.u32 2, %s249
          %p251 = scmp.lt.s32.totalorder %s21, 1
          %s252 = scalar_select %p251, %s21, 1
          %p253 = scmp.lt.s32.totalorder %s250, 1
          %s254 = scalar_select %p253, %s250, 1
          %s255 = smul.addr %s252, 2
          %s256 = sadd.s32 %s254, %s255
          %s257 = smul.addr %s256, 4
          %s258 = scalar_lea.vmem %s2, %s257
          %s259 = sadd.s32 %s22, %s23
          %s260 = smul.u32 2, %s259
        $region28: #{tpu_custom_call.1} parent=19 // pred_fallthru
          _
        // Predicated region
        $region29: #{tpu_custom_call.1} parent=19 // pred_check
          %p261 = pneg %p141
        $region30: #{tpu_custom_call.1} parent=19 // pred_check_branch
          %263 = sbr.rel (%p261) target = $region32
        $region31: #{tpu_custom_call.1} parent=19 // pred_region
          %p264 = scmp.lt.s32.totalorder %s21, 1
          %s265 = scalar_select %p264, %s21, 1
          %s266 = smul.addr %s265, 8
          %s267 = scalar_lea.vmem %s3, %s266
        $region32: #{tpu_custom_call.1} parent=19 // pred_fallthru
          _
        // Predicated region
        $region33: #{tpu_custom_call.1} parent=19 // pred_check
          %p268 = pneg %p167
        $region34: #{tpu_custom_call.1} parent=19 // pred_check_branch
          %270 = sbr.rel (%p268) target = $region36
        $region35: #{tpu_custom_call.1} parent=19 // pred_region
          %p271 = scmp.lt.s32.totalorder %s21, 1
          %s272 = scalar_select %p271, %s21, 1
          %s273 = smul.addr %s272, 8
          %s274 = scalar_lea.vmem %s4, %s273
        $region36: #{tpu_custom_call.1} parent=19 // pred_fallthru
          _
      $region20: #{tpu_custom_call.1} parent=5 // pred_fallthru
        _
      %p275 = scmp.le.s32.totalorder 1, %s14
      %p276 = scmp.lt.s32.totalorder %s14, 3
      %p277 = pnand %p275, %p276
      %p278 = pneg %p277
      // Predicated region
      $region37: #{tpu_custom_call.1} parent=5 // pred_check
        _
      $region38: #{tpu_custom_call.1} parent=5 // pred_check_branch
        %280 = sbr.rel (%p277) target = $region40
      $region39: #{tpu_custom_call.1} parent=5 // pred_region
        %s281 = ssub.s32 %s14, 1
        %s282 = sadd.s32 %s25, %s26
        %s283 = smul.u32 2, %s282
        %p284 = scmp.lt.s32.totalorder %s283, 1
        %s285 = scalar_select %p284, %s283, 1
        %s286 = smul.addr %s285, 8
        %s287 = scalar_lea.vmem %s0, %s286
        %p288 = pneg %p61
        %p289 = pneg %p58
        %s290 = sadd.s32 %s25, %s26
        %s291 = smul.u32 2, %s290
        %p292 = scmp.lt.s32.totalorder %s24, 1
        %s293 = scalar_select %p292, %s24, 1
        %p294 = scmp.lt.s32.totalorder %s291, 1
        %s295 = scalar_select %p294, %s291, 1
        %s296 = smul.addr %s293, 2
        %s297 = sadd.s32 %s295, %s296
        %s298 = smul.addr %s297, 4
        %s299 = scalar_lea.vmem %s1, %s298
        %p300 = pneg %p91
        %p301 = pneg %p88
        %s302 = sadd.s32 %s25, %s26
        %s303 = smul.u32 2, %s302
        %p304 = scmp.lt.s32.totalorder %s24, 1
        %s305 = scalar_select %p304, %s24, 1
        %p306 = scmp.lt.s32.totalorder %s303, 1
        %s307 = scalar_select %p306, %s303, 1
        %s308 = smul.addr %s305, 2
        %s309 = sadd.s32 %s307, %s308
        %s310 = smul.addr %s309, 4
        %s311 = scalar_lea.vmem %s2, %s310
        %p312 = pneg %p121
        %p313 = pneg %p118
        %p314 = scmp.lt.s32.totalorder %s24, 1
        %s315 = scalar_select %p314, %s24, 1
        %s316 = smul.addr %s315, 8
        %s317 = scalar_lea.vmem %s3, %s316
        %p318 = pneg %p147
        %p319 = pneg %p144
        %p320 = scmp.lt.s32.totalorder %s24, 1
        %s321 = scalar_select %p320, %s24, 1
        %s322 = smul.addr %s321, 8
        %s323 = scalar_lea.vmem %s4, %s322
        %p324 = pneg %p173
        %p325 = pneg %p170
        %p326 = pneg %p201
        %p327 = pneg %p198
        %s328 = sand.u32 %s188, 1
        %s329 = scalar_lea.sflag [#allocation6], %s328
        %s330 = sand.u32 %s188, 1
        %s331 = smul.addr %s330, 8
        %s332 = scalar_lea.vmem [#allocation5], %s331
        %s333 = sadd.s32 %s25, %s26
        %s334 = smul.u32 2, %s333
        %p335 = scmp.lt.s32.totalorder %s334, 1
        %s336 = scalar_select %p335, %s334, 1
        %s337 = smul.addr %s336, 8
        %s338 = scalar_lea.vmem %s0, %s337
        %s339 = sadd.s32 %s25, %s26
        %s340 = smul.u32 2, %s339
        %s341 = sadd.s32 %s25, %s26
        %s342 = smul.u32 2, %s341
        %p343 = scmp.lt.s32.totalorder %s24, 1
        %s344 = scalar_select %p343, %s24, 1
        %p345 = scmp.lt.s32.totalorder %s342, 1
        %s346 = scalar_select %p345, %s342, 1
        %s347 = smul.addr %s344, 2
        %s348 = sadd.s32 %s346, %s347
        %s349 = smul.addr %s348, 4
        %s350 = scalar_lea.vmem %s1, %s349
        %s351 = sadd.s32 %s25, %s26
        %s352 = smul.u32 2, %s351
        %s353 = sadd.s32 %s25, %s26
        %s354 = smul.u32 2, %s353
        %p355 = scmp.lt.s32.totalorder %s24, 1
        %s356 = scalar_select %p355, %s24, 1
        %p357 = scmp.lt.s32.totalorder %s354, 1
        %s358 = scalar_select %p357, %s354, 1
        %s359 = smul.addr %s356, 2
        %s360 = sadd.s32 %s358, %s359
        %s361 = smul.addr %s360, 4
        %s362 = scalar_lea.vmem %s2, %s361
        %s363 = sadd.s32 %s25, %s26
        %s364 = smul.u32 2, %s363
        %p365 = scmp.lt.s32.totalorder %s24, 1
        %s366 = scalar_select %p365, %s24, 1
        %s367 = smul.addr %s366, 8
        %s368 = scalar_lea.vmem %s3, %s367
        %p369 = scmp.lt.s32.totalorder %s24, 1
        %s370 = scalar_select %p369, %s24, 1
        %s371 = smul.addr %s370, 8
        %s372 = scalar_lea.vmem %s4, %s371
        %p373 = scmp.eq.s32.totalorder %s26, 0
        // Predicated region
        $region41: #{tpu_custom_call.1} parent=39 // pred_check
          %p374 = pneg %p373
        $region42: #{tpu_custom_call.1} parent=39 // pred_check_branch
          %376 = sbr.rel (%p374) target = $region44
        $region43: #{tpu_custom_call.1} parent=39 // pred_region
          %v377 = vlaneseq
          %vm378 = vcmp.ge.s32.totalorder %v377, 0
          %vm379 = vcmp.lt.s32.totalorder %v377, 256
          %vm380 = vmand %vm378, %vm379
          %381 = vst.msk [vmem:[#allocation2] sm:$0x3] %vm380, 0.0
          %382 = vst.msk [vmem:[#allocation3] sm:$0x3] %vm380, 0.0
          %383 = vst.msk [vmem:[#allocation4] sm:$0x3] %vm380, 0.0
        $region44: #{tpu_custom_call.1} parent=39 // pred_fallthru
          _
        %v384 = vld [vmem:[%s338] sm:$0xff]
        %v385 = vld [vmem:[%s338 + $0x8] sm:$0xff]
        %vm386 = vcmp.gt.f32.partialorder %v384, 0.5
        %vm387 = vcmp.gt.f32.partialorder %v385, 0.5
        %v388 = vmul.f32 %v384, 0.5
        %v389 = vmul.f32 %v385, 0.5
        %v392 = vrot.slane %v388, 2
        %v393 = vrot.slane %v389, 2
        %v396 = vsub.f32 %v384, %v392
        %v397 = vsub.f32 %v385, %v393
        %v398 = vadd.f32 %v384, %v392
        %v399 = vadd.f32 %v385, %v393
        %v402 = vrot.slane %v384, 1
        %v403 = vrot.slane %v385, 1
        %v406 = vmul.f32 %v384, %v402
        %v407 = vmul.f32 %v385, %v403
        %v408 = vrcp.pop %v384
        %v409 = vmul.f32 1.0, %v408
        %v410 = vrcp.pop %v385
        %v411 = vmul.f32 1.0, %v410
        %v412 = vld [vmem:[%s362] sm:$0xff]
        %v413 = vld [vmem:[%s350] sm:$0xff]
        %v414 = vsel %vm386, 1, 0
        %v415 = vsel %vm387, 1, 0
        %v416 = vlaneseq
        %v417 = vshrl.u32 %v416, 7
        %v418 = vsub.s32 4, %v417
        %v419 = vrot.slane %v414, %v418
        %v420 = vlaneseq
        %v421 = vshrl.u32 %v420, 7
        %v422 = vsub.s32 4, %v421
        %v423 = vrot.slane %v415, %v422
        %vm424 = vcmp.eq.s32.totalorder %v419, 1
        %vm425 = vcmp.eq.s32.totalorder %v423, 1
        %v427 = vcombine.high %v412, %v412
        %v429 = vsel %vm424, %v412, 0.0
        %v430 = vsel %vm425, %v427, 0.0
        %v432 = vcombine.high %v413, %v413
        %v434 = vsel %vm424, %v413, 0.0
        %v435 = vsel %vm425, %v432, 0.0
        %v436 = vld [vmem:[%s372] sm:$0x3f]
        %v437 = vld [vmem:[%s368] sm:$0x3f]
        %v438 = vcvt.s32.f32 %v437
        %440 = vrot.lane.b32.xlu0 %v436, 126
        %v441 = vpop.permute.xlu0 %440
        %v443 = vadd.f32 %v436, %v441
        %v444 = vmul.f32 %v443, 0.5
        %445 = vrot.lane.b32.xlu0 %v436, 2
        %v446 = vpop.permute.xlu0 %445
        %v448 = vsub.f32 %v436, %v446
        %450 = vrot.lane.b32.xlu0 %v448, 127
        %v451 = vpop.permute.xlu0 %450
        %v453 = vmul.f32 %v448, %v451
        %v454 = vlaneseq
        %v455 = vshrl.u32 %v454, 7
        %v456 = vsub.s32 0, %v455
        %v457 = vrot.slane %v398, %v456
        %v458 = vlaneseq
        %v459 = vshrl.u32 %v458, 7
        %v460 = vsub.s32 0, %v459
        %v461 = vrot.slane %v399, %v460
        %462 = vset.pattern.permute.xlu0 2
        %463 = vperm.xlu0 %462, %v436
        %v464 = vpop.permute.xlu0 %463
        %v466 = vmin.f32 %v457, %v464
        %v467 = vmin.f32 %v461, %v464
        %v468 = vlaneseq
        %v469 = vshrl.u32 %v468, 7
        %v470 = vsub.s32 0, %v469
        %v471 = vrot.slane %v396, %v470
        %v472 = vlaneseq
        %v473 = vshrl.u32 %v472, 7
        %v474 = vsub.s32 0, %v473
        %v475 = vrot.slane %v397, %v474
        %476 = vset.pattern.permute.xlu0 0
        %477 = vperm.xlu0 %476, %v436
        %v478 = vpop.permute.xlu0 %477
        %v480 = vmax.f32 %v471, %v478
        %v481 = vmax.f32 %v475, %v478
        %v482 = vsub.f32 %v466, %v480
        %v483 = vsub.f32 %v467, %v481
        %v484 = vmax.f32 %v482, 0.0
        %v485 = vmax.f32 %v483, 0.0
        %v486 = vlaneseq
        %v487 = vshrl.u32 %v486, 7
        %v488 = vsub.s32 1, %v487
        %v489 = vrot.slane %v398, %v488
        %v490 = vlaneseq
        %v491 = vshrl.u32 %v490, 7
        %v492 = vsub.s32 1, %v491
        %v493 = vrot.slane %v399, %v492
        %494 = vset.pattern.permute.xlu0 3
        %495 = vperm.xlu0 %494, %v436
        %v496 = vpop.permute.xlu0 %495
        %v498 = vmin.f32 %v489, %v496
        %v499 = vmin.f32 %v493, %v496
        %v500 = vlaneseq
        %v501 = vshrl.u32 %v500, 7
        %v502 = vsub.s32 1, %v501
        %v503 = vrot.slane %v396, %v502
        %v504 = vlaneseq
        %v505 = vshrl.u32 %v504, 7
        %v506 = vsub.s32 1, %v505
        %v507 = vrot.slane %v397, %v506
        %508 = vset.pattern.permute.xlu0 1
        %509 = vperm.xlu0 %508, %v436
        %v510 = vpop.permute.xlu0 %509
        %v512 = vmax.f32 %v503, %v510
        %v513 = vmax.f32 %v507, %v510
        %v514 = vsub.f32 %v498, %v512
        %v515 = vsub.f32 %v499, %v513
        %v516 = vmax.f32 %v514, 0.0
        %v517 = vmax.f32 %v515, 0.0
        %v518 = vmul.f32 %v484, %v516
        %v519 = vmul.f32 %v485, %v517
        %v520 = vlaneseq
        %v521 = vshrl.u32 %v520, 7
        %v522 = vsub.s32 2, %v521
        %v523 = vrot.slane %v406, %v522
        %v524 = vlaneseq
        %v525 = vshrl.u32 %v524, 7
        %v526 = vsub.s32 2, %v525
        %v527 = vrot.slane %v407, %v526
        %529 = vset.pattern.permute.xlu0 2
        %530 = vperm.xlu0 %529, %v453
        %v531 = vpop.permute.xlu0 %530
        %v533 = vadd.f32 %v523, %v531
        %v534 = vadd.f32 %v527, %v531
        %v535 = vsub.f32 %v533, %v518
        %v536 = vsub.f32 %v534, %v519
        %v537 = vadd.f32 %v535, 1e-08
        %v538 = vadd.f32 %v536, 1e-08
        %v539 = vrcp.pop %v537
        %v540 = vmul.f32 %v518, %v539
        %v541 = vrcp.pop %v538
        %v542 = vmul.f32 %v519, %v541
        %vm543 = vcmask 1045504
        %v544 = vsel %vm543, %v540, -inf
        %v545 = vrot.slane %v544, 4
        %v546 = vmax.f32 %v544, %v545
        %v547 = vrot.slane %v546, 2
        %v548 = vmax.f32 %v546, %v547
        %v549 = vrot.slane %v548, 1
        %v550 = vmax.f32 %v548, %v549
        %v551 = vsel %vm543, %v542, -inf
        %v552 = vrot.slane %v551, 4
        %v553 = vmax.f32 %v551, %v552
        %v554 = vrot.slane %v553, 2
        %v555 = vmax.f32 %v553, %v554
        %v556 = vrot.slane %v555, 1
        %v557 = vmax.f32 %v555, %v556
        %v558 = vlaneseq
        %v559 = vshrl.u32 %v558, 7
        %vm560 = vcmp.ge.f32.partialorder %v540, %v550
        %vm561 = vcmp.ge.f32.partialorder %v542, %v557
        %v562 = vsel %vm560, %v559, 6
        %v563 = vsel %vm561, %v559, 6
        %v564 = vsel %vm543, %v562, 2147483647
        %v565 = vrot.slane %v564, 4
        %vm566 = vcmp.lt.s32.totalorder %v564, %v565
        %v567 = vsel %vm566, %v564, %v565
        %v568 = vrot.slane %v567, 2
        %vm569 = vcmp.lt.s32.totalorder %v567, %v568
        %v570 = vsel %vm569, %v567, %v568
        %v571 = vrot.slane %v570, 1
        %vm572 = vcmp.lt.s32.totalorder %v570, %v571
        %v573 = vsel %vm572, %v570, %v571
        %v574 = vsel %vm543, %v563, 2147483647
        %v575 = vrot.slane %v574, 4
        %vm576 = vcmp.lt.s32.totalorder %v574, %v575
        %v577 = vsel %vm576, %v574, %v575
        %v578 = vrot.slane %v577, 2
        %vm579 = vcmp.lt.s32.totalorder %v577, %v578
        %v580 = vsel %vm579, %v577, %v578
        %v581 = vrot.slane %v580, 1
        %vm582 = vcmp.lt.s32.totalorder %v580, %v581
        %v583 = vsel %vm582, %v580, %v581
        %vm584 = vcmp.gt.f32.partialorder %v550, 0.5
        %vm585 = vcmp.gt.f32.partialorder %v557, 0.5
        %vm586 = vmand %vm584, %vm386
        %vm587 = vmand %vm585, %vm387
        %vm588 = vcmp.lt.f32.partialorder %v550, 0.4
        %vm589 = vcmp.lt.f32.partialorder %v557, 0.4
        %vm590 = vmor %vm586, %vm588
        %vm591 = vmor %vm587, %vm589
        %vm592 = vmand %vm590, %vm386
        %vm593 = vmand %vm591, %vm387
        %v594 = vsel %vm586, 1, 0
        %v595 = vsel %vm587, 1, 0
        %v596 = vcvt.s32.f32 %v594
        %v597 = vcvt.s32.f32 %v595
        %v598 = vsel %vm592, 1, 0
        %v599 = vsel %vm593, 1, 0
        %v600 = vcvt.s32.f32 %v598
        %v601 = vcvt.s32.f32 %v599
        %vm602 = vcmp.eq.s32.totalorder %v559, %v573
        %vm603 = vcmp.eq.s32.totalorder %v559, %v583
        %v604 = vlaneseq
        %v605 = vshrl.u32 %v604, 7
        %v606 = vsub.s32 4, %v605
        %v607 = vrot.slane %v594, %v606
        %v608 = vlaneseq
        %v609 = vshrl.u32 %v608, 7
        %v610 = vsub.s32 4, %v609
        %v611 = vrot.slane %v595, %v610
        %vm612 = vcmp.eq.s32.totalorder %v607, 1
        %vm613 = vcmp.eq.s32.totalorder %v611, 1
        %vm614 = vmand %vm602, %vm612
        %vm615 = vmand %vm603, %vm613
        %v616 = vsel %vm614, 1, 0
        %v617 = vsel %vm615, 1, 0
        %v618 = vcvt.s32.f32 %v616
        %v619 = vcvt.s32.f32 %v617
        %v620 = vld [vmem:[#allocation4] sm:$0x3]
        %v623 = vcombine.high %v596, %v597
        %v625 = vunpack.c.l.s4 1966171168
        %v626 = vunpack.c.0.s8 %v625
        %v627 = vlaneseq
        %v628 = vshrl.u32 %v627, 7
        %v629 = vsub.s32 %v626, %v628
        %v630 = vrot.slane %v623, %v629
        %v632 = vunpack.c.l.s4 1966171168
        %v633 = vunpack.c.0.s8 %v632
        %v634 = vlaneseq
        %v635 = vshrl.u32 %v634, 7
        %v636 = vsub.s32 %v633, %v635
        %v637 = vrot.slane %v630, %v636
        %v639 = vadd.f32 %v620, %v637
        %v640 = vlaneseq
        %vm641 = vcmp.ge.s32.totalorder %v640, 0
        %vm642 = vcmp.lt.s32.totalorder %v640, 256
        %vm643 = vmand %vm641, %vm642
        %644 = vst.msk [vmem:[#allocation4] sm:$0x3] %vm643, %v639
        %646 = vset.pattern.permute.xlu0 0
        %647 = vperm.xlu0 %646, %v444
        %v648 = vpop.permute.xlu0 %647
        %v650 = vmul.f32 %v618, %v648
        %v651 = vmul.f32 %v619, %v648
        %v652 = vsel %vm543, %v650, 0.0
        %v653 = vrot.slane %v652, 4
        %v654 = vadd.f32 %v652, %v653
        %v655 = vrot.slane %v654, 2
        %v656 = vadd.f32 %v654, %v655
        %v657 = vrot.slane %v656, 1
        %v658 = vadd.f32 %v656, %v657
        %v659 = vsel %vm543, %v651, 0.0
        %v660 = vrot.slane %v659, 4
        %v661 = vadd.f32 %v659, %v660
        %v662 = vrot.slane %v661, 2
        %v663 = vadd.f32 %v661, %v662
        %v664 = vrot.slane %v663, 1
        %v665 = vadd.f32 %v663, %v664
        %666 = vset.pattern.permute.xlu0 1
        %667 = vperm.xlu0 %666, %v444
        %v668 = vpop.permute.xlu0 %667
        %v670 = vmul.f32 %v618, %v668
        %v671 = vmul.f32 %v619, %v668
        %v672 = vsel %vm543, %v670, 0.0
        %v673 = vrot.slane %v672, 4
        %v674 = vadd.f32 %v672, %v673
        %v675 = vrot.slane %v674, 2
        %v676 = vadd.f32 %v674, %v675
        %v677 = vrot.slane %v676, 1
        %v678 = vadd.f32 %v676, %v677
        %v679 = vsel %vm543, %v671, 0.0
        %v680 = vrot.slane %v679, 4
        %v681 = vadd.f32 %v679, %v680
        %v682 = vrot.slane %v681, 2
        %v683 = vadd.f32 %v681, %v682
        %v684 = vrot.slane %v683, 1
        %v685 = vadd.f32 %v683, %v684
        %686 = vset.pattern.permute.xlu0 2
        %687 = vperm.xlu0 %686, %v448
        %v688 = vpop.permute.xlu0 %687
        %v690 = vmul.f32 %v618, %v688
        %v691 = vmul.f32 %v619, %v688
        %v692 = vsel %vm543, %v690, 0.0
        %v693 = vrot.slane %v692, 4
        %v694 = vadd.f32 %v692, %v693
        %v695 = vrot.slane %v694, 2
        %v696 = vadd.f32 %v694, %v695
        %v697 = vrot.slane %v696, 1
        %v698 = vadd.f32 %v696, %v697
        %v699 = vsel %vm543, %v691, 0.0
        %v700 = vrot.slane %v699, 4
        %v701 = vadd.f32 %v699, %v700
        %v702 = vrot.slane %v701, 2
        %v703 = vadd.f32 %v701, %v702
        %v704 = vrot.slane %v703, 1
        %v705 = vadd.f32 %v703, %v704
        %706 = vset.pattern.permute.xlu0 3
        %707 = vperm.xlu0 %706, %v448
        %v708 = vpop.permute.xlu0 %707
        %v710 = vmul.f32 %v618, %v708
        %v711 = vmul.f32 %v619, %v708
        %v712 = vsel %vm543, %v710, 0.0
        %v713 = vrot.slane %v712, 4
        %v714 = vadd.f32 %v712, %v713
        %v715 = vrot.slane %v714, 2
        %v716 = vadd.f32 %v714, %v715
        %v717 = vrot.slane %v716, 1
        %v718 = vadd.f32 %v716, %v717
        %v719 = vsel %vm543, %v711, 0.0
        %v720 = vrot.slane %v719, 4
        %v721 = vadd.f32 %v719, %v720
        %v722 = vrot.slane %v721, 2
        %v723 = vadd.f32 %v721, %v722
        %v724 = vrot.slane %v723, 1
        %v725 = vadd.f32 %v723, %v724
        %727 = vset.pattern.permute.xlu0 0
        %728 = vperm.xlu0 %727, %v438
        %v729 = vpop.permute.xlu0 %728
        %v731 = vmul.f32 %v618, %v729
        %v732 = vmul.f32 %v619, %v729
        %v733 = vsel %vm543, %v731, 0.0
        %v734 = vrot.slane %v733, 4
        %v735 = vadd.f32 %v733, %v734
        %v736 = vrot.slane %v735, 2
        %v737 = vadd.f32 %v735, %v736
        %v738 = vrot.slane %v737, 1
        %v739 = vadd.f32 %v737, %v738
        %v740 = vsel %vm543, %v732, 0.0
        %v741 = vrot.slane %v740, 4
        %v742 = vadd.f32 %v740, %v741
        %v743 = vrot.slane %v742, 2
        %v744 = vadd.f32 %v742, %v743
        %v745 = vrot.slane %v744, 1
        %v746 = vadd.f32 %v744, %v745
        %v747 = vsub.f32 %v658, %v384
        %v748 = vsub.f32 %v665, %v385
        %v751 = vrot.slane %v409, 2
        %v752 = vrot.slane %v411, 2
        %v755 = vmul.f32 %v747, %v751
        %v756 = vmul.f32 %v748, %v752
        %v757 = vmul.f32 %v755, 10.0
        %v758 = vmul.f32 %v756, 10.0
        %v759 = vsub.f32 %v678, %v384
        %v760 = vsub.f32 %v685, %v385
        %v761 = vmul.f32 %v759, %v751
        %v762 = vmul.f32 %v760, %v752
        %v763 = vmul.f32 %v761, 10.0
        %v764 = vmul.f32 %v762, 10.0
        %v765 = vmul.f32 %v698, %v409
        %v766 = vmul.f32 %v705, %v411
        %v767 = vadd.f32 %v765, 1e-08
        %v768 = vadd.f32 %v766, 1e-08
        %v769 = vlog2.pop %v767
        %v770 = vmul.f32 %v769, 0.6931472
        %v771 = vlog2.pop %v768
        %v772 = vmul.f32 %v771, 0.6931472
        %v773 = vmul.f32 %v770, 5.0
        %v774 = vmul.f32 %v772, 5.0
        %v775 = vmul.f32 %v718, %v409
        %v776 = vmul.f32 %v725, %v411
        %v777 = vadd.f32 %v775, 1e-08
        %v778 = vadd.f32 %v776, 1e-08
        %v779 = vlog2.pop %v777
        %v780 = vmul.f32 %v779, 0.6931472
        %v781 = vlog2.pop %v778
        %v782 = vmul.f32 %v781, 0.6931472
        %v783 = vmul.f32 %v780, 5.0
        %v784 = vmul.f32 %v782, 5.0
        %v785 = vsub.f32 %v429, %v757
        %v786 = vsub.f32 %v430, %v758
        %v787 = vand.u32 2147483647, %v785
        %v788 = vand.u32 2147483647, %v786
        %vm789 = vcmp.lt.f32.partialorder %v787, 1.0
        %vm790 = vcmp.lt.f32.partialorder %v788, 1.0
        %v791 = vmul.f32 %v785, 0.5
        %v792 = vmul.f32 %v786, 0.5
        %v793 = vmul.f32 %v791, %v785
        %v794 = vmul.f32 %v792, %v786
        %v795 = vsub.f32 %v787, 0.5
        %v796 = vsub.f32 %v788, 0.5
        %v797 = vsel %vm789, %v793, %v795
        %v798 = vsel %vm790, %v794, %v796
        %v799 = vsub.f32 %v429, %v763
        %v800 = vsub.f32 %v430, %v764
        %v801 = vand.u32 2147483647, %v799
        %v802 = vand.u32 2147483647, %v800
        %vm803 = vcmp.lt.f32.partialorder %v801, 1.0
        %vm804 = vcmp.lt.f32.partialorder %v802, 1.0
        %v805 = vmul.f32 %v799, 0.5
        %v806 = vmul.f32 %v800, 0.5
        %v807 = vmul.f32 %v805, %v799
        %v808 = vmul.f32 %v806, %v800
        %v809 = vsub.f32 %v801, 0.5
        %v810 = vsub.f32 %v802, 0.5
        %v811 = vsel %vm803, %v807, %v809
        %v812 = vsel %vm804, %v808, %v810
        %v815 = vrot.slane %v811, 1
        %v816 = vrot.slane %v812, 1
        %v819 = vadd.f32 %v797, %v815
        %v820 = vadd.f32 %v798, %v816
        %v821 = vsub.f32 %v429, %v773
        %v822 = vsub.f32 %v430, %v774
        %v823 = vand.u32 2147483647, %v821
        %v824 = vand.u32 2147483647, %v822
        %vm825 = vcmp.lt.f32.partialorder %v823, 1.0
        %vm826 = vcmp.lt.f32.partialorder %v824, 1.0
        %v827 = vmul.f32 %v821, 0.5
        %v828 = vmul.f32 %v822, 0.5
        %v829 = vmul.f32 %v827, %v821
        %v830 = vmul.f32 %v828, %v822
        %v831 = vsub.f32 %v823, 0.5
        %v832 = vsub.f32 %v824, 0.5
        %v833 = vsel %vm825, %v829, %v831
        %v834 = vsel %vm826, %v830, %v832
        %v837 = vrot.slane %v833, 2
        %v838 = vrot.slane %v834, 2
        %v841 = vadd.f32 %v819, %v837
        %v842 = vadd.f32 %v820, %v838
        %v843 = vsub.f32 %v429, %v783
        %v844 = vsub.f32 %v430, %v784
        %v845 = vand.u32 2147483647, %v843
        %v846 = vand.u32 2147483647, %v844
        %vm847 = vcmp.lt.f32.partialorder %v845, 1.0
        %vm848 = vcmp.lt.f32.partialorder %v846, 1.0
        %v849 = vmul.f32 %v843, 0.5
        %v850 = vmul.f32 %v844, 0.5
        %v851 = vmul.f32 %v849, %v843
        %v852 = vmul.f32 %v850, %v844
        %v853 = vsub.f32 %v845, 0.5
        %v854 = vsub.f32 %v846, 0.5
        %v855 = vsel %vm847, %v851, %v853
        %v856 = vsel %vm848, %v852, %v854
        %v859 = vrot.slane %v855, 3
        %v860 = vrot.slane %v856, 3
        %v863 = vadd.f32 %v841, %v859
        %v864 = vadd.f32 %v842, %v860
        %v865 = vld [vmem:[#allocation2] sm:$0x3]
        %v866 = vrot.slane %v596, 4
        %v867 = vrot.slane %v597, 4
        %v870 = vmul.f32 %v863, %v866
        %v871 = vmul.f32 %v864, %v867
        %v874 = vcombine.low %v870, %v871
        %v876 = vunpack.c.l.s4 1966171168
        %v877 = vunpack.c.0.s8 %v876
        %v878 = vlaneseq
        %v879 = vshrl.u32 %v878, 7
        %v880 = vsub.s32 %v877, %v879
        %v881 = vrot.slane %v874, %v880
        %v883 = vunpack.c.l.s4 1966171168
        %v884 = vunpack.c.0.s8 %v883
        %v885 = vlaneseq
        %v886 = vshrl.u32 %v885, 7
        %v887 = vsub.s32 %v884, %v886
        %v888 = vrot.slane %v881, %v887
        %v890 = vadd.f32 %v865, %v888
        %891 = vst.msk [vmem:[#allocation2] sm:$0x3] %vm643, %v890
        %v892 = vcvt.f32.s32.to.zero.pseudo %v739
        %v893 = vcvt.f32.s32.to.zero.pseudo %v746
        %v894 = vsub.s32 %v892, 1
        %v895 = vsub.s32 %v893, 1
        %vm896 = vcmp.eq.s32.totalorder %v559, %v894
        %vm897 = vcmp.eq.s32.totalorder %v559, %v895
        %v898 = vsel %vm896, 1, 0
        %v899 = vsel %vm897, 1, 0
        %v900 = vcvt.s32.f32 %v898
        %v901 = vcvt.s32.f32 %v899
        %v902 = vand.u32 2147483647, %v434
        %v903 = vand.u32 2147483647, %v435
        %v904 = vsub.f32 0.0, %v902
        %v905 = vsub.f32 0.0, %v903
        %v906 = vmul.f32 %v904, 1.442695
        %v907 = vpow.pop %v906
        %v908 = vmul.f32 %v905, 1.442695
        %v909 = vpow.pop %v908
        %v910 = vadd.f32 %v907, 1.0
        %v911 = vadd.f32 %v909, 1.0
        %v912 = vrcp.pop %v910
        %v913 = vrcp.pop %v911
        %vm914 = vcmp.ge.f32.partialorder %v434, 0.0
        %vm915 = vcmp.ge.f32.partialorder %v435, 0.0
        %v916 = vmul.f32 %v907, %v912
        %v917 = vmul.f32 %v909, %v913
        %v918 = vsel %vm914, %v912, %v916
        %v919 = vsel %vm915, %v913, %v917
        %v920 = vmul.f32 %v918, 2.0
        %v921 = vmul.f32 %v919, 2.0
        %v922 = vsub.f32 1.0, %v920
        %v923 = vsub.f32 1.0, %v921
        %v924 = vmul.f32 %v900, %v922
        %v925 = vmul.f32 %v901, %v923
        %v926 = vadd.f32 %v918, %v924
        %v927 = vadd.f32 %v919, %v925
        %v928 = vmul.f32 %v900, 0.5
        %v929 = vmul.f32 %v901, 0.5
        %v930 = vadd.f32 %v928, 0.25
        %v931 = vadd.f32 %v929, 0.25
        %v932 = vmul.f32 %v926, %v926
        %v933 = vmul.f32 %v927, %v927
        %v934 = vmul.f32 %v932, %v930
        %v935 = vmul.f32 %v933, %v931
        %v936 = vmax.f32 %v434, 0.0
        %v937 = vmax.f32 %v435, 0.0
        %v938 = vmul.f32 %v434, %v900
        %v939 = vmul.f32 %v435, %v901
        %v940 = vsub.f32 %v936, %v938
        %v941 = vsub.f32 %v937, %v939
        %v942 = vlog2.pop %v910
        %v943 = vmul.f32 %v942, 0.6931472
        %v944 = vlog2.pop %v911
        %v945 = vmul.f32 %v944, 0.6931472
        %v946 = vadd.f32 %v940, %v943
        %v947 = vadd.f32 %v941, %v945
        %v948 = vld [vmem:[#allocation3] sm:$0x3]
        %v949 = vmul.f32 %v934, %v946
        %v950 = vmul.f32 %v935, %v947
        %vm951 = vcmask 1043456
        %v952 = vsel %vm951, %v949, 0.0
        %v953 = vrot.slane %v952, 4
        %v954 = vadd.f32 %v952, %v953
        %v955 = vrot.slane %v954, 2
        %v956 = vadd.f32 %v954, %v955
        %v957 = vrot.slane %v956, 1
        %v958 = vadd.f32 %v956, %v957
        %v959 = vsel %vm951, %v950, 0.0
        %v960 = vrot.slane %v959, 4
        %v961 = vadd.f32 %v959, %v960
        %v962 = vrot.slane %v961, 2
        %v963 = vadd.f32 %v961, %v962
        %v964 = vrot.slane %v963, 1
        %v965 = vadd.f32 %v963, %v964
        %v966 = vmul.f32 %v958, %v600
        %v967 = vmul.f32 %v965, %v601
        %v970 = vcombine.high %v966, %v967
        %v972 = vunpack.c.l.s4 1966171168
        %v973 = vunpack.c.0.s8 %v972
        %v974 = vlaneseq
        %v975 = vshrl.u32 %v974, 7
        %v976 = vsub.s32 %v973, %v975
        %v977 = vrot.slane %v970, %v976
        %v979 = vunpack.c.l.s4 1966171168
        %v980 = vunpack.c.0.s8 %v979
        %v981 = vlaneseq
        %v982 = vshrl.u32 %v981, 7
        %v983 = vsub.s32 %v980, %v982
        %v984 = vrot.slane %v977, %v983
        %v986 = vadd.f32 %v948, %v984
        %987 = vst.msk [vmem:[#allocation3] sm:$0x3] %vm643, %v986
        // Predicated region
        $region45: #{tpu_custom_call.1} parent=39 // pred_check
          %p988 = pneg %p373
        $region46: #{tpu_custom_call.1} parent=39 // pred_check_branch
          %990 = sbr.rel (%p988) target = $region48
        $region47: #{tpu_custom_call.1} parent=39 // pred_region
          %v991 = vld [vmem:[#allocation2] sm:$0x3]
          %v993 = vlaneseq
          %v994 = vshrl.u32 %v993, 7
          %v995 = vsub.s32 0, %v994
          %v996 = vrot.slane %v991, %v995
          %v997 = vlaneseq
          %v998 = vshrl.u32 %v997, 7
          %v999 = vsub.s32 1, %v998
          %v1000 = vrot.slane %v991, %v999
          %vm1003 = vcmask 1040384
          %v1004 = vsel %vm1003, %v996, 0.0
          %v1005 = vsel %vm1003, %v1000, 0.0
          %v1006 = vadd.f32 %v1004, %v1005
          %1007 = vadd.xlane.f32.xlu0 %v1006
          %v1008 = vpop.xlane.xlu0 %1007
          %v1009 = vrot.slane %v1008, 4
          %v1010 = vadd.f32 %v1008, %v1009
          %v1011 = vrot.slane %v1010, 2
          %v1012 = vadd.f32 %v1010, %v1011
          %v1013 = vrot.slane %v1012, 1
          %v1014 = vadd.f32 %v1012, %v1013
          %s1015 = vtos %v1014
          %v1016 = vld [vmem:[#allocation3] sm:$0x3]
          %v1018 = vlaneseq
          %v1019 = vshrl.u32 %v1018, 7
          %v1020 = vsub.s32 0, %v1019
          %v1021 = vrot.slane %v1016, %v1020
          %v1022 = vlaneseq
          %v1023 = vshrl.u32 %v1022, 7
          %v1024 = vsub.s32 1, %v1023
          %v1025 = vrot.slane %v1016, %v1024
          %v1028 = vsel %vm1003, %v1021, 0.0
          %v1029 = vsel %vm1003, %v1025, 0.0
          %v1030 = vadd.f32 %v1028, %v1029
          %1031 = vadd.xlane.f32.xlu0 %v1030
          %v1032 = vpop.xlane.xlu0 %1031
          %v1033 = vrot.slane %v1032, 4
          %v1034 = vadd.f32 %v1032, %v1033
          %v1035 = vrot.slane %v1034, 2
          %v1036 = vadd.f32 %v1034, %v1035
          %v1037 = vrot.slane %v1036, 1
          %v1038 = vadd.f32 %v1036, %v1037
          %s1039 = vtos %v1038
          %v1040 = vld [vmem:[#allocation4] sm:$0x3]
          %v1042 = vlaneseq
          %v1043 = vshrl.u32 %v1042, 7
          %v1044 = vsub.s32 0, %v1043
          %v1045 = vrot.slane %v1040, %v1044
          %v1046 = vlaneseq
          %v1047 = vshrl.u32 %v1046, 7
          %v1048 = vsub.s32 1, %v1047
          %v1049 = vrot.slane %v1040, %v1048
          %v1052 = vsel %vm1003, %v1045, 0.0
          %v1053 = vsel %vm1003, %v1049, 0.0
          %v1054 = vadd.f32 %v1052, %v1053
          %1055 = vadd.xlane.f32.xlu0 %v1054
          %v1056 = vpop.xlane.xlu0 %1055
          %v1057 = vrot.slane %v1056, 4
          %v1058 = vadd.f32 %v1056, %v1057
          %v1059 = vrot.slane %v1058, 2
          %v1060 = vadd.f32 %v1058, %v1059
          %v1061 = vrot.slane %v1060, 1
          %v1062 = vadd.f32 %v1060, %v1061
          %s1063 = vtos %v1062
          %vm1064 = vcmp.eq.s32.totalorder %v559, 0
          %vm1065 = vcmp.eq.s32.totalorder %v559, 1
          %vm1066 = vcmp.eq.s32.totalorder %v559, 2
          %v1067 = vstv %s1063
          %v1068 = vsel %vm1066, %v1067, 0.0
          %v1069 = vstv %s1039
          %v1070 = vsel %vm1065, %v1069, %v1068
          %v1071 = vstv %s1015
          %v1072 = vsel %vm1064, %v1071, %v1070
          %1073 = vst [vmem:[%s332] sm:$0xff] %v1072
        $region48: #{tpu_custom_call.1} parent=39 // pred_fallthru
          _
        %s1074 = sand.u32 %s188, 1
        %s1075 = scalar_lea.sflag [#allocation6], %s1074
        %s1076 = sand.u32 %s188, 1
        %s1077 = smul.addr %s1076, 8
        %s1078 = scalar_lea.vmem [#allocation5], %s1077
        // Predicated region
        $region49: #{tpu_custom_call.1} parent=39 // pred_check
          %p1079 = pneg %p198
        $region50: #{tpu_custom_call.1} parent=39 // pred_check_branch
          %1081 = sbr.rel (%p1079) target = $region52
        $region51: #{tpu_custom_call.1} parent=39 // pred_region
          %s1083 = ssub.s32 128, 128
          %1084 = vsyncadd %s1075, %s1083
          %s1085 = sadd.s32 %s25, %s24
          %s1086 = smul.addr %s1085, 128
          %s1087 = scalar_lea.hbm %s5, %s1086
          %s1089 = sshll.u32 %s1078, 4
          %s1090 = int_to_ptr.vmem [resolvable:$true] %s1089
          %1092 = dma.vmem_to_hbm [thread:$0]  %s1090, 128, %s1087, %s1075
        $region52: #{tpu_custom_call.1} parent=39 // pred_fallthru
          _
      $region40: #{tpu_custom_call.1} parent=5 // pred_fallthru
        _
      %p1093 = scmp.le.s32.totalorder 2, %s14
      // Predicated region
      $region53: #{tpu_custom_call.1} parent=5 // pred_check
        %p1094 = pneg %p1093
      $region54: #{tpu_custom_call.1} parent=5 // pred_check_branch
        %1096 = sbr.rel (%p1094) target = $region56
      $region55: #{tpu_custom_call.1} parent=5 // pred_region
        %s1097 = ssub.s32 %s14, 2
        // Predicated region
        $region57: #{tpu_custom_call.1} parent=55 // pred_check
          %p1098 = pneg %p204
        $region58: #{tpu_custom_call.1} parent=55 // pred_check_branch
          %1100 = sbr.rel (%p1098) target = $region60
        $region59: #{tpu_custom_call.1} parent=55 // pred_region
          %s1101 = sand.u32 %s189, 1
          %s1102 = scalar_lea.sflag [#allocation6], %s1101
          %s1103 = sand.u32 %s189, 1
          %s1104 = smul.addr %s1103, 8
          %s1105 = scalar_lea.vmem [#allocation5], %s1104
          %1106 = dma.done %s1102, 128
        $region60: #{tpu_custom_call.1} parent=55 // pred_fallthru
          _
      $region56: #{tpu_custom_call.1} parent=5 // pred_fallthru
        _
    $region6: #{tpu_custom_call.1} parent=1 // loop_footer
      %s18 = sadd.s32 1, %s14
    $region7: #{tpu_custom_call.1} parent=1 // loop_footer_branch
      %13 = sbr.rel target = $region3
    $region8: #{tpu_custom_call.1} parent=1 // loop_exit
      _
    %1107 = vsyncpa [#allocation6], 1
    %s1108 = scalar_lea.sflag [#allocation6], 1
    %1109 = vsyncpa %s1108, 1

</llo_original>
